<compile_context>
chip_gen: v7x
topology: tpu7x:2x2x1
jax: 0.10.0
libtpu: 0.0.40
codegen_flags: <defaults>
</compile_context>

<pallas_src>
import functools

import jax
import jax.numpy as jnp
from jax import lax
from jax.experimental import pallas as pl
from jax.experimental.pallas import tpu as pltpu

LN_EPS = 1e-6


def _layernorm(v, g, b):
    mu = jnp.mean(v, axis=-1, keepdims=True)
    var = jnp.mean((v - mu) ** 2, axis=-1, keepdims=True)
    return (v - mu) * lax.rsqrt(var + LN_EPS) * g + b


def _gelu_exact(v):
    # matches nn.GELU() (erf form)
    return 0.5 * v * (1.0 + lax.erf(v * 0.7071067811865476))


def _pick_tile(total, candidates):
    for t in candidates:
        if t <= total and total % t == 0:
            return t
    # TODO(synk): shapes with no small divisor (e.g. N = 37*37) fall back to a single
    # full-extent tile; a padded/masked tiling would be needed to cap VMEM there (v7x).
    return total


# ----------------------------------------------------------------- kernel A: LN1 + QKV
def _qkv_kernel(x_ref, ln1g_ref, ln1b_ref, wqkv_ref, bqkv_ref, o_ref):
    x = x_ref[...].astype(jnp.float32)                                 # (TM, C)
    h = _layernorm(x, ln1g_ref[0], ln1b_ref[0])
    qkv = jnp.dot(h.astype(jnp.bfloat16), wqkv_ref[...],               # bf16 x bf16 -> f32
                  preferred_element_type=jnp.float32) + bqkv_ref[0]
    o_ref[...] = qkv.astype(o_ref.dtype)


# ------------------------------------------- kernel B: flash attention + proj + MLP + LN
def _attn_mlp_kernel(x_ref, q_ref, k_ref, v_ref,
                     wproj_ref, bproj_ref, ln2g_ref, ln2b_ref,
                     wfc1_ref, bfc1_ref, wfc2_ref, bfc2_ref,
                     ln3g_ref, ln3b_ref,
                     o_ref, m_scr, l_scr, acc_scr):
    ki = pl.program_id(2)

    @pl.when(ki == 0)
    def _():
        m_scr[...] = jnp.full(m_scr.shape, -jnp.inf, jnp.float32)
        l_scr[...] = jnp.zeros(l_scr.shape, jnp.float32)
        acc_scr[...] = jnp.zeros(acc_scr.shape, jnp.float32)

    q = q_ref[0]                     # (nh, TQ, hd) bf16, scale already folded into Wq/bq
    k = k_ref[0]                     # (nh, TK, hd) bf16
    v = v_ref[0]                     # (nh, TK, hd) bf16

    # Head-batched score matmul, contracting on head_dim (no explicit k.T / XLU transpose).
    s = lax.dot_general(q, k, dimension_numbers=(((2,), (2,)), ((0,), (0,))),
                        preferred_element_type=jnp.float32)            # (nh, TQ, TK) f32

    # Online softmax accumulation (f32 statistics).
    m_prev = m_scr[...]
    m_new = jnp.maximum(m_prev, jnp.max(s, axis=-1, keepdims=True))
    alpha = jnp.exp(m_prev - m_new)
    p = jnp.exp(s - m_new)
    l_scr[...] = alpha * l_scr[...] + jnp.sum(p, axis=-1, keepdims=True)
    pv = lax.dot_general(p.astype(jnp.bfloat16), v,
                         dimension_numbers=(((2,), (1,)), ((0,), (0,))),
                         preferred_element_type=jnp.float32)            # (nh, TQ, hd)
    acc_scr[...] = alpha * acc_scr[...] + pv
    m_scr[...] = m_new

    @pl.when(ki == pl.num_programs(2) - 1)
    def _():
        x = x_ref[0].astype(jnp.float32)                                # (TQ, C)
        inv_l = pl.reciprocal(l_scr[...], approx=True)                  # EUP slot
        attn = (acc_scr[...] * inv_l).astype(jnp.bfloat16)              # (nh, TQ, hd)

        # Per-head projection then sum over heads: avoids a (nh,TQ,hd)->(TQ,C) relayout.
        proj_h = lax.dot_general(attn, wproj_ref[...],
                                 dimension_numbers=(((2,), (1,)), ((0,), (0,))),
                                 preferred_element_type=jnp.float32)    # (nh, TQ, C)
        x = x + jnp.sum(proj_h, axis=0) + bproj_ref[0]

        # MLP branch (bf16 operands, f32 accumulation, f32 elementwise).
        h = _layernorm(x, ln2g_ref[0], ln2b_ref[0])
        h = jnp.dot(h.astype(jnp.bfloat16), wfc1_ref[...],
                    preferred_element_type=jnp.float32) + bfc1_ref[0]
        h = _gelu_exact(h)
        h = jnp.dot(h.astype(jnp.bfloat16), wfc2_ref[...],
                    preferred_element_type=jnp.float32) + bfc2_ref[0]
        x = x + h

        # trailing nn.LayerNorm (with_layer_norm=True)
        x = _layernorm(x, ln3g_ref[0], ln3b_ref[0])
        o_ref[0] = x.astype(o_ref.dtype)


# ----------------------------------------------------------------------------- params
def init_denoiser_params(key, feature_dim: int):
    """Canonical f32 parameters (same convention as PyTorch, Linear stored as (in, out))."""
    C = feature_dim
    ks = jax.random.split(key, 4)
    std = 0.02
    return {
        "ln1_g": jnp.ones((1, C), jnp.float32), "ln1_b": jnp.zeros((1, C), jnp.float32),
        "ln2_g": jnp.ones((1, C), jnp.float32), "ln2_b": jnp.zeros((1, C), jnp.float32),
        "ln3_g": jnp.ones((1, C), jnp.float32), "ln3_b": jnp.zeros((1, C), jnp.float32),
        "w_qkv":  jax.random.normal(ks[0], (C, 3 * C), jnp.float32) * std,
        "b_qkv":  jnp.zeros((1, 3 * C), jnp.float32),
        "w_proj": jax.random.normal(ks[1], (C, C), jnp.float32) * std,
        "b_proj": jnp.zeros((1, C), jnp.float32),
        "w_fc1":  jax.random.normal(ks[2], (C, 4 * C), jnp.float32) * std,
        "b_fc1":  jnp.zeros((1, 4 * C), jnp.float32),
        "w_fc2":  jax.random.normal(ks[3], (4 * C, C), jnp.float32) * std,
        "b_fc2":  jnp.zeros((1, C), jnp.float32),
    }


def prepare_kernel_params(params, num_heads: int):
    """Kernel-layout parameters: bf16 matmul weights, attn scale folded into Wq/bq,
    Wproj reshaped to head-major (nh, hd, C). Biases / LN params stay f32."""
    C = params["w_qkv"].shape[0]
    hd = C // num_heads
    scale = hd ** -0.5
    col_scale = jnp.concatenate([jnp.full((C,), scale, jnp.float32),
                                 jnp.ones((2 * C,), jnp.float32)])
    return {
        "ln1_g": params["ln1_g"], "ln1_b": params["ln1_b"],
        "w_qkv": (params["w_qkv"] * col_scale[None, :]).astype(jnp.bfloat16),
        "b_qkv": params["b_qkv"] * col_scale[None, :],
        "w_proj": params["w_proj"].reshape(num_heads, hd, C).astype(jnp.bfloat16),
        "b_proj": params["b_proj"],
        "ln2_g": params["ln2_g"], "ln2_b": params["ln2_b"],
        "w_fc1": params["w_fc1"].astype(jnp.bfloat16), "b_fc1": params["b_fc1"],
        "w_fc2": params["w_fc2"].astype(jnp.bfloat16), "b_fc2": params["b_fc2"],
        "ln3_g": params["ln3_g"], "ln3_b": params["ln3_b"],
    }


# ----------------------------------------------------------------------------- wrapper
def _weight_spec(shape, single_buffer):
    zeros = (0,) * len(shape)
    idx = lambda *_: zeros                      # constant index map -> fetched once
    if single_buffer:
        return pl.BlockSpec(shape, idx, pipeline_mode=pl.Buffered(1))
    return pl.BlockSpec(shape, idx)


@functools.partial(jax.jit, static_argnums=(2, 3))
def _denoiser_forward_impl(x_bhwc, params, num_heads, single_buffer_weights):
    B, H, W, C = x_bhwc.shape
    N = H * W
    BN = B * N
    hd = C // num_heads
    kp = prepare_kernel_params(params, num_heads)
    wspec = functools.partial(_weight_spec, single_buffer=single_buffer_weights)

    # ----- pass 1: LN1 + QKV projection, batch folded into the M dimension -----
    TM = _pick_tile(BN, (512, 256, 128, 64, 32, 16, 8))
    x_flat = x_bhwc.reshape(BN, C)

    qkv = pl.pallas_call(
        _qkv_kernel,
        out_shape=jax.ShapeDtypeStruct((BN, 3 * C), jnp.bfloat16),
        grid=(BN // TM,),
        in_specs=[pl.BlockSpec((TM, C), lambda i: (i, 0)),
                  wspec((1, C)), wspec((1, C)),
                  wspec((C, 3 * C)), wspec((1, 3 * C))],
        out_specs=pl.BlockSpec((TM, 3 * C), lambda i: (i, 0)),
        compiler_params=pltpu.CompilerParams(
            dimension_semantics=("parallel",),
            vmem_limit_bytes=32 * 1024 * 1024),
    )(x_flat, kp["ln1_g"], kp["ln1_b"], kp["w_qkv"], kp["b_qkv"])

    # Wrapper-side layout plumbing only (fused under jit): head-major (B, nh, N, hd) slabs.
    qkv_t = qkv.reshape(B, N, 3, num_heads, hd).transpose(2, 0, 3, 1, 4)
    q, k, v = qkv_t[0], qkv_t[1], qkv_t[2]

    # ----- pass 2: flash attention (online softmax over kv tiles) + proj + MLP + LN -----
    # Tiles capped so the (nh, TQ, TK) f32 score intermediate stays a small VMEM temporary.
    TQ = _pick_tile(N, (128, 64, 32, 16, 8))
    TK = _pick_tile(N, (256, 128, 64, 32, 16, 8))
    x_tok = x_bhwc.reshape(B, N, C)

    in_specs = [
        pl.BlockSpec((1, TQ, C), lambda b, qi, ki: (b, qi, 0)),
        pl.BlockSpec((1, num_heads, TQ, hd), lambda b, qi, ki: (b, 0, qi, 0)),
        pl.BlockSpec((1, num_heads, TK, hd), lambda b, qi, ki: (b, 0, ki, 0)),
        pl.BlockSpec((1, num_heads, TK, hd), lambda b, qi, ki: (b, 0, ki, 0)),
        wspec((num_heads, hd, C)), wspec((1, C)),
        wspec((1, C)), wspec((1, C)),
        wspec((C, 4 * C)), wspec((1, 4 * C)),
        wspec((4 * C, C)), wspec((1, C)),
        wspec((1, C)), wspec((1, C)),
    ]

    out_tok = pl.pallas_call(
        _attn_mlp_kernel,
        out_shape=jax.ShapeDtypeStruct((B, N, C), x_bhwc.dtype),
        grid=(B, N // TQ, N // TK),
        in_specs=in_specs,
        out_specs=pl.BlockSpec((1, TQ, C), lambda b, qi, ki: (b, qi, 0)),
        scratch_shapes=[pltpu.VMEM((num_heads, TQ, 1), jnp.float32),
                        pltpu.VMEM((num_heads, TQ, 1), jnp.float32),
                        pltpu.VMEM((num_heads, TQ, hd), jnp.float32)],
        compiler_params=pltpu.CompilerParams(
            dimension_semantics=("parallel", "parallel", "arbitrary"),
            vmem_limit_bytes=32 * 1024 * 1024),
    )(x_tok, q, k, v,
      kp["w_proj"], kp["b_proj"], kp["ln2_g"], kp["ln2_b"],
      kp["w_fc1"], kp["b_fc1"], kp["w_fc2"], kp["b_fc2"],
      kp["ln3_g"], kp["ln3_b"])

    return out_tok.reshape(B, H, W, C)


def denoiser_forward(x_bhwc, params, num_heads):
    try:
        return _denoiser_forward_impl(x_bhwc, params, num_heads, True)
    except Exception:
        # Fallback for JAX versions where pl.Buffered(1) single-buffering on a BlockSpec
        # is not supported: use default (double-buffered) weight specs.
        return _denoiser_forward_impl(x_bhwc, params, num_heads, False)


# ----------------------------------------------------------------------------- reference
def denoiser_reference(x_bhwc, params, num_heads):
    """Pure-JAX f32 reference mirroring timm Block + LayerNorm."""
    B, H, W, C = x_bhwc.shape
    N = H * W
    D = C // num_heads
    x = x_bhwc.reshape(B, N, C).astype(jnp.float32)

    def ln(v, g, b):
        mu = v.mean(-1, keepdims=True)
        var = ((v - mu) ** 2).mean(-1, keepdims=True)
        return (v - mu) / jnp.sqrt(var + LN_EPS) * g[0] + b[0]

    h = ln(x, params["ln1_g"], params["ln1_b"])
    qkv = h @ params["w_qkv"] + params["b_qkv"][0]
    q, k, v = jnp.split(qkv, 3, axis=-1)
    q = q.reshape(B, N, num_heads, D).transpose(0, 2, 1, 3) * (D ** -0.5)
    k = k.reshape(B, N, num_heads, D).transpose(0, 2, 1, 3)
    v = v.reshape(B, N, num_heads, D).transpose(0, 2, 1, 3)
    s = jnp.einsum("bhnd,bhmd->bhnm", q, k)
    p = jax.nn.softmax(s, axis=-1)
    a = jnp.einsum("bhnm,bhmd->bhnd", p, v).transpose(0, 2, 1, 3).reshape(B, N, C)
    x = x + (a @ params["w_proj"] + params["b_proj"][0])

    h = ln(x, params["ln2_g"], params["ln2_b"])
    h = h @ params["w_fc1"] + params["b_fc1"][0]
    h = 0.5 * h * (1.0 + lax.erf(h * 0.7071067811865476))
    h = h @ params["w_fc2"] + params["b_fc2"][0]
    x = x + h

    x = ln(x, params["ln3_g"], params["ln3_b"])
    return x.reshape(B, H, W, C).astype(x_bhwc.dtype)


if __name__ == "__main__":
    # feature_dim must be a multiple of 64 (num_heads = feature_dim // 64).
    # Use C=128 -> 2 heads of head_dim 64; small 4x4 noise map.
    B, H, W, C = 2, 4, 4, 128
    num_heads = C // 64

    key = jax.random.PRNGKey(0)
    k_x, k_p = jax.random.split(key)
    x = jax.random.normal(k_x, (B, H, W, C), jnp.float32)
    params = init_denoiser_params(k_p, C)

    out = denoiser_forward(x, params, num_heads)
    out = jax.block_until_ready(out)

    ref = denoiser_reference(x, params, num_heads)
    assert out.shape == (B, H, W, C)
    # bf16 MXU operands (f32 accumulation) -> loosened tolerance vs the f32 reference.
    assert jnp.allclose(out, ref, atol=2e-2, rtol=2e-2), \
        f"mismatch vs reference, max abs err {jnp.max(jnp.abs(out - ref))}"

    # TODO(synk): enable_pe=True path needs resample_abs_pos_embed (bicubic interp of
    # pos_embed), which has no clean in-kernel equivalent; omitted (enable_pe defaults False).
    print("KERNEL_OK")
</pallas_src>

<mosaic_0001>
module attributes {stable_mosaic.version = 11 : i64} {
  func.func @_qkv_kernel(%arg0: i32, %arg1: memref<32x128xf32, #tpu.memory_space<vmem>>, %arg2: memref<1x128xf32, #tpu.memory_space<vmem>>, %arg3: memref<1x128xf32, #tpu.memory_space<vmem>>, %arg4: memref<128x384xbf16, #tpu.memory_space<vmem>>, %arg5: memref<1x384xf32, #tpu.memory_space<vmem>>, %arg6: memref<32x384xbf16, #tpu.memory_space<vmem>>) attributes {dimension_semantics = [#tpu.dimension_semantics<parallel>], iteration_bounds = array<i64: 1>, scalar_prefetch = 0 : i64, scratch_operands = 0 : i64, tpu.core_type = #tpu.core_type<tc>, window_params = [{transform_indices = @transform_0, window_bounds = array<i64: 32, 128>}, {pipeline_mode = #tpu.pipeline_mode<synchronous>, transform_indices = @transform_1, window_bounds = array<i64: 1, 128>}, {pipeline_mode = #tpu.pipeline_mode<synchronous>, transform_indices = @transform_2, window_bounds = array<i64: 1, 128>}, {pipeline_mode = #tpu.pipeline_mode<synchronous>, transform_indices = @transform_3, window_bounds = array<i64: 128, 384>}, {pipeline_mode = #tpu.pipeline_mode<synchronous>, transform_indices = @transform_4, window_bounds = array<i64: 1, 384>}, {transform_indices = @transform_5, window_bounds = array<i64: 32, 384>}]} {
    %c0 = arith.constant 0 : index
    %c0_0 = arith.constant 0 : index
    %0 = vector.load %arg1[%c0, %c0_0] : memref<32x128xf32, #tpu.memory_space<vmem>>, vector<32x128xf32>
    %c0_1 = arith.constant 0 : index
    %c0_2 = arith.constant 0 : index
    %1 = vector.load %arg2[%c0_1, %c0_2] : memref<1x128xf32, #tpu.memory_space<vmem>>, vector<1x128xf32>
    %2 = vector.shape_cast %1 : vector<1x128xf32> to vector<128xf32>
    %c0_3 = arith.constant 0 : index
    %c0_4 = arith.constant 0 : index
    %3 = vector.load %arg3[%c0_3, %c0_4] : memref<1x128xf32, #tpu.memory_space<vmem>>, vector<1x128xf32>
    %4 = vector.shape_cast %3 : vector<1x128xf32> to vector<128xf32>
    %cst = arith.constant dense<0.000000e+00> : vector<32xf32>
    %5 = vector.multi_reduction <add>, %0, %cst [1] : vector<32x128xf32> to vector<32xf32>
    %6 = vector.shape_cast %5 : vector<32xf32> to vector<32x1xf32>
    %cst_5 = arith.constant 1.280000e+02 : f32
    %7 = vector.broadcast %cst_5 : f32 to vector<32x1xf32>
    %8 = arith.divf %6, %7 : vector<32x1xf32>
    %9 = vector.broadcast %8 : vector<32x1xf32> to vector<32x128xf32>
    %10 = arith.subf %0, %9 : vector<32x128xf32>
    %11 = arith.mulf %10, %10 : vector<32x128xf32>
    %cst_6 = arith.constant dense<0.000000e+00> : vector<32xf32>
    %12 = vector.multi_reduction <add>, %11, %cst_6 [1] : vector<32x128xf32> to vector<32xf32>
    %13 = vector.shape_cast %12 : vector<32xf32> to vector<32x1xf32>
    %cst_7 = arith.constant 1.280000e+02 : f32
    %14 = vector.broadcast %cst_7 : f32 to vector<32x1xf32>
    %15 = arith.divf %13, %14 : vector<32x1xf32>
    %16 = vector.broadcast %8 : vector<32x1xf32> to vector<32x128xf32>
    %17 = arith.subf %0, %16 : vector<32x128xf32>
    %cst_8 = arith.constant 9.99999997E-7 : f32
    %18 = vector.broadcast %cst_8 : f32 to vector<32x1xf32>
    %19 = arith.addf %15, %18 : vector<32x1xf32>
    %20 = math.rsqrt %19 : vector<32x1xf32>
    %21 = vector.broadcast %20 : vector<32x1xf32> to vector<32x128xf32>
    %22 = arith.mulf %17, %21 : vector<32x128xf32>
    %23 = vector.shape_cast %2 : vector<128xf32> to vector<1x128xf32>
    %24 = vector.broadcast %23 : vector<1x128xf32> to vector<32x128xf32>
    %25 = arith.mulf %22, %24 : vector<32x128xf32>
    %26 = vector.shape_cast %4 : vector<128xf32> to vector<1x128xf32>
    %27 = vector.broadcast %26 : vector<1x128xf32> to vector<32x128xf32>
    %28 = arith.addf %25, %27 : vector<32x128xf32>
    %29 = arith.truncf %28 : vector<32x128xf32> to vector<32x128xbf16>
    %c0_9 = arith.constant 0 : index
    %c0_10 = arith.constant 0 : index
    %30 = vector.load %arg4[%c0_9, %c0_10] : memref<128x384xbf16, #tpu.memory_space<vmem>>, vector<128x384xbf16>
    %cst_11 = arith.constant dense<0.000000e+00> : vector<32x384xf32>
    %31 = tpu.matmul %29, %30, %cst_11 {dimension_numbers = #tpu.dot_dimension_numbers<[1], [0], [0], [1], [0, 0, 1, 1], [], []>} : vector<32x128xbf16>, vector<128x384xbf16>, vector<32x384xf32> -> vector<32x384xf32>
    %c0_12 = arith.constant 0 : index
    %c0_13 = arith.constant 0 : index
    %32 = vector.load %arg5[%c0_12, %c0_13] : memref<1x384xf32, #tpu.memory_space<vmem>>, vector<1x384xf32>
    %33 = vector.shape_cast %32 : vector<1x384xf32> to vector<384xf32>
    %34 = vector.shape_cast %33 : vector<384xf32> to vector<1x384xf32>
    %35 = vector.broadcast %34 : vector<1x384xf32> to vector<32x384xf32>
    %36 = arith.addf %31, %35 : vector<32x384xf32>
    %37 = arith.truncf %36 : vector<32x384xf32> to vector<32x384xbf16>
    %c0_14 = arith.constant 0 : index
    %c0_15 = arith.constant 0 : index
    %38 = vector.load %arg6[%c0_14, %c0_15] : memref<32x384xbf16, #tpu.memory_space<vmem>>, vector<32x384xbf16>
    tpu.vector_store %arg6[%c0_14, %c0_15], %37 {strides = array<i32>} : memref<32x384xbf16, #tpu.memory_space<vmem>>, vector<32x384xbf16>,
    return
  }
  func.func @transform_0(%arg0: i32) -> (i32, i32) {
    %c0_i32 = arith.constant 0 : i32
    %c0_i32_0 = arith.constant 0 : i32
    return %arg0, %c0_i32 : i32, i32
  }
  func.func @transform_1(%arg0: i32) -> (i32, i32) {
    %c0_i32 = arith.constant 0 : i32
    %c0_i32_0 = arith.constant 0 : i32
    %c0_i32_1 = arith.constant 0 : i32
    return %c0_i32, %c0_i32_0 : i32, i32
  }
  func.func @transform_2(%arg0: i32) -> (i32, i32) {
    %c0_i32 = arith.constant 0 : i32
    %c0_i32_0 = arith.constant 0 : i32
    %c0_i32_1 = arith.constant 0 : i32
    return %c0_i32, %c0_i32_0 : i32, i32
  }
  func.func @transform_3(%arg0: i32) -> (i32, i32) {
    %c0_i32 = arith.constant 0 : i32
    %c0_i32_0 = arith.constant 0 : i32
    %c0_i32_1 = arith.constant 0 : i32
    return %c0_i32, %c0_i32_0 : i32, i32
  }
  func.func @transform_4(%arg0: i32) -> (i32, i32) {
    %c0_i32 = arith.constant 0 : i32
    %c0_i32_0 = arith.constant 0 : i32
    %c0_i32_1 = arith.constant 0 : i32
    return %c0_i32, %c0_i32_0 : i32, i32
  }
  func.func @transform_5(%arg0: i32) -> (i32, i32) {
    %c0_i32 = arith.constant 0 : i32
    %c0_i32_0 = arith.constant 0 : i32
    return %arg0, %c0_i32 : i32, i32
  }
}

module attributes {stable_mosaic.version = 11 : i64} {
  func.func @_attn_mlp_kernel(%arg0: i32, %arg1: i32, %arg2: i32, %arg3: memref<1x16x128xf32, #tpu.memory_space<vmem>>, %arg4: memref<1x2x16x64xbf16, #tpu.memory_space<vmem>>, %arg5: memref<1x2x16x64xbf16, #tpu.memory_space<vmem>>, %arg6: memref<1x2x16x64xbf16, #tpu.memory_space<vmem>>, %arg7: memref<2x64x128xbf16, #tpu.memory_space<vmem>>, %arg8: memref<1x128xf32, #tpu.memory_space<vmem>>, %arg9: memref<1x128xf32, #tpu.memory_space<vmem>>, %arg10: memref<1x128xf32, #tpu.memory_space<vmem>>, %arg11: memref<128x512xbf16, #tpu.memory_space<vmem>>, %arg12: memref<1x512xf32, #tpu.memory_space<vmem>>, %arg13: memref<512x128xbf16, #tpu.memory_space<vmem>>, %arg14: memref<1x128xf32, #tpu.memory_space<vmem>>, %arg15: memref<1x128xf32, #tpu.memory_space<vmem>>, %arg16: memref<1x128xf32, #tpu.memory_space<vmem>>, %arg17: memref<1x16x128xf32, #tpu.memory_space<vmem>>, %arg18: memref<2x16x1xf32, #tpu.memory_space<vmem>>, %arg19: memref<2x16x1xf32, #tpu.memory_space<vmem>>, %arg20: memref<2x16x64xf32, #tpu.memory_space<vmem>>) attributes {dimension_semantics = [#tpu.dimension_semantics<parallel>, #tpu.dimension_semantics<parallel>, #tpu.dimension_semantics<arbitrary>], iteration_bounds = array<i64: 2, 1, 1>, scalar_prefetch = 0 : i64, scratch_operands = 3 : i64, tpu.core_type = #tpu.core_type<tc>, window_params = [{transform_indices = @transform_0, window_bounds = array<i64: 1, 16, 128>}, {transform_indices = @transform_1, window_bounds = array<i64: 1, 2, 16, 64>}, {transform_indices = @transform_2, window_bounds = array<i64: 1, 2, 16, 64>}, {transform_indices = @transform_3, window_bounds = array<i64: 1, 2, 16, 64>}, {pipeline_mode = #tpu.pipeline_mode<synchronous>, transform_indices = @transform_4, window_bounds = array<i64: 2, 64, 128>}, {pipeline_mode = #tpu.pipeline_mode<synchronous>, transform_indices = @transform_5, window_bounds = array<i64: 1, 128>}, {pipeline_mode = #tpu.pipeline_mode<synchronous>, transform_indices = @transform_6, window_bounds = array<i64: 1, 128>}, {pipeline_mode = #tpu.pipeline_mode<synchronous>, transform_indices = @transform_7, window_bounds = array<i64: 1, 128>}, {pipeline_mode = #tpu.pipeline_mode<synchronous>, transform_indices = @transform_8, window_bounds = array<i64: 128, 512>}, {pipeline_mode = #tpu.pipeline_mode<synchronous>, transform_indices = @transform_9, window_bounds = array<i64: 1, 512>}, {pipeline_mode = #tpu.pipeline_mode<synchronous>, transform_indices = @transform_10, window_bounds = array<i64: 512, 128>}, {pipeline_mode = #tpu.pipeline_mode<synchronous>, transform_indices = @transform_11, window_bounds = array<i64: 1, 128>}, {pipeline_mode = #tpu.pipeline_mode<synchronous>, transform_indices = @transform_12, window_bounds = array<i64: 1, 128>}, {pipeline_mode = #tpu.pipeline_mode<synchronous>, transform_indices = @transform_13, window_bounds = array<i64: 1, 128>}, {transform_indices = @transform_14, window_bounds = array<i64: 1, 16, 128>}]} {
    %c0_i32 = arith.constant 0 : i32
    %0 = arith.cmpi eq, %arg2, %c0_i32 : i32
    %1 = arith.extui %0 : i1 to i32
    %c0_i32_0 = arith.constant 0 : i32
    %2 = arith.cmpi ne, %1, %c0_i32_0 : i32
    scf.if %2 {
      %cst_35 = arith.constant 0xFF800000 : f32
      %36 = vector.broadcast %cst_35 : f32 to vector<2x16x1xf32>
      %c0_36 = arith.constant 0 : index
      %c0_37 = arith.constant 0 : index
      %c0_38 = arith.constant 0 : index
      %37 = vector.load %arg18[%c0_36, %c0_37, %c0_38] : memref<2x16x1xf32, #tpu.memory_space<vmem>>, vector<2x16x1xf32>
      tpu.vector_store %arg18[%c0_36, %c0_37, %c0_38], %36 {strides = array<i32>} : memref<2x16x1xf32, #tpu.memory_space<vmem>>, vector<2x16x1xf32>,
      %cst_39 = arith.constant 0.000000e+00 : f32
      %38 = vector.broadcast %cst_39 : f32 to vector<2x16x1xf32>
      %c0_40 = arith.constant 0 : index
      %c0_41 = arith.constant 0 : index
      %c0_42 = arith.constant 0 : index
      %39 = vector.load %arg19[%c0_40, %c0_41, %c0_42] : memref<2x16x1xf32, #tpu.memory_space<vmem>>, vector<2x16x1xf32>
      tpu.vector_store %arg19[%c0_40, %c0_41, %c0_42], %38 {strides = array<i32>} : memref<2x16x1xf32, #tpu.memory_space<vmem>>, vector<2x16x1xf32>,
      %cst_43 = arith.constant 0.000000e+00 : f32
      %40 = vector.broadcast %cst_43 : f32 to vector<2x16x64xf32>
      %c0_44 = arith.constant 0 : index
      %c0_45 = arith.constant 0 : index
      %c0_46 = arith.constant 0 : index
      %41 = vector.load %arg20[%c0_44, %c0_45, %c0_46] : memref<2x16x64xf32, #tpu.memory_space<vmem>>, vector<2x16x64xf32>
      tpu.vector_store %arg20[%c0_44, %c0_45, %c0_46], %40 {strides = array<i32>} : memref<2x16x64xf32, #tpu.memory_space<vmem>>, vector<2x16x64xf32>,
    } else {
    }
    %c0 = arith.constant 0 : index
    %c0_1 = arith.constant 0 : index
    %c0_2 = arith.constant 0 : index
    %c0_3 = arith.constant 0 : index
    %3 = vector.load %arg4[%c0, %c0_1, %c0_2, %c0_3] : memref<1x2x16x64xbf16, #tpu.memory_space<vmem>>, vector<1x2x16x64xbf16>
    %4 = vector.shape_cast %3 : vector<1x2x16x64xbf16> to vector<2x16x64xbf16>
    %c0_4 = arith.constant 0 : index
    %c0_5 = arith.constant 0 : index
    %c0_6 = arith.constant 0 : index
    %c0_7 = arith.constant 0 : index
    %5 = vector.load %arg5[%c0_4, %c0_5, %c0_6, %c0_7] : memref<1x2x16x64xbf16, #tpu.memory_space<vmem>>, vector<1x2x16x64xbf16>
    %6 = vector.shape_cast %5 : vector<1x2x16x64xbf16> to vector<2x16x64xbf16>
    %c0_8 = arith.constant 0 : index
    %c0_9 = arith.constant 0 : index
    %c0_10 = arith.constant 0 : index
    %c0_11 = arith.constant 0 : index
    %7 = vector.load %arg6[%c0_8, %c0_9, %c0_10, %c0_11] : memref<1x2x16x64xbf16, #tpu.memory_space<vmem>>, vector<1x2x16x64xbf16>
    %8 = vector.shape_cast %7 : vector<1x2x16x64xbf16> to vector<2x16x64xbf16>
    %cst = arith.constant dense<0.000000e+00> : vector<2x16x16xf32>
    %9 = tpu.matmul %4, %6, %cst {dimension_numbers = #tpu.dot_dimension_numbers<[2], [2], [1], [1], [0, 0, 0, 1, 1, 1], [0], [0]>} : vector<2x16x64xbf16>, vector<2x16x64xbf16>, vector<2x16x16xf32> -> vector<2x16x16xf32>
    %c0_12 = arith.constant 0 : index
    %c0_13 = arith.constant 0 : index
    %c0_14 = arith.constant 0 : index
    %10 = vector.load %arg18[%c0_12, %c0_13, %c0_14] : memref<2x16x1xf32, #tpu.memory_space<vmem>>, vector<2x16x1xf32>
    %cst_15 = arith.constant dense<0xFF800000> : vector<2x16xf32>
    %11 = vector.multi_reduction <maximumf>, %9, %cst_15 [2] : vector<2x16x16xf32> to vector<2x16xf32>
    %12 = vector.shape_cast %11 : vector<2x16xf32> to vector<2x16x1xf32>
    %13 = arith.maximumf %10, %12 : vector<2x16x1xf32>
    %14 = arith.subf %10, %13 : vector<2x16x1xf32>
    %15 = math.exp %14 : vector<2x16x1xf32>
    %16 = vector.broadcast %13 : vector<2x16x1xf32> to vector<2x16x16xf32>
    %17 = arith.subf %9, %16 : vector<2x16x16xf32>
    %18 = math.exp %17 : vector<2x16x16xf32>
    %c0_16 = arith.constant 0 : index
    %c0_17 = arith.constant 0 : index
    %c0_18 = arith.constant 0 : index
    %19 = vector.load %arg19[%c0_16, %c0_17, %c0_18] : memref<2x16x1xf32, #tpu.memory_space<vmem>>, vector<2x16x1xf32>
    %20 = arith.mulf %15, %19 : vector<2x16x1xf32>
    %cst_19 = arith.constant dense<0.000000e+00> : vector<2x16xf32>
    %21 = vector.multi_reduction <add>, %18, %cst_19 [2] : vector<2x16x16xf32> to vector<2x16xf32>
    %22 = vector.shape_cast %21 : vector<2x16xf32> to vector<2x16x1xf32>
    %23 = arith.addf %20, %22 : vector<2x16x1xf32>
    %c0_20 = arith.constant 0 : index
    %c0_21 = arith.constant 0 : index
    %c0_22 = arith.constant 0 : index
    %24 = vector.load %arg19[%c0_20, %c0_21, %c0_22] : memref<2x16x1xf32, #tpu.memory_space<vmem>>, vector<2x16x1xf32>
    tpu.vector_store %arg19[%c0_20, %c0_21, %c0_22], %23 {strides = array<i32>} : memref<2x16x1xf32, #tpu.memory_space<vmem>>, vector<2x16x1xf32>,
    %25 = arith.truncf %18 : vector<2x16x16xf32> to vector<2x16x16xbf16>
    %cst_23 = arith.constant dense<0.000000e+00> : vector<2x16x64xf32>
    %26 = tpu.matmul %25, %8, %cst_23 {dimension_numbers = #tpu.dot_dimension_numbers<[2], [1], [1], [2], [0, 0, 0, 1, 1, 2], [0], [0]>} : vector<2x16x16xbf16>, vector<2x16x64xbf16>, vector<2x16x64xf32> -> vector<2x16x64xf32>
    %c0_24 = arith.constant 0 : index
    %c0_25 = arith.constant 0 : index
    %c0_26 = arith.constant 0 : index
    %27 = vector.load %arg20[%c0_24, %c0_25, %c0_26] : memref<2x16x64xf32, #tpu.memory_space<vmem>>, vector<2x16x64xf32>
    %28 = vector.broadcast %15 : vector<2x16x1xf32> to vector<2x16x64xf32>
    %29 = arith.mulf %28, %27 : vector<2x16x64xf32>
    %30 = arith.addf %29, %26 : vector<2x16x64xf32>
    %c0_27 = arith.constant 0 : index
    %c0_28 = arith.constant 0 : index
    %c0_29 = arith.constant 0 : index
    %31 = vector.load %arg20[%c0_27, %c0_28, %c0_29] : memref<2x16x64xf32, #tpu.memory_space<vmem>>, vector<2x16x64xf32>
    tpu.vector_store %arg20[%c0_27, %c0_28, %c0_29], %30 {strides = array<i32>} : memref<2x16x64xf32, #tpu.memory_space<vmem>>, vector<2x16x64xf32>,
    %c0_30 = arith.constant 0 : index
    %c0_31 = arith.constant 0 : index
    %c0_32 = arith.constant 0 : index
    %32 = vector.load %arg18[%c0_30, %c0_31, %c0_32] : memref<2x16x1xf32, #tpu.memory_space<vmem>>, vector<2x16x1xf32>
    tpu.vector_store %arg18[%c0_30, %c0_31, %c0_32], %13 {strides = array<i32>} : memref<2x16x1xf32, #tpu.memory_space<vmem>>, vector<2x16x1xf32>,
    %c0_i32_33 = arith.constant 0 : i32
    %33 = arith.cmpi eq, %arg2, %c0_i32_33 : i32
    %34 = arith.extui %33 : i1 to i32
    %c0_i32_34 = arith.constant 0 : i32
    %35 = arith.cmpi ne, %34, %c0_i32_34 : i32
    scf.if %35 {
      %c0_35 = arith.constant 0 : index
      %c0_36 = arith.constant 0 : index
      %c0_37 = arith.constant 0 : index
      %36 = vector.load %arg3[%c0_35, %c0_36, %c0_37] : memref<1x16x128xf32, #tpu.memory_space<vmem>>, vector<1x16x128xf32>
      %37 = vector.shape_cast %36 : vector<1x16x128xf32> to vector<16x128xf32>
      %c0_38 = arith.constant 0 : index
      %c0_39 = arith.constant 0 : index
      %c0_40 = arith.constant 0 : index
      %38 = vector.load %arg19[%c0_38, %c0_39, %c0_40] : memref<2x16x1xf32, #tpu.memory_space<vmem>>, vector<2x16x1xf32>
      %39 = tpu.reciprocal %38 {approx = true} : vector<2x16x1xf32> -> vector<2x16x1xf32>
      %c0_41 = arith.constant 0 : index
      %c0_42 = arith.constant 0 : index
      %c0_43 = arith.constant 0 : index
      %40 = vector.load %arg20[%c0_41, %c0_42, %c0_43] : memref<2x16x64xf32, #tpu.memory_space<vmem>>, vector<2x16x64xf32>
      %41 = vector.broadcast %39 : vector<2x16x1xf32> to vector<2x16x64xf32>
      %42 = arith.mulf %40, %41 : vector<2x16x64xf32>
      %43 = arith.truncf %42 : vector<2x16x64xf32> to vector<2x16x64xbf16>
      %c0_44 = arith.constant 0 : index
      %c0_45 = arith.constant 0 : index
      %c0_46 = arith.constant 0 : index
      %44 = vector.load %arg7[%c0_44, %c0_45, %c0_46] : memref<2x64x128xbf16, #tpu.memory_space<vmem>>, vector<2x64x128xbf16>
      %cst_47 = arith.constant dense<0.000000e+00> : vector<2x16x128xf32>
      %45 = tpu.matmul %43, %44, %cst_47 {dimension_numbers = #tpu.dot_dimension_numbers<[2], [1], [1], [2], [0, 0, 0, 1, 1, 2], [0], [0]>} : vector<2x16x64xbf16>, vector<2x64x128xbf16>, vector<2x16x128xf32> -> vector<2x16x128xf32>
      %cst_48 = arith.constant dense<0.000000e+00> : vector<16x128xf32>
      %46 = vector.multi_reduction <add>, %45, %cst_48 [0] : vector<2x16x128xf32> to vector<16x128xf32>
      %47 = arith.addf %37, %46 : vector<16x128xf32>
      %c0_49 = arith.constant 0 : index
      %c0_50 = arith.constant 0 : index
      %48 = vector.load %arg8[%c0_49, %c0_50] : memref<1x128xf32, #tpu.memory_space<vmem>>, vector<1x128xf32>
      %49 = vector.shape_cast %48 : vector<1x128xf32> to vector<128xf32>
      %50 = vector.shape_cast %49 : vector<128xf32> to vector<1x128xf32>
      %51 = vector.broadcast %50 : vector<1x128xf32> to vector<16x128xf32>
      %52 = arith.addf %47, %51 : vector<16x128xf32>
      %c0_51 = arith.constant 0 : index
      %c0_52 = arith.constant 0 : index
      %53 = vector.load %arg9[%c0_51, %c0_52] : memref<1x128xf32, #tpu.memory_space<vmem>>, vector<1x128xf32>
      %54 = vector.shape_cast %53 : vector<1x128xf32> to vector<128xf32>
      %c0_53 = arith.constant 0 : index
      %c0_54 = arith.constant 0 : index
      %55 = vector.load %arg10[%c0_53, %c0_54] : memref<1x128xf32, #tpu.memory_space<vmem>>, vector<1x128xf32>
      %56 = vector.shape_cast %55 : vector<1x128xf32> to vector<128xf32>
      %cst_55 = arith.constant dense<0.000000e+00> : vector<16xf32>
      %57 = vector.multi_reduction <add>, %52, %cst_55 [1] : vector<16x128xf32> to vector<16xf32>
      %58 = vector.shape_cast %57 : vector<16xf32> to vector<16x1xf32>
      %cst_56 = arith.constant 1.280000e+02 : f32
      %59 = vector.broadcast %cst_56 : f32 to vector<16x1xf32>
      %60 = arith.divf %58, %59 : vector<16x1xf32>
      %61 = vector.broadcast %60 : vector<16x1xf32> to vector<16x128xf32>
      %62 = arith.subf %52, %61 : vector<16x128xf32>
      %63 = arith.mulf %62, %62 : vector<16x128xf32>
      %cst_57 = arith.constant dense<0.000000e+00> : vector<16xf32>
      %64 = vector.multi_reduction <add>, %63, %cst_57 [1] : vector<16x128xf32> to vector<16xf32>
      %65 = vector.shape_cast %64 : vector<16xf32> to vector<16x1xf32>
      %cst_58 = arith.constant 1.280000e+02 : f32
      %66 = vector.broadcast %cst_58 : f32 to vector<16x1xf32>
      %67 = arith.divf %65, %66 : vector<16x1xf32>
      %68 = vector.broadcast %60 : vector<16x1xf32> to vector<16x128xf32>
      %69 = arith.subf %52, %68 : vector<16x128xf32>
      %cst_59 = arith.constant 9.99999997E-7 : f32
      %70 = vector.broadcast %cst_59 : f32 to vector<16x1xf32>
      %71 = arith.addf %67, %70 : vector<16x1xf32>
      %72 = math.rsqrt %71 : vector<16x1xf32>
      %73 = vector.broadcast %72 : vector<16x1xf32> to vector<16x128xf32>
      %74 = arith.mulf %69, %73 : vector<16x128xf32>
      %75 = vector.shape_cast %54 : vector<128xf32> to vector<1x128xf32>
      %76 = vector.broadcast %75 : vector<1x128xf32> to vector<16x128xf32>
      %77 = arith.mulf %74, %76 : vector<16x128xf32>
      %78 = vector.shape_cast %56 : vector<128xf32> to vector<1x128xf32>
      %79 = vector.broadcast %78 : vector<1x128xf32> to vector<16x128xf32>
      %80 = arith.addf %77, %79 : vector<16x128xf32>
      %81 = arith.truncf %80 : vector<16x128xf32> to vector<16x128xbf16>
      %c0_60 = arith.constant 0 : index
      %c0_61 = arith.constant 0 : index
      %82 = vector.load %arg11[%c0_60, %c0_61] : memref<128x512xbf16, #tpu.memory_space<vmem>>, vector<128x512xbf16>
      %cst_62 = arith.constant dense<0.000000e+00> : vector<16x512xf32>
      %83 = tpu.matmul %81, %82, %cst_62 {dimension_numbers = #tpu.dot_dimension_numbers<[1], [0], [0], [1], [0, 0, 1, 1], [], []>} : vector<16x128xbf16>, vector<128x512xbf16>, vector<16x512xf32> -> vector<16x512xf32>
      %c0_63 = arith.constant 0 : index
      %c0_64 = arith.constant 0 : index
      %84 = vector.load %arg12[%c0_63, %c0_64] : memref<1x512xf32, #tpu.memory_space<vmem>>, vector<1x512xf32>
      %85 = vector.shape_cast %84 : vector<1x512xf32> to vector<512xf32>
      %86 = vector.shape_cast %85 : vector<512xf32> to vector<1x512xf32>
      %87 = vector.broadcast %86 : vector<1x512xf32> to vector<16x512xf32>
      %88 = arith.addf %83, %87 : vector<16x512xf32>
      %cst_65 = arith.constant 5.000000e-01 : f32
      %89 = vector.broadcast %cst_65 : f32 to vector<16x512xf32>
      %90 = arith.mulf %89, %88 : vector<16x512xf32>
      %cst_66 = arith.constant 0.707106769 : f32
      %91 = vector.broadcast %cst_66 : f32 to vector<16x512xf32>
      %92 = arith.mulf %88, %91 : vector<16x512xf32>
      %93 = math.erf %92 : vector<16x512xf32>
      %cst_67 = arith.constant 1.000000e+00 : f32
      %94 = vector.broadcast %cst_67 : f32 to vector<16x512xf32>
      %95 = arith.addf %94, %93 : vector<16x512xf32>
      %96 = arith.mulf %90, %95 : vector<16x512xf32>
      %97 = arith.truncf %96 : vector<16x512xf32> to vector<16x512xbf16>
      %c0_68 = arith.constant 0 : index
      %c0_69 = arith.constant 0 : index
      %98 = vector.load %arg13[%c0_68, %c0_69] : memref<512x128xbf16, #tpu.memory_space<vmem>>, vector<512x128xbf16>
      %cst_70 = arith.constant dense<0.000000e+00> : vector<16x128xf32>
      %99 = tpu.matmul %97, %98, %cst_70 {dimension_numbers = #tpu.dot_dimension_numbers<[1], [0], [0], [1], [0, 0, 1, 1], [], []>} : vector<16x512xbf16>, vector<512x128xbf16>, vector<16x128xf32> -> vector<16x128xf32>
      %c0_71 = arith.constant 0 : index
      %c0_72 = arith.constant 0 : index
      %100 = vector.load %arg14[%c0_71, %c0_72] : memref<1x128xf32, #tpu.memory_space<vmem>>, vector<1x128xf32>
      %101 = vector.shape_cast %100 : vector<1x128xf32> to vector<128xf32>
      %102 = vector.shape_cast %101 : vector<128xf32> to vector<1x128xf32>
      %103 = vector.broadcast %102 : vector<1x128xf32> to vector<16x128xf32>
      %104 = arith.addf %99, %103 : vector<16x128xf32>
      %105 = arith.addf %52, %104 : vector<16x128xf32>
      %c0_73 = arith.constant 0 : index
      %c0_74 = arith.constant 0 : index
      %106 = vector.load %arg15[%c0_73, %c0_74] : memref<1x128xf32, #tpu.memory_space<vmem>>, vector<1x128xf32>
      %107 = vector.shape_cast %106 : vector<1x128xf32> to vector<128xf32>
      %c0_75 = arith.constant 0 : index
      %c0_76 = arith.constant 0 : index
      %108 = vector.load %arg16[%c0_75, %c0_76] : memref<1x128xf32, #tpu.memory_space<vmem>>, vector<1x128xf32>
      %109 = vector.shape_cast %108 : vector<1x128xf32> to vector<128xf32>
      %cst_77 = arith.constant dense<0.000000e+00> : vector<16xf32>
      %110 = vector.multi_reduction <add>, %105, %cst_77 [1] : vector<16x128xf32> to vector<16xf32>
      %111 = vector.shape_cast %110 : vector<16xf32> to vector<16x1xf32>
      %cst_78 = arith.constant 1.280000e+02 : f32
      %112 = vector.broadcast %cst_78 : f32 to vector<16x1xf32>
      %113 = arith.divf %111, %112 : vector<16x1xf32>
      %114 = vector.broadcast %113 : vector<16x1xf32> to vector<16x128xf32>
      %115 = arith.subf %105, %114 : vector<16x128xf32>
      %116 = arith.mulf %115, %115 : vector<16x128xf32>
      %cst_79 = arith.constant dense<0.000000e+00> : vector<16xf32>
      %117 = vector.multi_reduction <add>, %116, %cst_79 [1] : vector<16x128xf32> to vector<16xf32>
      %118 = vector.shape_cast %117 : vector<16xf32> to vector<16x1xf32>
      %cst_80 = arith.constant 1.280000e+02 : f32
      %119 = vector.broadcast %cst_80 : f32 to vector<16x1xf32>
      %120 = arith.divf %118, %119 : vector<16x1xf32>
      %121 = vector.broadcast %113 : vector<16x1xf32> to vector<16x128xf32>
      %122 = arith.subf %105, %121 : vector<16x128xf32>
      %cst_81 = arith.constant 9.99999997E-7 : f32
      %123 = vector.broadcast %cst_81 : f32 to vector<16x1xf32>
      %124 = arith.addf %120, %123 : vector<16x1xf32>
      %125 = math.rsqrt %124 : vector<16x1xf32>
      %126 = vector.broadcast %125 : vector<16x1xf32> to vector<16x128xf32>
      %127 = arith.mulf %122, %126 : vector<16x128xf32>
      %128 = vector.shape_cast %107 : vector<128xf32> to vector<1x128xf32>
      %129 = vector.broadcast %128 : vector<1x128xf32> to vector<16x128xf32>
      %130 = arith.mulf %127, %129 : vector<16x128xf32>
      %131 = vector.shape_cast %109 : vector<128xf32> to vector<1x128xf32>
      %132 = vector.broadcast %131 : vector<1x128xf32> to vector<16x128xf32>
      %133 = arith.addf %130, %132 : vector<16x128xf32>
      %c0_82 = arith.constant 0 : index
      %c0_83 = arith.constant 0 : index
      %c0_84 = arith.constant 0 : index
      %134 = vector.load %arg17[%c0_82, %c0_83, %c0_84] : memref<1x16x128xf32, #tpu.memory_space<vmem>>, vector<1x16x128xf32>
      %135 = vector.shape_cast %134 : vector<1x16x128xf32> to vector<16x128xf32>
      %136 = vector.shape_cast %133 : vector<16x128xf32> to vector<1x16x128xf32>
      tpu.vector_store %arg17[%c0_82, %c0_83, %c0_84], %136 {strides = array<i32>} : memref<1x16x128xf32, #tpu.memory_space<vmem>>, vector<1x16x128xf32>,
    } else {
    }
    return
  }
  func.func @transform_0(%arg0: i32, %arg1: i32, %arg2: i32) -> (i32, i32, i32) {
    %c0_i32 = arith.constant 0 : i32
    %c0_i32_0 = arith.constant 0 : i32
    return %arg0, %arg1, %c0_i32 : i32, i32, i32
  }
  func.func @transform_1(%arg0: i32, %arg1: i32, %arg2: i32) -> (i32, i32, i32, i32) {
    %c0_i32 = arith.constant 0 : i32
    %c0_i32_0 = arith.constant 0 : i32
    %c0_i32_1 = arith.constant 0 : i32
    return %arg0, %c0_i32, %arg1, %c0_i32_0 : i32, i32, i32, i32
  }
  func.func @transform_2(%arg0: i32, %arg1: i32, %arg2: i32) -> (i32, i32, i32, i32) {
    %c0_i32 = arith.constant 0 : i32
    %c0_i32_0 = arith.constant 0 : i32
    %c0_i32_1 = arith.constant 0 : i32
    return %arg0, %c0_i32, %arg2, %c0_i32_0 : i32, i32, i32, i32
  }
  func.func @transform_3(%arg0: i32, %arg1: i32, %arg2: i32) -> (i32, i32, i32, i32) {
    %c0_i32 = arith.constant 0 : i32
    %c0_i32_0 = arith.constant 0 : i32
    %c0_i32_1 = arith.constant 0 : i32
    return %arg0, %c0_i32, %arg2, %c0_i32_0 : i32, i32, i32, i32
  }
  func.func @transform_4(%arg0: i32, %arg1: i32, %arg2: i32) -> (i32, i32, i32) {
    %c0_i32 = arith.constant 0 : i32
    %c0_i32_0 = arith.constant 0 : i32
    %c0_i32_1 = arith.constant 0 : i32
    %c0_i32_2 = arith.constant 0 : i32
    return %c0_i32, %c0_i32_0, %c0_i32_1 : i32, i32, i32
  }
  func.func @transform_5(%arg0: i32, %arg1: i32, %arg2: i32) -> (i32, i32) {
    %c0_i32 = arith.constant 0 : i32
    %c0_i32_0 = arith.constant 0 : i32
    %c0_i32_1 = arith.constant 0 : i32
    return %c0_i32, %c0_i32_0 : i32, i32
  }
  func.func @transform_6(%arg0: i32, %arg1: i32, %arg2: i32) -> (i32, i32) {
    %c0_i32 = arith.constant 0 : i32
    %c0_i32_0 = arith.constant 0 : i32
    %c0_i32_1 = arith.constant 0 : i32
    return %c0_i32, %c0_i32_0 : i32, i32
  }
  func.func @transform_7(%arg0: i32, %arg1: i32, %arg2: i32) -> (i32, i32) {
    %c0_i32 = arith.constant 0 : i32
    %c0_i32_0 = arith.constant 0 : i32
    %c0_i32_1 = arith.constant 0 : i32
    return %c0_i32, %c0_i32_0 : i32, i32
  }
  func.func @transform_8(%arg0: i32, %arg1: i32, %arg2: i32) -> (i32, i32) {
    %c0_i32 = arith.constant 0 : i32
    %c0_i32_0 = arith.constant 0 : i32
    %c0_i32_1 = arith.constant 0 : i32
    return %c0_i32, %c0_i32_0 : i32, i32
  }
  func.func @transform_9(%arg0: i32, %arg1: i32, %arg2: i32) -> (i32, i32) {
    %c0_i32 = arith.constant 0 : i32
    %c0_i32_0 = arith.constant 0 : i32
    %c0_i32_1 = arith.constant 0 : i32
    return %c0_i32, %c0_i32_0 : i32, i32
  }
  func.func @transform_10(%arg0: i32, %arg1: i32, %arg2: i32) -> (i32, i32) {
    %c0_i32 = arith.constant 0 : i32
    %c0_i32_0 = arith.constant 0 : i32
    %c0_i32_1 = arith.constant 0 : i32
    return %c0_i32, %c0_i32_0 : i32, i32
  }
  func.func @transform_11(%arg0: i32, %arg1: i32, %arg2: i32) -> (i32, i32) {
    %c0_i32 = arith.constant 0 : i32
    %c0_i32_0 = arith.constant 0 : i32
    %c0_i32_1 = arith.constant 0 : i32
    return %c0_i32, %c0_i32_0 : i32, i32
  }
  func.func @transform_12(%arg0: i32, %arg1: i32, %arg2: i32) -> (i32, i32) {
    %c0_i32 = arith.constant 0 : i32
    %c0_i32_0 = arith.constant 0 : i32
    %c0_i32_1 = arith.constant 0 : i32
    return %c0_i32, %c0_i32_0 : i32, i32
  }
  func.func @transform_13(%arg0: i32, %arg1: i32, %arg2: i32) -> (i32, i32) {
    %c0_i32 = arith.constant 0 : i32
    %c0_i32_0 = arith.constant 0 : i32
    %c0_i32_1 = arith.constant 0 : i32
    return %c0_i32, %c0_i32_0 : i32, i32
  }
  func.func @transform_14(%arg0: i32, %arg1: i32, %arg2: i32) -> (i32, i32, i32) {
    %c0_i32 = arith.constant 0 : i32
    %c0_i32_0 = arith.constant 0 : i32
    return %arg0, %arg1, %c0_i32 : i32, i32, i32
  }
}

module attributes {stable_mosaic.version = 11 : i64} {
  func.func @_qkv_kernel(%arg0: i32, %arg1: memref<32x128xf32, #tpu.memory_space<vmem>>, %arg2: memref<1x128xf32, #tpu.memory_space<vmem>>, %arg3: memref<1x128xf32, #tpu.memory_space<vmem>>, %arg4: memref<128x384xbf16, #tpu.memory_space<vmem>>, %arg5: memref<1x384xf32, #tpu.memory_space<vmem>>, %arg6: memref<32x384xbf16, #tpu.memory_space<vmem>>) attributes {dimension_semantics = [#tpu.dimension_semantics<parallel>], iteration_bounds = array<i64: 1>, scalar_prefetch = 0 : i64, scratch_operands = 0 : i64, tpu.core_type = #tpu.core_type<tc>, window_params = [{transform_indices = @transform_0, window_bounds = array<i64: 32, 128>}, {pipeline_mode = #tpu.pipeline_mode<synchronous>, transform_indices = @transform_1, window_bounds = array<i64: 1, 128>}, {pipeline_mode = #tpu.pipeline_mode<synchronous>, transform_indices = @transform_2, window_bounds = array<i64: 1, 128>}, {pipeline_mode = #tpu.pipeline_mode<synchronous>, transform_indices = @transform_3, window_bounds = array<i64: 128, 384>}, {pipeline_mode = #tpu.pipeline_mode<synchronous>, transform_indices = @transform_4, window_bounds = array<i64: 1, 384>}, {transform_indices = @transform_5, window_bounds = array<i64: 32, 384>}]} {
    %c0 = arith.constant 0 : index
    %c0_0 = arith.constant 0 : index
    %0 = vector.load %arg1[%c0, %c0_0] : memref<32x128xf32, #tpu.memory_space<vmem>>, vector<32x128xf32>
    %c0_1 = arith.constant 0 : index
    %c0_2 = arith.constant 0 : index
    %1 = vector.load %arg2[%c0_1, %c0_2] : memref<1x128xf32, #tpu.memory_space<vmem>>, vector<1x128xf32>
    %2 = vector.shape_cast %1 : vector<1x128xf32> to vector<128xf32>
    %c0_3 = arith.constant 0 : index
    %c0_4 = arith.constant 0 : index
    %3 = vector.load %arg3[%c0_3, %c0_4] : memref<1x128xf32, #tpu.memory_space<vmem>>, vector<1x128xf32>
    %4 = vector.shape_cast %3 : vector<1x128xf32> to vector<128xf32>
    %cst = arith.constant dense<0.000000e+00> : vector<32xf32>
    %5 = vector.multi_reduction <add>, %0, %cst [1] : vector<32x128xf32> to vector<32xf32>
    %6 = vector.shape_cast %5 : vector<32xf32> to vector<32x1xf32>
    %cst_5 = arith.constant 1.280000e+02 : f32
    %7 = vector.broadcast %cst_5 : f32 to vector<32x1xf32>
    %8 = arith.divf %6, %7 : vector<32x1xf32>
    %9 = vector.broadcast %8 : vector<32x1xf32> to vector<32x128xf32>
    %10 = arith.subf %0, %9 : vector<32x128xf32>
    %11 = arith.mulf %10, %10 : vector<32x128xf32>
    %cst_6 = arith.constant dense<0.000000e+00> : vector<32xf32>
    %12 = vector.multi_reduction <add>, %11, %cst_6 [1] : vector<32x128xf32> to vector<32xf32>
    %13 = vector.shape_cast %12 : vector<32xf32> to vector<32x1xf32>
    %cst_7 = arith.constant 1.280000e+02 : f32
    %14 = vector.broadcast %cst_7 : f32 to vector<32x1xf32>
    %15 = arith.divf %13, %14 : vector<32x1xf32>
    %16 = vector.broadcast %8 : vector<32x1xf32> to vector<32x128xf32>
    %17 = arith.subf %0, %16 : vector<32x128xf32>
    %cst_8 = arith.constant 9.99999997E-7 : f32
    %18 = vector.broadcast %cst_8 : f32 to vector<32x1xf32>
    %19 = arith.addf %15, %18 : vector<32x1xf32>
    %20 = math.rsqrt %19 : vector<32x1xf32>
    %21 = vector.broadcast %20 : vector<32x1xf32> to vector<32x128xf32>
    %22 = arith.mulf %17, %21 : vector<32x128xf32>
    %23 = vector.shape_cast %2 : vector<128xf32> to vector<1x128xf32>
    %24 = vector.broadcast %23 : vector<1x128xf32> to vector<32x128xf32>
    %25 = arith.mulf %22, %24 : vector<32x128xf32>
    %26 = vector.shape_cast %4 : vector<128xf32> to vector<1x128xf32>
    %27 = vector.broadcast %26 : vector<1x128xf32> to vector<32x128xf32>
    %28 = arith.addf %25, %27 : vector<32x128xf32>
    %29 = arith.truncf %28 : vector<32x128xf32> to vector<32x128xbf16>
    %c0_9 = arith.constant 0 : index
    %c0_10 = arith.constant 0 : index
    %30 = vector.load %arg4[%c0_9, %c0_10] : memref<128x384xbf16, #tpu.memory_space<vmem>>, vector<128x384xbf16>
    %cst_11 = arith.constant dense<0.000000e+00> : vector<32x384xf32>
    %31 = tpu.matmul %29, %30, %cst_11 {dimension_numbers = #tpu.dot_dimension_numbers<[1], [0], [0], [1], [0, 0, 1, 1], [], []>} : vector<32x128xbf16>, vector<128x384xbf16>, vector<32x384xf32> -> vector<32x384xf32>
    %c0_12 = arith.constant 0 : index
    %c0_13 = arith.constant 0 : index
    %32 = vector.load %arg5[%c0_12, %c0_13] : memref<1x384xf32, #tpu.memory_space<vmem>>, vector<1x384xf32>
    %33 = vector.shape_cast %32 : vector<1x384xf32> to vector<384xf32>
    %34 = vector.shape_cast %33 : vector<384xf32> to vector<1x384xf32>
    %35 = vector.broadcast %34 : vector<1x384xf32> to vector<32x384xf32>
    %36 = arith.addf %31, %35 : vector<32x384xf32>
    %37 = arith.truncf %36 : vector<32x384xf32> to vector<32x384xbf16>
    %c0_14 = arith.constant 0 : index
    %c0_15 = arith.constant 0 : index
    %38 = vector.load %arg6[%c0_14, %c0_15] : memref<32x384xbf16, #tpu.memory_space<vmem>>, vector<32x384xbf16>
    tpu.vector_store %arg6[%c0_14, %c0_15], %37 {strides = array<i32>} : memref<32x384xbf16, #tpu.memory_space<vmem>>, vector<32x384xbf16>,
    return
  }
  func.func @transform_0(%arg0: i32) -> (i32, i32) {
    %c0_i32 = arith.constant 0 : i32
    %c0_i32_0 = arith.constant 0 : i32
    return %arg0, %c0_i32 : i32, i32
  }
  func.func @transform_1(%arg0: i32) -> (i32, i32) {
    %c0_i32 = arith.constant 0 : i32
    %c0_i32_0 = arith.constant 0 : i32
    %c0_i32_1 = arith.constant 0 : i32
    return %c0_i32, %c0_i32_0 : i32, i32
  }
  func.func @transform_2(%arg0: i32) -> (i32, i32) {
    %c0_i32 = arith.constant 0 : i32
    %c0_i32_0 = arith.constant 0 : i32
    %c0_i32_1 = arith.constant 0 : i32
    return %c0_i32, %c0_i32_0 : i32, i32
  }
  func.func @transform_3(%arg0: i32) -> (i32, i32) {
    %c0_i32 = arith.constant 0 : i32
    %c0_i32_0 = arith.constant 0 : i32
    %c0_i32_1 = arith.constant 0 : i32
    return %c0_i32, %c0_i32_0 : i32, i32
  }
  func.func @transform_4(%arg0: i32) -> (i32, i32) {
    %c0_i32 = arith.constant 0 : i32
    %c0_i32_0 = arith.constant 0 : i32
    %c0_i32_1 = arith.constant 0 : i32
    return %c0_i32, %c0_i32_0 : i32, i32
  }
  func.func @transform_5(%arg0: i32) -> (i32, i32) {
    %c0_i32 = arith.constant 0 : i32
    %c0_i32_0 = arith.constant 0 : i32
    return %arg0, %c0_i32 : i32, i32
  }
}

module attributes {stable_mosaic.version = 11 : i64} {
  func.func @_attn_mlp_kernel(%arg0: i32, %arg1: i32, %arg2: i32, %arg3: memref<1x16x128xf32, #tpu.memory_space<vmem>>, %arg4: memref<1x2x16x64xbf16, #tpu.memory_space<vmem>>, %arg5: memref<1x2x16x64xbf16, #tpu.memory_space<vmem>>, %arg6: memref<1x2x16x64xbf16, #tpu.memory_space<vmem>>, %arg7: memref<2x64x128xbf16, #tpu.memory_space<vmem>>, %arg8: memref<1x128xf32, #tpu.memory_space<vmem>>, %arg9: memref<1x128xf32, #tpu.memory_space<vmem>>, %arg10: memref<1x128xf32, #tpu.memory_space<vmem>>, %arg11: memref<128x512xbf16, #tpu.memory_space<vmem>>, %arg12: memref<1x512xf32, #tpu.memory_space<vmem>>, %arg13: memref<512x128xbf16, #tpu.memory_space<vmem>>, %arg14: memref<1x128xf32, #tpu.memory_space<vmem>>, %arg15: memref<1x128xf32, #tpu.memory_space<vmem>>, %arg16: memref<1x128xf32, #tpu.memory_space<vmem>>, %arg17: memref<1x16x128xf32, #tpu.memory_space<vmem>>, %arg18: memref<2x16x1xf32, #tpu.memory_space<vmem>>, %arg19: memref<2x16x1xf32, #tpu.memory_space<vmem>>, %arg20: memref<2x16x64xf32, #tpu.memory_space<vmem>>) attributes {dimension_semantics = [#tpu.dimension_semantics<parallel>, #tpu.dimension_semantics<parallel>, #tpu.dimension_semantics<arbitrary>], iteration_bounds = array<i64: 2, 1, 1>, scalar_prefetch = 0 : i64, scratch_operands = 3 : i64, tpu.core_type = #tpu.core_type<tc>, window_params = [{transform_indices = @transform_0, window_bounds = array<i64: 1, 16, 128>}, {transform_indices = @transform_1, window_bounds = array<i64: 1, 2, 16, 64>}, {transform_indices = @transform_2, window_bounds = array<i64: 1, 2, 16, 64>}, {transform_indices = @transform_3, window_bounds = array<i64: 1, 2, 16, 64>}, {pipeline_mode = #tpu.pipeline_mode<synchronous>, transform_indices = @transform_4, window_bounds = array<i64: 2, 64, 128>}, {pipeline_mode = #tpu.pipeline_mode<synchronous>, transform_indices = @transform_5, window_bounds = array<i64: 1, 128>}, {pipeline_mode = #tpu.pipeline_mode<synchronous>, transform_indices = @transform_6, window_bounds = array<i64: 1, 128>}, {pipeline_mode = #tpu.pipeline_mode<synchronous>, transform_indices = @transform_7, window_bounds = array<i64: 1, 128>}, {pipeline_mode = #tpu.pipeline_mode<synchronous>, transform_indices = @transform_8, window_bounds = array<i64: 128, 512>}, {pipeline_mode = #tpu.pipeline_mode<synchronous>, transform_indices = @transform_9, window_bounds = array<i64: 1, 512>}, {pipeline_mode = #tpu.pipeline_mode<synchronous>, transform_indices = @transform_10, window_bounds = array<i64: 512, 128>}, {pipeline_mode = #tpu.pipeline_mode<synchronous>, transform_indices = @transform_11, window_bounds = array<i64: 1, 128>}, {pipeline_mode = #tpu.pipeline_mode<synchronous>, transform_indices = @transform_12, window_bounds = array<i64: 1, 128>}, {pipeline_mode = #tpu.pipeline_mode<synchronous>, transform_indices = @transform_13, window_bounds = array<i64: 1, 128>}, {transform_indices = @transform_14, window_bounds = array<i64: 1, 16, 128>}]} {
    %c0_i32 = arith.constant 0 : i32
    %0 = arith.cmpi eq, %arg2, %c0_i32 : i32
    %1 = arith.extui %0 : i1 to i32
    %c0_i32_0 = arith.constant 0 : i32
    %2 = arith.cmpi ne, %1, %c0_i32_0 : i32
    scf.if %2 {
      %cst_35 = arith.constant 0xFF800000 : f32
      %36 = vector.broadcast %cst_35 : f32 to vector<2x16x1xf32>
      %c0_36 = arith.constant 0 : index
      %c0_37 = arith.constant 0 : index
      %c0_38 = arith.constant 0 : index
      %37 = vector.load %arg18[%c0_36, %c0_37, %c0_38] : memref<2x16x1xf32, #tpu.memory_space<vmem>>, vector<2x16x1xf32>
      tpu.vector_store %arg18[%c0_36, %c0_37, %c0_38], %36 {strides = array<i32>} : memref<2x16x1xf32, #tpu.memory_space<vmem>>, vector<2x16x1xf32>,
      %cst_39 = arith.constant 0.000000e+00 : f32
      %38 = vector.broadcast %cst_39 : f32 to vector<2x16x1xf32>
      %c0_40 = arith.constant 0 : index
      %c0_41 = arith.constant 0 : index
      %c0_42 = arith.constant 0 : index
      %39 = vector.load %arg19[%c0_40, %c0_41, %c0_42] : memref<2x16x1xf32, #tpu.memory_space<vmem>>, vector<2x16x1xf32>
      tpu.vector_store %arg19[%c0_40, %c0_41, %c0_42], %38 {strides = array<i32>} : memref<2x16x1xf32, #tpu.memory_space<vmem>>, vector<2x16x1xf32>,
      %cst_43 = arith.constant 0.000000e+00 : f32
      %40 = vector.broadcast %cst_43 : f32 to vector<2x16x64xf32>
      %c0_44 = arith.constant 0 : index
      %c0_45 = arith.constant 0 : index
      %c0_46 = arith.constant 0 : index
      %41 = vector.load %arg20[%c0_44, %c0_45, %c0_46] : memref<2x16x64xf32, #tpu.memory_space<vmem>>, vector<2x16x64xf32>
      tpu.vector_store %arg20[%c0_44, %c0_45, %c0_46], %40 {strides = array<i32>} : memref<2x16x64xf32, #tpu.memory_space<vmem>>, vector<2x16x64xf32>,
    } else {
    }
    %c0 = arith.constant 0 : index
    %c0_1 = arith.constant 0 : index
    %c0_2 = arith.constant 0 : index
    %c0_3 = arith.constant 0 : index
    %3 = vector.load %arg4[%c0, %c0_1, %c0_2, %c0_3] : memref<1x2x16x64xbf16, #tpu.memory_space<vmem>>, vector<1x2x16x64xbf16>
    %4 = vector.shape_cast %3 : vector<1x2x16x64xbf16> to vector<2x16x64xbf16>
    %c0_4 = arith.constant 0 : index
    %c0_5 = arith.constant 0 : index
    %c0_6 = arith.constant 0 : index
    %c0_7 = arith.constant 0 : index
    %5 = vector.load %arg5[%c0_4, %c0_5, %c0_6, %c0_7] : memref<1x2x16x64xbf16, #tpu.memory_space<vmem>>, vector<1x2x16x64xbf16>
    %6 = vector.shape_cast %5 : vector<1x2x16x64xbf16> to vector<2x16x64xbf16>
    %c0_8 = arith.constant 0 : index
    %c0_9 = arith.constant 0 : index
    %c0_10 = arith.constant 0 : index
    %c0_11 = arith.constant 0 : index
    %7 = vector.load %arg6[%c0_8, %c0_9, %c0_10, %c0_11] : memref<1x2x16x64xbf16, #tpu.memory_space<vmem>>, vector<1x2x16x64xbf16>
    %8 = vector.shape_cast %7 : vector<1x2x16x64xbf16> to vector<2x16x64xbf16>
    %cst = arith.constant dense<0.000000e+00> : vector<2x16x16xf32>
    %9 = tpu.matmul %4, %6, %cst {dimension_numbers = #tpu.dot_dimension_numbers<[2], [2], [1], [1], [0, 0, 0, 1, 1, 1], [0], [0]>} : vector<2x16x64xbf16>, vector<2x16x64xbf16>, vector<2x16x16xf32> -> vector<2x16x16xf32>
    %c0_12 = arith.constant 0 : index
    %c0_13 = arith.constant 0 : index
    %c0_14 = arith.constant 0 : index
    %10 = vector.load %arg18[%c0_12, %c0_13, %c0_14] : memref<2x16x1xf32, #tpu.memory_space<vmem>>, vector<2x16x1xf32>
    %cst_15 = arith.constant dense<0xFF800000> : vector<2x16xf32>
    %11 = vector.multi_reduction <maximumf>, %9, %cst_15 [2] : vector<2x16x16xf32> to vector<2x16xf32>
    %12 = vector.shape_cast %11 : vector<2x16xf32> to vector<2x16x1xf32>
    %13 = arith.maximumf %10, %12 : vector<2x16x1xf32>
    %14 = arith.subf %10, %13 : vector<2x16x1xf32>
    %15 = math.exp %14 : vector<2x16x1xf32>
    %16 = vector.broadcast %13 : vector<2x16x1xf32> to vector<2x16x16xf32>
    %17 = arith.subf %9, %16 : vector<2x16x16xf32>
    %18 = math.exp %17 : vector<2x16x16xf32>
    %c0_16 = arith.constant 0 : index
    %c0_17 = arith.constant 0 : index
    %c0_18 = arith.constant 0 : index
    %19 = vector.load %arg19[%c0_16, %c0_17, %c0_18] : memref<2x16x1xf32, #tpu.memory_space<vmem>>, vector<2x16x1xf32>
    %20 = arith.mulf %15, %19 : vector<2x16x1xf32>
    %cst_19 = arith.constant dense<0.000000e+00> : vector<2x16xf32>
    %21 = vector.multi_reduction <add>, %18, %cst_19 [2] : vector<2x16x16xf32> to vector<2x16xf32>
    %22 = vector.shape_cast %21 : vector<2x16xf32> to vector<2x16x1xf32>
    %23 = arith.addf %20, %22 : vector<2x16x1xf32>
    %c0_20 = arith.constant 0 : index
    %c0_21 = arith.constant 0 : index
    %c0_22 = arith.constant 0 : index
    %24 = vector.load %arg19[%c0_20, %c0_21, %c0_22] : memref<2x16x1xf32, #tpu.memory_space<vmem>>, vector<2x16x1xf32>
    tpu.vector_store %arg19[%c0_20, %c0_21, %c0_22], %23 {strides = array<i32>} : memref<2x16x1xf32, #tpu.memory_space<vmem>>, vector<2x16x1xf32>,
    %25 = arith.truncf %18 : vector<2x16x16xf32> to vector<2x16x16xbf16>
    %cst_23 = arith.constant dense<0.000000e+00> : vector<2x16x64xf32>
    %26 = tpu.matmul %25, %8, %cst_23 {dimension_numbers = #tpu.dot_dimension_numbers<[2], [1], [1], [2], [0, 0, 0, 1, 1, 2], [0], [0]>} : vector<2x16x16xbf16>, vector<2x16x64xbf16>, vector<2x16x64xf32> -> vector<2x16x64xf32>
    %c0_24 = arith.constant 0 : index
    %c0_25 = arith.constant 0 : index
    %c0_26 = arith.constant 0 : index
    %27 = vector.load %arg20[%c0_24, %c0_25, %c0_26] : memref<2x16x64xf32, #tpu.memory_space<vmem>>, vector<2x16x64xf32>
    %28 = vector.broadcast %15 : vector<2x16x1xf32> to vector<2x16x64xf32>
    %29 = arith.mulf %28, %27 : vector<2x16x64xf32>
    %30 = arith.addf %29, %26 : vector<2x16x64xf32>
    %c0_27 = arith.constant 0 : index
    %c0_28 = arith.constant 0 : index
    %c0_29 = arith.constant 0 : index
    %31 = vector.load %arg20[%c0_27, %c0_28, %c0_29] : memref<2x16x64xf32, #tpu.memory_space<vmem>>, vector<2x16x64xf32>
    tpu.vector_store %arg20[%c0_27, %c0_28, %c0_29], %30 {strides = array<i32>} : memref<2x16x64xf32, #tpu.memory_space<vmem>>, vector<2x16x64xf32>,
    %c0_30 = arith.constant 0 : index
    %c0_31 = arith.constant 0 : index
    %c0_32 = arith.constant 0 : index
    %32 = vector.load %arg18[%c0_30, %c0_31, %c0_32] : memref<2x16x1xf32, #tpu.memory_space<vmem>>, vector<2x16x1xf32>
    tpu.vector_store %arg18[%c0_30, %c0_31, %c0_32], %13 {strides = array<i32>} : memref<2x16x1xf32, #tpu.memory_space<vmem>>, vector<2x16x1xf32>,
    %c0_i32_33 = arith.constant 0 : i32
    %33 = arith.cmpi eq, %arg2, %c0_i32_33 : i32
    %34 = arith.extui %33 : i1 to i32
    %c0_i32_34 = arith.constant 0 : i32
    %35 = arith.cmpi ne, %34, %c0_i32_34 : i32
    scf.if %35 {
      %c0_35 = arith.constant 0 : index
      %c0_36 = arith.constant 0 : index
      %c0_37 = arith.constant 0 : index
      %36 = vector.load %arg3[%c0_35, %c0_36, %c0_37] : memref<1x16x128xf32, #tpu.memory_space<vmem>>, vector<1x16x128xf32>
      %37 = vector.shape_cast %36 : vector<1x16x128xf32> to vector<16x128xf32>
      %c0_38 = arith.constant 0 : index
      %c0_39 = arith.constant 0 : index
      %c0_40 = arith.constant 0 : index
      %38 = vector.load %arg19[%c0_38, %c0_39, %c0_40] : memref<2x16x1xf32, #tpu.memory_space<vmem>>, vector<2x16x1xf32>
      %39 = tpu.reciprocal %38 {approx = true} : vector<2x16x1xf32> -> vector<2x16x1xf32>
      %c0_41 = arith.constant 0 : index
      %c0_42 = arith.constant 0 : index
      %c0_43 = arith.constant 0 : index
      %40 = vector.load %arg20[%c0_41, %c0_42, %c0_43] : memref<2x16x64xf32, #tpu.memory_space<vmem>>, vector<2x16x64xf32>
      %41 = vector.broadcast %39 : vector<2x16x1xf32> to vector<2x16x64xf32>
      %42 = arith.mulf %40, %41 : vector<2x16x64xf32>
      %43 = arith.truncf %42 : vector<2x16x64xf32> to vector<2x16x64xbf16>
      %c0_44 = arith.constant 0 : index
      %c0_45 = arith.constant 0 : index
      %c0_46 = arith.constant 0 : index
      %44 = vector.load %arg7[%c0_44, %c0_45, %c0_46] : memref<2x64x128xbf16, #tpu.memory_space<vmem>>, vector<2x64x128xbf16>
      %cst_47 = arith.constant dense<0.000000e+00> : vector<2x16x128xf32>
      %45 = tpu.matmul %43, %44, %cst_47 {dimension_numbers = #tpu.dot_dimension_numbers<[2], [1], [1], [2], [0, 0, 0, 1, 1, 2], [0], [0]>} : vector<2x16x64xbf16>, vector<2x64x128xbf16>, vector<2x16x128xf32> -> vector<2x16x128xf32>
      %cst_48 = arith.constant dense<0.000000e+00> : vector<16x128xf32>
      %46 = vector.multi_reduction <add>, %45, %cst_48 [0] : vector<2x16x128xf32> to vector<16x128xf32>
      %47 = arith.addf %37, %46 : vector<16x128xf32>
      %c0_49 = arith.constant 0 : index
      %c0_50 = arith.constant 0 : index
      %48 = vector.load %arg8[%c0_49, %c0_50] : memref<1x128xf32, #tpu.memory_space<vmem>>, vector<1x128xf32>
      %49 = vector.shape_cast %48 : vector<1x128xf32> to vector<128xf32>
      %50 = vector.shape_cast %49 : vector<128xf32> to vector<1x128xf32>
      %51 = vector.broadcast %50 : vector<1x128xf32> to vector<16x128xf32>
      %52 = arith.addf %47, %51 : vector<16x128xf32>
      %c0_51 = arith.constant 0 : index
      %c0_52 = arith.constant 0 : index
      %53 = vector.load %arg9[%c0_51, %c0_52] : memref<1x128xf32, #tpu.memory_space<vmem>>, vector<1x128xf32>
      %54 = vector.shape_cast %53 : vector<1x128xf32> to vector<128xf32>
      %c0_53 = arith.constant 0 : index
      %c0_54 = arith.constant 0 : index
      %55 = vector.load %arg10[%c0_53, %c0_54] : memref<1x128xf32, #tpu.memory_space<vmem>>, vector<1x128xf32>
      %56 = vector.shape_cast %55 : vector<1x128xf32> to vector<128xf32>
      %cst_55 = arith.constant dense<0.000000e+00> : vector<16xf32>
      %57 = vector.multi_reduction <add>, %52, %cst_55 [1] : vector<16x128xf32> to vector<16xf32>
      %58 = vector.shape_cast %57 : vector<16xf32> to vector<16x1xf32>
      %cst_56 = arith.constant 1.280000e+02 : f32
      %59 = vector.broadcast %cst_56 : f32 to vector<16x1xf32>
      %60 = arith.divf %58, %59 : vector<16x1xf32>
      %61 = vector.broadcast %60 : vector<16x1xf32> to vector<16x128xf32>
      %62 = arith.subf %52, %61 : vector<16x128xf32>
      %63 = arith.mulf %62, %62 : vector<16x128xf32>
      %cst_57 = arith.constant dense<0.000000e+00> : vector<16xf32>
      %64 = vector.multi_reduction <add>, %63, %cst_57 [1] : vector<16x128xf32> to vector<16xf32>
      %65 = vector.shape_cast %64 : vector<16xf32> to vector<16x1xf32>
      %cst_58 = arith.constant 1.280000e+02 : f32
      %66 = vector.broadcast %cst_58 : f32 to vector<16x1xf32>
      %67 = arith.divf %65, %66 : vector<16x1xf32>
      %68 = vector.broadcast %60 : vector<16x1xf32> to vector<16x128xf32>
      %69 = arith.subf %52, %68 : vector<16x128xf32>
      %cst_59 = arith.constant 9.99999997E-7 : f32
      %70 = vector.broadcast %cst_59 : f32 to vector<16x1xf32>
      %71 = arith.addf %67, %70 : vector<16x1xf32>
      %72 = math.rsqrt %71 : vector<16x1xf32>
      %73 = vector.broadcast %72 : vector<16x1xf32> to vector<16x128xf32>
      %74 = arith.mulf %69, %73 : vector<16x128xf32>
      %75 = vector.shape_cast %54 : vector<128xf32> to vector<1x128xf32>
      %76 = vector.broadcast %75 : vector<1x128xf32> to vector<16x128xf32>
      %77 = arith.mulf %74, %76 : vector<16x128xf32>
      %78 = vector.shape_cast %56 : vector<128xf32> to vector<1x128xf32>
      %79 = vector.broadcast %78 : vector<1x128xf32> to vector<16x128xf32>
      %80 = arith.addf %77, %79 : vector<16x128xf32>
      %81 = arith.truncf %80 : vector<16x128xf32> to vector<16x128xbf16>
      %c0_60 = arith.constant 0 : index
      %c0_61 = arith.constant 0 : index
      %82 = vector.load %arg11[%c0_60, %c0_61] : memref<128x512xbf16, #tpu.memory_space<vmem>>, vector<128x512xbf16>
      %cst_62 = arith.constant dense<0.000000e+00> : vector<16x512xf32>
      %83 = tpu.matmul %81, %82, %cst_62 {dimension_numbers = #tpu.dot_dimension_numbers<[1], [0], [0], [1], [0, 0, 1, 1], [], []>} : vector<16x128xbf16>, vector<128x512xbf16>, vector<16x512xf32> -> vector<16x512xf32>
      %c0_63 = arith.constant 0 : index
      %c0_64 = arith.constant 0 : index
      %84 = vector.load %arg12[%c0_63, %c0_64] : memref<1x512xf32, #tpu.memory_space<vmem>>, vector<1x512xf32>
      %85 = vector.shape_cast %84 : vector<1x512xf32> to vector<512xf32>
      %86 = vector.shape_cast %85 : vector<512xf32> to vector<1x512xf32>
      %87 = vector.broadcast %86 : vector<1x512xf32> to vector<16x512xf32>
      %88 = arith.addf %83, %87 : vector<16x512xf32>
      %cst_65 = arith.constant 5.000000e-01 : f32
      %89 = vector.broadcast %cst_65 : f32 to vector<16x512xf32>
      %90 = arith.mulf %89, %88 : vector<16x512xf32>
      %cst_66 = arith.constant 0.707106769 : f32
      %91 = vector.broadcast %cst_66 : f32 to vector<16x512xf32>
      %92 = arith.mulf %88, %91 : vector<16x512xf32>
      %93 = math.erf %92 : vector<16x512xf32>
      %cst_67 = arith.constant 1.000000e+00 : f32
      %94 = vector.broadcast %cst_67 : f32 to vector<16x512xf32>
      %95 = arith.addf %94, %93 : vector<16x512xf32>
      %96 = arith.mulf %90, %95 : vector<16x512xf32>
      %97 = arith.truncf %96 : vector<16x512xf32> to vector<16x512xbf16>
      %c0_68 = arith.constant 0 : index
      %c0_69 = arith.constant 0 : index
      %98 = vector.load %arg13[%c0_68, %c0_69] : memref<512x128xbf16, #tpu.memory_space<vmem>>, vector<512x128xbf16>
      %cst_70 = arith.constant dense<0.000000e+00> : vector<16x128xf32>
      %99 = tpu.matmul %97, %98, %cst_70 {dimension_numbers = #tpu.dot_dimension_numbers<[1], [0], [0], [1], [0, 0, 1, 1], [], []>} : vector<16x512xbf16>, vector<512x128xbf16>, vector<16x128xf32> -> vector<16x128xf32>
      %c0_71 = arith.constant 0 : index
      %c0_72 = arith.constant 0 : index
      %100 = vector.load %arg14[%c0_71, %c0_72] : memref<1x128xf32, #tpu.memory_space<vmem>>, vector<1x128xf32>
      %101 = vector.shape_cast %100 : vector<1x128xf32> to vector<128xf32>
      %102 = vector.shape_cast %101 : vector<128xf32> to vector<1x128xf32>
      %103 = vector.broadcast %102 : vector<1x128xf32> to vector<16x128xf32>
      %104 = arith.addf %99, %103 : vector<16x128xf32>
      %105 = arith.addf %52, %104 : vector<16x128xf32>
      %c0_73 = arith.constant 0 : index
      %c0_74 = arith.constant 0 : index
      %106 = vector.load %arg15[%c0_73, %c0_74] : memref<1x128xf32, #tpu.memory_space<vmem>>, vector<1x128xf32>
      %107 = vector.shape_cast %106 : vector<1x128xf32> to vector<128xf32>
      %c0_75 = arith.constant 0 : index
      %c0_76 = arith.constant 0 : index
      %108 = vector.load %arg16[%c0_75, %c0_76] : memref<1x128xf32, #tpu.memory_space<vmem>>, vector<1x128xf32>
      %109 = vector.shape_cast %108 : vector<1x128xf32> to vector<128xf32>
      %cst_77 = arith.constant dense<0.000000e+00> : vector<16xf32>
      %110 = vector.multi_reduction <add>, %105, %cst_77 [1] : vector<16x128xf32> to vector<16xf32>
      %111 = vector.shape_cast %110 : vector<16xf32> to vector<16x1xf32>
      %cst_78 = arith.constant 1.280000e+02 : f32
      %112 = vector.broadcast %cst_78 : f32 to vector<16x1xf32>
      %113 = arith.divf %111, %112 : vector<16x1xf32>
      %114 = vector.broadcast %113 : vector<16x1xf32> to vector<16x128xf32>
      %115 = arith.subf %105, %114 : vector<16x128xf32>
      %116 = arith.mulf %115, %115 : vector<16x128xf32>
      %cst_79 = arith.constant dense<0.000000e+00> : vector<16xf32>
      %117 = vector.multi_reduction <add>, %116, %cst_79 [1] : vector<16x128xf32> to vector<16xf32>
      %118 = vector.shape_cast %117 : vector<16xf32> to vector<16x1xf32>
      %cst_80 = arith.constant 1.280000e+02 : f32
      %119 = vector.broadcast %cst_80 : f32 to vector<16x1xf32>
      %120 = arith.divf %118, %119 : vector<16x1xf32>
      %121 = vector.broadcast %113 : vector<16x1xf32> to vector<16x128xf32>
      %122 = arith.subf %105, %121 : vector<16x128xf32>
      %cst_81 = arith.constant 9.99999997E-7 : f32
      %123 = vector.broadcast %cst_81 : f32 to vector<16x1xf32>
      %124 = arith.addf %120, %123 : vector<16x1xf32>
      %125 = math.rsqrt %124 : vector<16x1xf32>
      %126 = vector.broadcast %125 : vector<16x1xf32> to vector<16x128xf32>
      %127 = arith.mulf %122, %126 : vector<16x128xf32>
      %128 = vector.shape_cast %107 : vector<128xf32> to vector<1x128xf32>
      %129 = vector.broadcast %128 : vector<1x128xf32> to vector<16x128xf32>
      %130 = arith.mulf %127, %129 : vector<16x128xf32>
      %131 = vector.shape_cast %109 : vector<128xf32> to vector<1x128xf32>
      %132 = vector.broadcast %131 : vector<1x128xf32> to vector<16x128xf32>
      %133 = arith.addf %130, %132 : vector<16x128xf32>
      %c0_82 = arith.constant 0 : index
      %c0_83 = arith.constant 0 : index
      %c0_84 = arith.constant 0 : index
      %134 = vector.load %arg17[%c0_82, %c0_83, %c0_84] : memref<1x16x128xf32, #tpu.memory_space<vmem>>, vector<1x16x128xf32>
      %135 = vector.shape_cast %134 : vector<1x16x128xf32> to vector<16x128xf32>
      %136 = vector.shape_cast %133 : vector<16x128xf32> to vector<1x16x128xf32>
      tpu.vector_store %arg17[%c0_82, %c0_83, %c0_84], %136 {strides = array<i32>} : memref<1x16x128xf32, #tpu.memory_space<vmem>>, vector<1x16x128xf32>,
    } else {
    }
    return
  }
  func.func @transform_0(%arg0: i32, %arg1: i32, %arg2: i32) -> (i32, i32, i32) {
    %c0_i32 = arith.constant 0 : i32
    %c0_i32_0 = arith.constant 0 : i32
    return %arg0, %arg1, %c0_i32 : i32, i32, i32
  }
  func.func @transform_1(%arg0: i32, %arg1: i32, %arg2: i32) -> (i32, i32, i32, i32) {
    %c0_i32 = arith.constant 0 : i32
    %c0_i32_0 = arith.constant 0 : i32
    %c0_i32_1 = arith.constant 0 : i32
    return %arg0, %c0_i32, %arg1, %c0_i32_0 : i32, i32, i32, i32
  }
  func.func @transform_2(%arg0: i32, %arg1: i32, %arg2: i32) -> (i32, i32, i32, i32) {
    %c0_i32 = arith.constant 0 : i32
    %c0_i32_0 = arith.constant 0 : i32
    %c0_i32_1 = arith.constant 0 : i32
    return %arg0, %c0_i32, %arg2, %c0_i32_0 : i32, i32, i32, i32
  }
  func.func @transform_3(%arg0: i32, %arg1: i32, %arg2: i32) -> (i32, i32, i32, i32) {
    %c0_i32 = arith.constant 0 : i32
    %c0_i32_0 = arith.constant 0 : i32
    %c0_i32_1 = arith.constant 0 : i32
    return %arg0, %c0_i32, %arg2, %c0_i32_0 : i32, i32, i32, i32
  }
  func.func @transform_4(%arg0: i32, %arg1: i32, %arg2: i32) -> (i32, i32, i32) {
    %c0_i32 = arith.constant 0 : i32
    %c0_i32_0 = arith.constant 0 : i32
    %c0_i32_1 = arith.constant 0 : i32
    %c0_i32_2 = arith.constant 0 : i32
    return %c0_i32, %c0_i32_0, %c0_i32_1 : i32, i32, i32
  }
  func.func @transform_5(%arg0: i32, %arg1: i32, %arg2: i32) -> (i32, i32) {
    %c0_i32 = arith.constant 0 : i32
    %c0_i32_0 = arith.constant 0 : i32
    %c0_i32_1 = arith.constant 0 : i32
    return %c0_i32, %c0_i32_0 : i32, i32
  }
  func.func @transform_6(%arg0: i32, %arg1: i32, %arg2: i32) -> (i32, i32) {
    %c0_i32 = arith.constant 0 : i32
    %c0_i32_0 = arith.constant 0 : i32
    %c0_i32_1 = arith.constant 0 : i32
    return %c0_i32, %c0_i32_0 : i32, i32
  }
  func.func @transform_7(%arg0: i32, %arg1: i32, %arg2: i32) -> (i32, i32) {
    %c0_i32 = arith.constant 0 : i32
    %c0_i32_0 = arith.constant 0 : i32
    %c0_i32_1 = arith.constant 0 : i32
    return %c0_i32, %c0_i32_0 : i32, i32
  }
  func.func @transform_8(%arg0: i32, %arg1: i32, %arg2: i32) -> (i32, i32) {
    %c0_i32 = arith.constant 0 : i32
    %c0_i32_0 = arith.constant 0 : i32
    %c0_i32_1 = arith.constant 0 : i32
    return %c0_i32, %c0_i32_0 : i32, i32
  }
  func.func @transform_9(%arg0: i32, %arg1: i32, %arg2: i32) -> (i32, i32) {
    %c0_i32 = arith.constant 0 : i32
    %c0_i32_0 = arith.constant 0 : i32
    %c0_i32_1 = arith.constant 0 : i32
    return %c0_i32, %c0_i32_0 : i32, i32
  }
  func.func @transform_10(%arg0: i32, %arg1: i32, %arg2: i32) -> (i32, i32) {
    %c0_i32 = arith.constant 0 : i32
    %c0_i32_0 = arith.constant 0 : i32
    %c0_i32_1 = arith.constant 0 : i32
    return %c0_i32, %c0_i32_0 : i32, i32
  }
  func.func @transform_11(%arg0: i32, %arg1: i32, %arg2: i32) -> (i32, i32) {
    %c0_i32 = arith.constant 0 : i32
    %c0_i32_0 = arith.constant 0 : i32
    %c0_i32_1 = arith.constant 0 : i32
    return %c0_i32, %c0_i32_0 : i32, i32
  }
  func.func @transform_12(%arg0: i32, %arg1: i32, %arg2: i32) -> (i32, i32) {
    %c0_i32 = arith.constant 0 : i32
    %c0_i32_0 = arith.constant 0 : i32
    %c0_i32_1 = arith.constant 0 : i32
    return %c0_i32, %c0_i32_0 : i32, i32
  }
  func.func @transform_13(%arg0: i32, %arg1: i32, %arg2: i32) -> (i32, i32) {
    %c0_i32 = arith.constant 0 : i32
    %c0_i32_0 = arith.constant 0 : i32
    %c0_i32_1 = arith.constant 0 : i32
    return %c0_i32, %c0_i32_0 : i32, i32
  }
  func.func @transform_14(%arg0: i32, %arg1: i32, %arg2: i32) -> (i32, i32, i32) {
    %c0_i32 = arith.constant 0 : i32
    %c0_i32_0 = arith.constant 0 : i32
    return %arg0, %arg1, %c0_i32 : i32, i32, i32
  }
}

</mosaic_0001>

<llo_original>
// kernel: mul.9
$region0: #{mul.9}
  #allocation0 [shape = 's32[1]{0}', space=sflag, size = 0x4, scoped, tag = 'scoped memory for mul.9']
  %s0 = inlined_call_operand.vmem [shape: f32[1,384], index: 0, kind: input, shape index: {}]
  %s1 = inlined_call_operand.vmem [shape: f32[1,384], index: 1, kind: input, shape index: {}]
  %s2 = inlined_call_operand.vmem [shape: f32[1,384], index: 2, kind: output, shape index: {}]
  %v3 = vld [vmem:[%s0] sm:$0x1]
  %v4 = vld [vmem:[%s1] sm:$0x1]
  %5 = xla_tuple %v3, %v4
  %6 = xla_tuple %5
  %v7 = vmul.f32 %v3, %v4
  %8 = xla_tuple %v7
  %9 = vst [vmem:[%s2] sm:$0x1] %v7
  %s10 = scalar_lea.vmem %s0, 1
  %v11 = vld [vmem:[%s10] sm:$0x1]
  %s12 = scalar_lea.vmem %s1, 1
  %v13 = vld [vmem:[%s12] sm:$0x1]
  %14 = xla_tuple %v11, %v13
  %15 = xla_tuple %14
  %v16 = vmul.f32 %v11, %v13
  %17 = xla_tuple %v16
  %s18 = scalar_lea.vmem %s2, 1
  %19 = vst [vmem:[%s18] sm:$0x1] %v16
  %s20 = scalar_lea.vmem %s0, 2
  %v21 = vld [vmem:[%s20] sm:$0x1]
  %s22 = scalar_lea.vmem %s1, 2
  %v23 = vld [vmem:[%s22] sm:$0x1]
  %24 = xla_tuple %v21, %v23
  %25 = xla_tuple %24
  %v26 = vmul.f32 %v21, %v23
  %27 = xla_tuple %v26
  %s28 = scalar_lea.vmem %s2, 2
  %29 = vst [vmem:[%s28] sm:$0x1] %v26

// kernel: _denoiser_forward_impl.2
$region0: #{_denoiser_forward_impl.2}
  #allocation0 [shape = 'u32[]', space=smem, size = 0x4, offset = 0x4, fixed_abs, tag = 'smem constant byte address 0x4 - core index']
  #allocation1 [shape = 'u32[144,128]{1,0:T(1,128)}', space=vmem, size = 0x12000, scoped, tag = 'internal scratch']
  %s0 = inlined_call_operand.vmem [shape: f32[32,128], index: 0, kind: input, shape index: {}]
  %s1 = inlined_call_operand.vmem [shape: f32[1,128], index: 1, kind: input, shape index: {}]
  %s2 = inlined_call_operand.vmem [shape: f32[1,128], index: 2, kind: input, shape index: {}]
  %s3 = inlined_call_operand.vmem [shape: bf16[128,384], index: 3, kind: input, shape index: {}]
  %s4 = inlined_call_operand.vmem [shape: f32[1,384], index: 4, kind: input, shape index: {}]
  %s5 = inlined_call_operand.vmem [shape: bf16[32,384], index: 5, kind: output, shape index: {}]
  %s6 = sld [smem:[#allocation0]]
  $region30: #{_denoiser_forward_impl.2} parent=0
    _
  %s8 = ssub.s32 1, %s6
  %s9 = scalar_select 0, %s8, %s6
  // Predicated region
  $region2: #{_denoiser_forward_impl.2} parent=0 // pred_check
    _
  $region3: #{_denoiser_forward_impl.2} parent=0 // pred_check_branch
    %11 = sbr.rel (0) target = $region5
  $region4: #{_denoiser_forward_impl.2} parent=0 // pred_region
    _
  $region5: #{_denoiser_forward_impl.2} parent=0 // pred_fallthru
    _
  // Predicated region
  $region6: #{_denoiser_forward_impl.2} parent=0 // pred_check
    _
  $region7: #{_denoiser_forward_impl.2} parent=0 // pred_check_branch
    %13 = sbr.rel (0) target = $region9
  $region8: #{_denoiser_forward_impl.2} parent=0 // pred_region
    _
  $region9: #{_denoiser_forward_impl.2} parent=0 // pred_fallthru
    _
  // Predicated region
  $region10: #{_denoiser_forward_impl.2} parent=0 // pred_check
    _
  $region11: #{_denoiser_forward_impl.2} parent=0 // pred_check_branch
    %15 = sbr.rel (0) target = $region13
  $region12: #{_denoiser_forward_impl.2} parent=0 // pred_region
    _
  $region13: #{_denoiser_forward_impl.2} parent=0 // pred_fallthru
    _
  // Predicated region
  $region14: #{_denoiser_forward_impl.2} parent=0 // pred_check
    _
  $region15: #{_denoiser_forward_impl.2} parent=0 // pred_check_branch
    %17 = sbr.rel (0) target = $region17
  $region16: #{_denoiser_forward_impl.2} parent=0 // pred_region
    _
  $region17: #{_denoiser_forward_impl.2} parent=0 // pred_fallthru
    _
  // Predicated region
  $region18: #{_denoiser_forward_impl.2} parent=0 // pred_check
    _
  $region19: #{_denoiser_forward_impl.2} parent=0 // pred_check_branch
    %19 = sbr.rel (0) target = $region21
  $region20: #{_denoiser_forward_impl.2} parent=0 // pred_region
    _
  $region21: #{_denoiser_forward_impl.2} parent=0 // pred_fallthru
    _
  %v21 = vld [vmem:[%s0] sm:$0xff]
  %v22 = vld [vmem:[%s0 + $0x8] sm:$0xff]
  %v23 = vld [vmem:[%s0 + $0x10] sm:$0xff]
  %v24 = vld [vmem:[%s0 + $0x18] sm:$0xff]
  %v25 = vld [vmem:[%s1] sm:$0x1]
  %v26 = vld [vmem:[%s2] sm:$0x1]
  %27 = vadd.xlane.f32.xlu0 %v21
  %v28 = vpop.xlane.xlu0 %27
  %29 = vadd.xlane.f32.xlu0 %v22
  %v30 = vpop.xlane.xlu0 %29
  %31 = vadd.xlane.f32.xlu0 %v23
  %v32 = vpop.xlane.xlu0 %31
  %33 = vadd.xlane.f32.xlu0 %v24
  %v34 = vpop.xlane.xlu0 %33
  %v35 = vrcp.pop 128.0
  %v36 = vmul.f32 %v28, %v35
  %v37 = vmul.f32 %v30, %v35
  %v38 = vmul.f32 %v32, %v35
  %v39 = vmul.f32 %v34, %v35
  %v40 = vsub.f32 %v21, %v36
  %v41 = vsub.f32 %v22, %v37
  %v42 = vsub.f32 %v23, %v38
  %v43 = vsub.f32 %v24, %v39
  %v44 = vmul.f32 %v40, %v40
  %v45 = vmul.f32 %v41, %v41
  %v46 = vmul.f32 %v42, %v42
  %v47 = vmul.f32 %v43, %v43
  %48 = vadd.xlane.f32.xlu0 %v44
  %v49 = vpop.xlane.xlu0 %48
  %50 = vadd.xlane.f32.xlu0 %v45
  %v51 = vpop.xlane.xlu0 %50
  %52 = vadd.xlane.f32.xlu0 %v46
  %v53 = vpop.xlane.xlu0 %52
  %54 = vadd.xlane.f32.xlu0 %v47
  %v55 = vpop.xlane.xlu0 %54
  %v56 = vmul.f32 %v49, %v35
  %v57 = vmul.f32 %v51, %v35
  %v58 = vmul.f32 %v53, %v35
  %v59 = vmul.f32 %v55, %v35
  %v60 = vadd.f32 %v56, 1e-06
  %v61 = vadd.f32 %v57, 1e-06
  %v62 = vadd.f32 %v58, 1e-06
  %v63 = vadd.f32 %v59, 1e-06
  %v64 = vrsqrt.pop %v60
  %v65 = vrsqrt.pop %v61
  %v66 = vrsqrt.pop %v62
  %v67 = vrsqrt.pop %v63
  %v68 = vmul.f32 %v40, %v64
  %v69 = vmul.f32 %v41, %v65
  %v70 = vmul.f32 %v42, %v66
  %v71 = vmul.f32 %v43, %v67
  %v73 = vlaneseq
  %v74 = vshrl.u32 %v73, 7
  %v75 = vsub.s32 0, %v74
  %v76 = vrot.slane %v25, %v75
  %v78 = vmul.f32 %v68, %v76
  %v79 = vmul.f32 %v69, %v76
  %v80 = vmul.f32 %v70, %v76
  %v81 = vmul.f32 %v71, %v76
  %v83 = vlaneseq
  %v84 = vshrl.u32 %v83, 7
  %v85 = vsub.s32 0, %v84
  %v86 = vrot.slane %v26, %v85
  %v88 = vadd.f32 %v78, %v86
  %v89 = vadd.f32 %v79, %v86
  %v90 = vadd.f32 %v80, %v86
  %v91 = vadd.f32 %v81, %v86
  %v92 = vpack.c.bf16 %v89, %v88
  %v93 = vpack.c.bf16 %v91, %v90
  %v94 = vld [vmem:[%s3] sm:$0xff]
  %v95 = vld [vmem:[%s3 + $0x8] sm:$0xf]
  %v96 = vld [vmem:[%s3 + $0xc] sm:$0xff]
  %v97 = vld [vmem:[%s3 + $0x14] sm:$0xf]
  %v98 = vld [vmem:[%s3 + $0x18] sm:$0xff]
  %v99 = vld [vmem:[%s3 + $0x20] sm:$0xf]
  %v100 = vld [vmem:[%s3 + $0x24] sm:$0xff]
  %v101 = vld [vmem:[%s3 + $0x2c] sm:$0xf]
  %v102 = vld [vmem:[%s3 + $0x30] sm:$0xff]
  %v103 = vld [vmem:[%s3 + $0x38] sm:$0xf]
  %v104 = vld [vmem:[%s3 + $0x3c] sm:$0xff]
  %v105 = vld [vmem:[%s3 + $0x44] sm:$0xf]
  %v106 = vld [vmem:[%s3 + $0x48] sm:$0xff]
  %v107 = vld [vmem:[%s3 + $0x50] sm:$0xf]
  %v108 = vld [vmem:[%s3 + $0x54] sm:$0xff]
  %v109 = vld [vmem:[%s3 + $0x5c] sm:$0xf]
  %v110 = vld [vmem:[%s3 + $0x60] sm:$0xff]
  %v111 = vld [vmem:[%s3 + $0x68] sm:$0xf]
  %v112 = vld [vmem:[%s3 + $0x6c] sm:$0xff]
  %v113 = vld [vmem:[%s3 + $0x74] sm:$0xf]
  %v114 = vld [vmem:[%s3 + $0x78] sm:$0xff]
  %v115 = vld [vmem:[%s3 + $0x80] sm:$0xf]
  %v116 = vld [vmem:[%s3 + $0x84] sm:$0xff]
  %v117 = vld [vmem:[%s3 + $0x8c] sm:$0xf]
  %v118 = vld [vmem:[%s3 + $0x90] sm:$0xff]
  %v119 = vld [vmem:[%s3 + $0x98] sm:$0xf]
  %v120 = vld [vmem:[%s3 + $0x9c] sm:$0xff]
  %v121 = vld [vmem:[%s3 + $0xa4] sm:$0xf]
  %v122 = vld [vmem:[%s3 + $0xa8] sm:$0xff]
  %v123 = vld [vmem:[%s3 + $0xb0] sm:$0xf]
  %v124 = vld [vmem:[%s3 + $0xb4] sm:$0xff]
  %v125 = vld [vmem:[%s3 + $0xbc] sm:$0xf]
  %v126 = vld [vmem:[%s4] sm:$0x7]
  %v128 = vlaneseq
  %v129 = vshrl.u32 %v128, 7
  %v130 = vsub.s32 0, %v129
  %v131 = vrot.slane %v126, %v130
  %v132 = vlaneseq
  %v133 = vshrl.u32 %v132, 7
  %v134 = vsub.s32 1, %v133
  %v135 = vrot.slane %v126, %v134
  %v136 = vlaneseq
  %v137 = vshrl.u32 %v136, 7
  %v138 = vsub.s32 2, %v137
  %v139 = vrot.slane %v126, %v138
  %v175 = vunpack.c.l.b16 %v94
  %v176 = vunpack.c.h.b16 %v94
  %v177 = vunpack.c.l.b16 %v95
  %v178 = vunpack.c.l.b16 %v96
  %v179 = vunpack.c.h.b16 %v96
  %v180 = vunpack.c.l.b16 %v97
  %v181 = vunpack.c.l.b16 %v98
  %v182 = vunpack.c.h.b16 %v98
  %v183 = vunpack.c.l.b16 %v99
  %v184 = vunpack.c.l.b16 %v100
  %v185 = vunpack.c.h.b16 %v100
  %v186 = vunpack.c.l.b16 %v101
  %v187 = vunpack.c.l.b16 %v102
  %v188 = vunpack.c.h.b16 %v102
  %v189 = vunpack.c.l.b16 %v103
  %v190 = vunpack.c.l.b16 %v104
  %v191 = vunpack.c.h.b16 %v104
  %v192 = vunpack.c.l.b16 %v105
  %v193 = vunpack.c.l.b16 %v106
  %v194 = vunpack.c.h.b16 %v106
  %v195 = vunpack.c.l.b16 %v107
  %v196 = vunpack.c.l.b16 %v108
  %v197 = vunpack.c.h.b16 %v108
  %v198 = vunpack.c.l.b16 %v109
  %v199 = vunpack.c.l.b16 %v110
  %v200 = vunpack.c.h.b16 %v110
  %v201 = vunpack.c.l.b16 %v111
  %v202 = vunpack.c.l.b16 %v112
  %v203 = vunpack.c.h.b16 %v112
  %v204 = vunpack.c.l.b16 %v113
  %v205 = vunpack.c.l.b16 %v114
  %v206 = vunpack.c.h.b16 %v114
  %v207 = vunpack.c.l.b16 %v115
  %v208 = vunpack.c.l.b16 %v116
  %v209 = vunpack.c.h.b16 %v116
  %v210 = vunpack.c.l.b16 %v117
  %v211 = vunpack.c.l.b16 %v118
  %v212 = vunpack.c.h.b16 %v118
  %v213 = vunpack.c.l.b16 %v119
  %v214 = vunpack.c.l.b16 %v120
  %v215 = vunpack.c.h.b16 %v120
  %v216 = vunpack.c.l.b16 %v121
  %v217 = vunpack.c.l.b16 %v122
  %v218 = vunpack.c.h.b16 %v122
  %v219 = vunpack.c.l.b16 %v123
  %v220 = vunpack.c.l.b16 %v124
  %v221 = vunpack.c.h.b16 %v124
  %v222 = vunpack.c.l.b16 %v125
  %v223 = vpack.c.b16 %v178, %v175
  %v224 = vpack.c.b16 %v179, %v176
  %v225 = vpack.c.b16 %v180, %v177
  %v226 = vpack.c.b16 %v184, %v181
  %v227 = vpack.c.b16 %v185, %v182
  %v228 = vpack.c.b16 %v186, %v183
  %v229 = vpack.c.b16 %v190, %v187
  %v230 = vpack.c.b16 %v191, %v188
  %v231 = vpack.c.b16 %v192, %v189
  %v232 = vpack.c.b16 %v196, %v193
  %v233 = vpack.c.b16 %v197, %v194
  %v234 = vpack.c.b16 %v198, %v195
  %v235 = vpack.c.b16 %v202, %v199
  %v236 = vpack.c.b16 %v203, %v200
  %v237 = vpack.c.b16 %v204, %v201
  %v238 = vpack.c.b16 %v208, %v205
  %v239 = vpack.c.b16 %v209, %v206
  %v240 = vpack.c.b16 %v210, %v207
  %v241 = vpack.c.b16 %v214, %v211
  %v242 = vpack.c.b16 %v215, %v212
  %v243 = vpack.c.b16 %v216, %v213
  %v244 = vpack.c.b16 %v220, %v217
  %v245 = vpack.c.b16 %v221, %v218
  %v246 = vpack.c.b16 %v222, %v219
  %271 = vmatprep.subr.bf16.mxu0 %v224
  %272 = vmatpush1.bf16.msra.mxu0 %v223
  %273 = vmatprep.subr.bf16.mxu0 %v227
  %274 = vmatpush1.bf16.msra.mxu0 %v226
  %275 = vmatprep.subr.bf16.mxu0 %v230
  %276 = vmatpush1.bf16.msra.mxu0 %v229
  %277 = vmatprep.subr.bf16.mxu0 %v233
  %278 = vmatpush1.bf16.msra.mxu0 %v232
  %279 = vmatprep.subr.bf16.mxu0 %v236
  %280 = vmatpush1.bf16.msra.mxu0 %v235
  %281 = vmatprep.subr.bf16.mxu0 %v239
  %282 = vmatpush1.bf16.msra.mxu0 %v238
  %283 = vmatprep.subr.bf16.mxu0 %v242
  %284 = vmatpush1.bf16.msra.mxu0 %v241
  %285 = vmatprep.subr.bf16.mxu0 %v245
  %286 = vmatpush1.bf16.msra.mxu0 %v244
  %287 = vmatprep.subr.bf16.mxu0 0
  %288 = vmatpush1.bf16.msra.mxu0 0
  %289 = vmatprep.subr.bf16.mxu0 0
  %290 = vmatpush1.bf16.msra.mxu0 0
  %291 = vmatprep.subr.bf16.mxu0 0
  %292 = vmatpush1.bf16.msra.mxu0 0
  %293 = vmatprep.subr.bf16.mxu0 0
  %294 = vmatpush1.bf16.msra.mxu0 0
  %295 = vmatprep.subr.bf16.mxu0 0
  %296 = vmatpush1.bf16.msra.mxu0 0
  %297 = vmatprep.subr.bf16.mxu0 0
  %298 = vmatpush1.bf16.msra.mxu0 0
  %299 = vmatprep.subr.bf16.mxu0 0
  %300 = vmatpush1.bf16.msra.mxu0 0
  %301 = vmatprep.subr.bf16.mxu0 0
  %302 = vmatpush1.bf16.msra.mxu0 0
  %303 = vmatprep.mubr.bf16.mxu0 0
  %304 = vmatmul.mubr.bf16.gmra.mrb[0].mxu0 %v92
  %v305 = vpop.f32.mrb[0].mxu0
  %v306 = vadd.f32 %v131, %v305
  %v307 = vpop.f32.mrb[0].mxu0
  %v308 = vadd.f32 %v135, %v307
  %v309 = vpop.f32.mrb[0].mxu0
  %v310 = vadd.f32 %v131, %v309
  %v311 = vpop.f32.mrb[0].mxu0
  %v312 = vadd.f32 %v135, %v311
  %313 = vmatprep.mubr.bf16.mxu0 0
  %314 = vmatmul.mubr.bf16.gmra.mrb[0].mxu0 %v93
  %v315 = vpop.f32.mrb[0].mxu0
  %v316 = vadd.f32 %v131, %v315
  %v317 = vpop.f32.mrb[0].mxu0
  %v318 = vadd.f32 %v135, %v317
  %v319 = vpop.f32.mrb[0].mxu0
  %v320 = vadd.f32 %v131, %v319
  %v321 = vpop.f32.mrb[0].mxu0
  %v322 = vadd.f32 %v135, %v321
  %323 = vdwg.mxu0
  %324 = vmatprep.subr.bf16.mxu0 0
  %325 = vmatpush1.bf16.msra.mxu0 %v225
  %326 = vmatprep.subr.bf16.mxu0 0
  %327 = vmatpush1.bf16.msra.mxu0 %v228
  %328 = vmatprep.subr.bf16.mxu0 0
  %329 = vmatpush1.bf16.msra.mxu0 %v231
  %330 = vmatprep.subr.bf16.mxu0 0
  %331 = vmatpush1.bf16.msra.mxu0 %v234
  %332 = vmatprep.subr.bf16.mxu0 0
  %333 = vmatpush1.bf16.msra.mxu0 %v237
  %334 = vmatprep.subr.bf16.mxu0 0
  %335 = vmatpush1.bf16.msra.mxu0 %v240
  %336 = vmatprep.subr.bf16.mxu0 0
  %337 = vmatpush1.bf16.msra.mxu0 %v243
  %338 = vmatprep.subr.bf16.mxu0 0
  %339 = vmatpush1.bf16.msra.mxu0 %v246
  %340 = vmatprep.subr.bf16.mxu0 0
  %341 = vmatpush1.bf16.msra.mxu0 0
  %342 = vmatprep.subr.bf16.mxu0 0
  %343 = vmatpush1.bf16.msra.mxu0 0
  %344 = vmatprep.subr.bf16.mxu0 0
  %345 = vmatpush1.bf16.msra.mxu0 0
  %346 = vmatprep.subr.bf16.mxu0 0
  %347 = vmatpush1.bf16.msra.mxu0 0
  %348 = vmatprep.subr.bf16.mxu0 0
  %349 = vmatpush1.bf16.msra.mxu0 0
  %350 = vmatprep.subr.bf16.mxu0 0
  %351 = vmatpush1.bf16.msra.mxu0 0
  %352 = vmatprep.subr.bf16.mxu0 0
  %353 = vmatpush1.bf16.msra.mxu0 0
  %354 = vmatprep.subr.bf16.mxu0 0
  %355 = vmatpush1.bf16.msra.mxu0 0
  %356 = vmatprep.mubr.bf16.mxu0 0
  %357 = vmatmul.mubr.bf16.gmra.mrb[0].mxu0 %v92
  %v358 = vpop.f32.mrb[0].mxu0
  %v359 = vadd.f32 %v139, %v358
  %v360 = vpop.f32.mrb[0].mxu0
  %v361 = vpop.f32.mrb[0].mxu0
  %v362 = vadd.f32 %v139, %v361
  %v363 = vpop.f32.mrb[0].mxu0
  %364 = vmatprep.mubr.bf16.mxu0 0
  %365 = vmatmul.mubr.bf16.gmra.mrb[0].mxu0 %v93
  %v366 = vpop.f32.mrb[0].mxu0
  %v367 = vadd.f32 %v139, %v366
  %v368 = vpop.f32.mrb[0].mxu0
  %v369 = vpop.f32.mrb[0].mxu0
  %v370 = vadd.f32 %v139, %v369
  %v371 = vpop.f32.mrb[0].mxu0
  %372 = vdwg.mxu0
  %v373 = vpack.c.bf16 %v310, %v306
  %v374 = vpack.c.bf16 %v312, %v308
  %v375 = vpack.c.bf16 %v362, %v359
  %v376 = vpack.c.bf16 %v320, %v316
  %v377 = vpack.c.bf16 %v322, %v318
  %v378 = vpack.c.bf16 %v370, %v367
  %v385 = vunpack.c.l.b16 %v373
  %v386 = vunpack.c.l.b16 %v374
  %v387 = vunpack.c.l.b16 %v375
  %v388 = vunpack.c.h.b16 %v373
  %v389 = vunpack.c.h.b16 %v374
  %v390 = vunpack.c.h.b16 %v375
  %v391 = vunpack.c.l.b16 %v376
  %v392 = vunpack.c.l.b16 %v377
  %v393 = vunpack.c.l.b16 %v378
  %v394 = vunpack.c.h.b16 %v376
  %v395 = vunpack.c.h.b16 %v377
  %v396 = vunpack.c.h.b16 %v378
  %v397 = vpack.c.b16 %v386, %v385
  %v398 = vpack.c.b16 %v387, %v387
  %v399 = vpack.c.b16 %v389, %v388
  %v400 = vpack.c.b16 %v390, %v390
  %v401 = vpack.c.b16 %v392, %v391
  %v402 = vpack.c.b16 %v393, %v393
  %v403 = vpack.c.b16 %v395, %v394
  %v404 = vpack.c.b16 %v396, %v396
  %413 = vst [vmem:[%s5] sm:$0xff] %v397
  %414 = vst [vmem:[%s5 + $0x8] sm:$0xf] %v398
  %415 = vst [vmem:[%s5 + $0xc] sm:$0xff] %v399
  %416 = vst [vmem:[%s5 + $0x14] sm:$0xf] %v400
  %417 = vst [vmem:[%s5 + $0x18] sm:$0xff] %v401
  %418 = vst [vmem:[%s5 + $0x20] sm:$0xf] %v402
  %419 = vst [vmem:[%s5 + $0x24] sm:$0xff] %v403
  %420 = vst [vmem:[%s5 + $0x2c] sm:$0xf] %v404
  // Predicated region
  $region22: #{_denoiser_forward_impl.2} parent=0 // pred_check
    _
  $region23: #{_denoiser_forward_impl.2} parent=0 // pred_check_branch
    %422 = sbr.rel (0) target = $region25
  $region24: #{_denoiser_forward_impl.2} parent=0 // pred_region
    _
  $region25: #{_denoiser_forward_impl.2} parent=0 // pred_fallthru
    _
  // Predicated region
  $region26: #{_denoiser_forward_impl.2} parent=0 // pred_check
    _
  $region27: #{_denoiser_forward_impl.2} parent=0 // pred_check_branch
    %424 = sbr.rel (0) target = $region29
  $region28: #{_denoiser_forward_impl.2} parent=0 // pred_region
    _
  $region29: #{_denoiser_forward_impl.2} parent=0 // pred_fallthru
    _

// kernel: _denoiser_forward_impl.3
$region0: #{_denoiser_forward_impl.3}
  #allocation0 [shape = 'u32[]', space=smem, size = 0x4, offset = 0x4, fixed_abs, tag = 'smem constant byte address 0x4 - core index']
  #allocation1 [shape = 'u32[144,128]{1,0:T(1,128)}', space=vmem, size = 0x12000, scoped, tag = 'internal scratch']
  #allocation2 [shape = 'f32[2,16,1]{2,1,0:T(8,128)}', space=vmem, size = 0x4000, scoped, tag = 'scratch operand']
  #allocation3 [shape = 'f32[2,16,1]{2,1,0:T(8,128)}', space=vmem, size = 0x4000, scoped, tag = 'scratch operand']
  #allocation4 [shape = 'f32[2,16,64]{2,1,0:T(8,128)}', space=vmem, size = 0x4000, scoped, tag = 'scratch operand']
  %s0 = inlined_call_operand.vmem [shape: f32[2,16,128], index: 0, kind: input, shape index: {}]
  %s1 = inlined_call_operand.vmem [shape: bf16[2,2,16,64], index: 1, kind: input, shape index: {}]
  %s2 = inlined_call_operand.vmem [shape: bf16[2,2,16,64], index: 2, kind: input, shape index: {}]
  %s3 = inlined_call_operand.vmem [shape: bf16[2,2,16,64], index: 3, kind: input, shape index: {}]
  %s4 = inlined_call_operand.vmem [shape: bf16[2,64,128], index: 4, kind: input, shape index: {}]
  %s5 = inlined_call_operand.vmem [shape: f32[1,128], index: 5, kind: input, shape index: {}]
  %s6 = inlined_call_operand.vmem [shape: f32[1,128], index: 6, kind: input, shape index: {}]
  %s7 = inlined_call_operand.vmem [shape: f32[1,128], index: 7, kind: input, shape index: {}]
  %s8 = inlined_call_operand.vmem [shape: bf16[128,512], index: 8, kind: input, shape index: {}]
  %s9 = inlined_call_operand.vmem [shape: f32[1,512], index: 9, kind: input, shape index: {}]
  %s10 = inlined_call_operand.vmem [shape: bf16[512,128], index: 10, kind: input, shape index: {}]
  %s11 = inlined_call_operand.vmem [shape: f32[1,128], index: 11, kind: input, shape index: {}]
  %s12 = inlined_call_operand.vmem [shape: f32[1,128], index: 12, kind: input, shape index: {}]
  %s13 = inlined_call_operand.vmem [shape: f32[1,128], index: 13, kind: input, shape index: {}]
  %s14 = inlined_call_operand.hbm [shape: f32[2,16,128], index: 14, kind: output, shape index: {}]
  %s15 = sld [smem:[#allocation0]]
  $region97: #{_denoiser_forward_impl.3} parent=0
    _
  %s17 = ssub.s32 1, %s15
  %s18 = scalar_select 0, %s17, %s15
  $region1: #{_denoiser_forward_impl.3} parent=0
    #allocation5 [shape = 'u8[16384]{0}', space=vmem, size = 0x4000, scoped, tag = 'output window, operand 0']
    #allocation6 [shape = 's32[2]{0}', space=sflag, size = 0x8, scoped, tag = 'scoped memory for _denoiser_forward_impl.3']
    %19 = vsyncpa [#allocation6], 0
    %s20 = scalar_lea.sflag [#allocation6], 1
    %21 = vsyncpa %s20, 0
    loop: start=0, step=1, limit=4
    $region2: #{_denoiser_forward_impl.3} parent=1 // loop_pre_header
      _
    $region3: #{_denoiser_forward_impl.3} parent=1 // loop_header
      %s23 = sphi 0, %s27
      %p24 = scmp.ge.s32.totalorder %s23, 4
      %s30 = sphi 0, %s49
      %s31 = sphi 0, %s45
      %s32 = sphi 0, %s41
      %s33 = sphi 0, %s30
      %s34 = sphi 0, %s31
      %s35 = sphi 0, %s32
      %s36 = sphi 0, %s33
      %s37 = sphi 0, %s34
      %s38 = sphi 0, %s35
      %s54 = sphi 0, %s56
      %s57 = sphi 0, %s54
      %s58 = sphi 0, %s57
      %s74 = sphi 0, %s58
      %s82 = sphi 0, %s84
      %s85 = sphi 0, %s82
      %s86 = sphi 0, %s85
      %s102 = sphi 0, %s86
      %s110 = sphi 0, %s112
      %s113 = sphi 0, %s110
      %s114 = sphi 0, %s113
      %s130 = sphi 0, %s114
      %s138 = sphi 0, %s140
      %s141 = sphi 0, %s138
      %s142 = sphi 0, %s141
      %s158 = sphi 0, %s142
      %s162 = sphi 0, %s162
      %s164 = sphi 0, %s162
      %s165 = sphi 0, %s164
      %s179 = sphi 0, %s165
      %s183 = sphi 0, %s183
      %s185 = sphi 0, %s183
      %s186 = sphi 0, %s185
      %s200 = sphi 0, %s186
      %s204 = sphi 0, %s204
      %s206 = sphi 0, %s204
      %s207 = sphi 0, %s206
      %s221 = sphi 0, %s207
      %s225 = sphi 0, %s225
      %s227 = sphi 0, %s225
      %s228 = sphi 0, %s227
      %s242 = sphi 0, %s228
      %s246 = sphi 0, %s246
      %s248 = sphi 0, %s246
      %s249 = sphi 0, %s248
      %s263 = sphi 0, %s249
      %s267 = sphi 0, %s267
      %s269 = sphi 0, %s267
      %s270 = sphi 0, %s269
      %s284 = sphi 0, %s270
      %s288 = sphi 0, %s288
      %s290 = sphi 0, %s288
      %s291 = sphi 0, %s290
      %s305 = sphi 0, %s291
      %s309 = sphi 0, %s309
      %s311 = sphi 0, %s309
      %s312 = sphi 0, %s311
      %s326 = sphi 0, %s312
      %s330 = sphi 0, %s330
      %s332 = sphi 0, %s330
      %s333 = sphi 0, %s332
      %s347 = sphi 0, %s333
      %s351 = sphi 0, %s351
      %s353 = sphi 0, %s351
      %s354 = sphi 0, %s353
      %s368 = sphi 0, %s354
      %s376 = sphi 0, %s378
      %s379 = sphi 0, %s376
      %s380 = sphi 0, %s379
      %s396 = sphi 0, %s380
    $region4: #{_denoiser_forward_impl.3} parent=1 // loop_header_branch
      %26 = sbr.rel (%p24) target = $region8
    $region5: #{_denoiser_forward_impl.3} parent=1 // loop_body
      %s28 = ssub.s32 %s23, 1
      %s29 = ssub.s32 %s23, 2
      %s39 = sadd.s32 1, %s32
      %p40 = scmp.ge.s32.totalorder %s39, 1
      %s41 = scalar_select %p40, 0, %s39
      %s42 = sadd.s32 1, %s31
      %s43 = scalar_select %p40, %s42, %s31
      %p44 = scmp.ge.s32.totalorder %s43, 1
      %s45 = scalar_select %p44, 0, %s43
      %s46 = sadd.s32 1, %s30
      %s47 = scalar_select %p44, %s46, %s30
      %p48 = scmp.ge.s32.totalorder %s47, 2
      %s49 = scalar_select %p48, 0, %s47
      %s50 = ssub.s32 %s30, %s49
      %s51 = ssub.s32 %s31, %s45
      %s52 = sor.u32 %s50, %s51
      %p53 = scmp.eq.s32.totalorder %s52, 0
      %s55 = sadd.s32 %s54, 1
      %s56 = scalar_select %p53, %s54, %s55
      %p59 = pneg %p53
      %p60 = scmp.eq.s32.totalorder %s23, 1
      %p61 = por %p59, %p60
      %p62 = scmp.ne.s32.totalorder %s54, %s57
      %p63 = scmp.eq.s32.totalorder %s23, 0
      %p64 = por %p62, %p63
      %p65 = scmp.ne.s32.totalorder %s54, %s57
      %p66 = scmp.eq.s32.totalorder %s28, 1
      %p67 = por %p65, %p66
      %p68 = scmp.ne.s32.totalorder %s57, %s58
      %p69 = scmp.eq.s32.totalorder %s28, 0
      %p70 = por %p68, %p69
      %p71 = scmp.ne.s32.totalorder %s57, %s58
      %p72 = scmp.eq.s32.totalorder %s29, 1
      %p73 = por %p71, %p72
      %p75 = scmp.ne.s32.totalorder %s58, %s74
      %p76 = scmp.eq.s32.totalorder %s29, 0
      %p77 = por %p75, %p76
      %s78 = ssub.s32 %s30, %s49
      %s79 = ssub.s32 %s31, %s45
      %s80 = sor.u32 %s78, %s79
      %p81 = scmp.eq.s32.totalorder %s80, 0
      %s83 = sadd.s32 %s82, 1
      %s84 = scalar_select %p81, %s82, %s83
      %p87 = pneg %p81
      %p88 = scmp.eq.s32.totalorder %s23, 1
      %p89 = por %p87, %p88
      %p90 = scmp.ne.s32.totalorder %s82, %s85
      %p91 = scmp.eq.s32.totalorder %s23, 0
      %p92 = por %p90, %p91
      %p93 = scmp.ne.s32.totalorder %s82, %s85
      %p94 = scmp.eq.s32.totalorder %s28, 1
      %p95 = por %p93, %p94
      %p96 = scmp.ne.s32.totalorder %s85, %s86
      %p97 = scmp.eq.s32.totalorder %s28, 0
      %p98 = por %p96, %p97
      %p99 = scmp.ne.s32.totalorder %s85, %s86
      %p100 = scmp.eq.s32.totalorder %s29, 1
      %p101 = por %p99, %p100
      %p103 = scmp.ne.s32.totalorder %s86, %s102
      %p104 = scmp.eq.s32.totalorder %s29, 0
      %p105 = por %p103, %p104
      %s106 = ssub.s32 %s30, %s49
      %s107 = ssub.s32 %s32, %s41
      %s108 = sor.u32 %s106, %s107
      %p109 = scmp.eq.s32.totalorder %s108, 0
      %s111 = sadd.s32 %s110, 1
      %s112 = scalar_select %p109, %s110, %s111
      %p115 = pneg %p109
      %p116 = scmp.eq.s32.totalorder %s23, 1
      %p117 = por %p115, %p116
      %p118 = scmp.ne.s32.totalorder %s110, %s113
      %p119 = scmp.eq.s32.totalorder %s23, 0
      %p120 = por %p118, %p119
      %p121 = scmp.ne.s32.totalorder %s110, %s113
      %p122 = scmp.eq.s32.totalorder %s28, 1
      %p123 = por %p121, %p122
      %p124 = scmp.ne.s32.totalorder %s113, %s114
      %p125 = scmp.eq.s32.totalorder %s28, 0
      %p126 = por %p124, %p125
      %p127 = scmp.ne.s32.totalorder %s113, %s114
      %p128 = scmp.eq.s32.totalorder %s29, 1
      %p129 = por %p127, %p128
      %p131 = scmp.ne.s32.totalorder %s114, %s130
      %p132 = scmp.eq.s32.totalorder %s29, 0
      %p133 = por %p131, %p132
      %s134 = ssub.s32 %s30, %s49
      %s135 = ssub.s32 %s32, %s41
      %s136 = sor.u32 %s134, %s135
      %p137 = scmp.eq.s32.totalorder %s136, 0
      %s139 = sadd.s32 %s138, 1
      %s140 = scalar_select %p137, %s138, %s139
      %p143 = pneg %p137
      %p144 = scmp.eq.s32.totalorder %s23, 1
      %p145 = por %p143, %p144
      %p146 = scmp.ne.s32.totalorder %s138, %s141
      %p147 = scmp.eq.s32.totalorder %s23, 0
      %p148 = por %p146, %p147
      %p149 = scmp.ne.s32.totalorder %s138, %s141
      %p150 = scmp.eq.s32.totalorder %s28, 1
      %p151 = por %p149, %p150
      %p152 = scmp.ne.s32.totalorder %s141, %s142
      %p153 = scmp.eq.s32.totalorder %s28, 0
      %p154 = por %p152, %p153
      %p155 = scmp.ne.s32.totalorder %s141, %s142
      %p156 = scmp.eq.s32.totalorder %s29, 1
      %p157 = por %p155, %p156
      %p159 = scmp.ne.s32.totalorder %s142, %s158
      %p160 = scmp.eq.s32.totalorder %s29, 0
      %p161 = por %p159, %p160
      %s163 = sadd.s32 %s162, 1
      %p166 = scmp.eq.s32.totalorder %s23, 1
      %p167 = scmp.ne.s32.totalorder %s162, %s164
      %p168 = scmp.eq.s32.totalorder %s23, 0
      %p169 = por %p167, %p168
      %p170 = scmp.ne.s32.totalorder %s162, %s164
      %p171 = scmp.eq.s32.totalorder %s28, 1
      %p172 = por %p170, %p171
      %p173 = scmp.ne.s32.totalorder %s164, %s165
      %p174 = scmp.eq.s32.totalorder %s28, 0
      %p175 = por %p173, %p174
      %p176 = scmp.ne.s32.totalorder %s164, %s165
      %p177 = scmp.eq.s32.totalorder %s29, 1
      %p178 = por %p176, %p177
      %p180 = scmp.ne.s32.totalorder %s165, %s179
      %p181 = scmp.eq.s32.totalorder %s29, 0
      %p182 = por %p180, %p181
      %s184 = sadd.s32 %s183, 1
      %p187 = scmp.eq.s32.totalorder %s23, 1
      %p188 = scmp.ne.s32.totalorder %s183, %s185
      %p189 = scmp.eq.s32.totalorder %s23, 0
      %p190 = por %p188, %p189
      %p191 = scmp.ne.s32.totalorder %s183, %s185
      %p192 = scmp.eq.s32.totalorder %s28, 1
      %p193 = por %p191, %p192
      %p194 = scmp.ne.s32.totalorder %s185, %s186
      %p195 = scmp.eq.s32.totalorder %s28, 0
      %p196 = por %p194, %p195
      %p197 = scmp.ne.s32.totalorder %s185, %s186
      %p198 = scmp.eq.s32.totalorder %s29, 1
      %p199 = por %p197, %p198
      %p201 = scmp.ne.s32.totalorder %s186, %s200
      %p202 = scmp.eq.s32.totalorder %s29, 0
      %p203 = por %p201, %p202
      %s205 = sadd.s32 %s204, 1
      %p208 = scmp.eq.s32.totalorder %s23, 1
      %p209 = scmp.ne.s32.totalorder %s204, %s206
      %p210 = scmp.eq.s32.totalorder %s23, 0
      %p211 = por %p209, %p210
      %p212 = scmp.ne.s32.totalorder %s204, %s206
      %p213 = scmp.eq.s32.totalorder %s28, 1
      %p214 = por %p212, %p213
      %p215 = scmp.ne.s32.totalorder %s206, %s207
      %p216 = scmp.eq.s32.totalorder %s28, 0
      %p217 = por %p215, %p216
      %p218 = scmp.ne.s32.totalorder %s206, %s207
      %p219 = scmp.eq.s32.totalorder %s29, 1
      %p220 = por %p218, %p219
      %p222 = scmp.ne.s32.totalorder %s207, %s221
      %p223 = scmp.eq.s32.totalorder %s29, 0
      %p224 = por %p222, %p223
      %s226 = sadd.s32 %s225, 1
      %p229 = scmp.eq.s32.totalorder %s23, 1
      %p230 = scmp.ne.s32.totalorder %s225, %s227
      %p231 = scmp.eq.s32.totalorder %s23, 0
      %p232 = por %p230, %p231
      %p233 = scmp.ne.s32.totalorder %s225, %s227
      %p234 = scmp.eq.s32.totalorder %s28, 1
      %p235 = por %p233, %p234
      %p236 = scmp.ne.s32.totalorder %s227, %s228
      %p237 = scmp.eq.s32.totalorder %s28, 0
      %p238 = por %p236, %p237
      %p239 = scmp.ne.s32.totalorder %s227, %s228
      %p240 = scmp.eq.s32.totalorder %s29, 1
      %p241 = por %p239, %p240
      %p243 = scmp.ne.s32.totalorder %s228, %s242
      %p244 = scmp.eq.s32.totalorder %s29, 0
      %p245 = por %p243, %p244
      %s247 = sadd.s32 %s246, 1
      %p250 = scmp.eq.s32.totalorder %s23, 1
      %p251 = scmp.ne.s32.totalorder %s246, %s248
      %p252 = scmp.eq.s32.totalorder %s23, 0
      %p253 = por %p251, %p252
      %p254 = scmp.ne.s32.totalorder %s246, %s248
      %p255 = scmp.eq.s32.totalorder %s28, 1
      %p256 = por %p254, %p255
      %p257 = scmp.ne.s32.totalorder %s248, %s249
      %p258 = scmp.eq.s32.totalorder %s28, 0
      %p259 = por %p257, %p258
      %p260 = scmp.ne.s32.totalorder %s248, %s249
      %p261 = scmp.eq.s32.totalorder %s29, 1
      %p262 = por %p260, %p261
      %p264 = scmp.ne.s32.totalorder %s249, %s263
      %p265 = scmp.eq.s32.totalorder %s29, 0
      %p266 = por %p264, %p265
      %s268 = sadd.s32 %s267, 1
      %p271 = scmp.eq.s32.totalorder %s23, 1
      %p272 = scmp.ne.s32.totalorder %s267, %s269
      %p273 = scmp.eq.s32.totalorder %s23, 0
      %p274 = por %p272, %p273
      %p275 = scmp.ne.s32.totalorder %s267, %s269
      %p276 = scmp.eq.s32.totalorder %s28, 1
      %p277 = por %p275, %p276
      %p278 = scmp.ne.s32.totalorder %s269, %s270
      %p279 = scmp.eq.s32.totalorder %s28, 0
      %p280 = por %p278, %p279
      %p281 = scmp.ne.s32.totalorder %s269, %s270
      %p282 = scmp.eq.s32.totalorder %s29, 1
      %p283 = por %p281, %p282
      %p285 = scmp.ne.s32.totalorder %s270, %s284
      %p286 = scmp.eq.s32.totalorder %s29, 0
      %p287 = por %p285, %p286
      %s289 = sadd.s32 %s288, 1
      %p292 = scmp.eq.s32.totalorder %s23, 1
      %p293 = scmp.ne.s32.totalorder %s288, %s290
      %p294 = scmp.eq.s32.totalorder %s23, 0
      %p295 = por %p293, %p294
      %p296 = scmp.ne.s32.totalorder %s288, %s290
      %p297 = scmp.eq.s32.totalorder %s28, 1
      %p298 = por %p296, %p297
      %p299 = scmp.ne.s32.totalorder %s290, %s291
      %p300 = scmp.eq.s32.totalorder %s28, 0
      %p301 = por %p299, %p300
      %p302 = scmp.ne.s32.totalorder %s290, %s291
      %p303 = scmp.eq.s32.totalorder %s29, 1
      %p304 = por %p302, %p303
      %p306 = scmp.ne.s32.totalorder %s291, %s305
      %p307 = scmp.eq.s32.totalorder %s29, 0
      %p308 = por %p306, %p307
      %s310 = sadd.s32 %s309, 1
      %p313 = scmp.eq.s32.totalorder %s23, 1
      %p314 = scmp.ne.s32.totalorder %s309, %s311
      %p315 = scmp.eq.s32.totalorder %s23, 0
      %p316 = por %p314, %p315
      %p317 = scmp.ne.s32.totalorder %s309, %s311
      %p318 = scmp.eq.s32.totalorder %s28, 1
      %p319 = por %p317, %p318
      %p320 = scmp.ne.s32.totalorder %s311, %s312
      %p321 = scmp.eq.s32.totalorder %s28, 0
      %p322 = por %p320, %p321
      %p323 = scmp.ne.s32.totalorder %s311, %s312
      %p324 = scmp.eq.s32.totalorder %s29, 1
      %p325 = por %p323, %p324
      %p327 = scmp.ne.s32.totalorder %s312, %s326
      %p328 = scmp.eq.s32.totalorder %s29, 0
      %p329 = por %p327, %p328
      %s331 = sadd.s32 %s330, 1
      %p334 = scmp.eq.s32.totalorder %s23, 1
      %p335 = scmp.ne.s32.totalorder %s330, %s332
      %p336 = scmp.eq.s32.totalorder %s23, 0
      %p337 = por %p335, %p336
      %p338 = scmp.ne.s32.totalorder %s330, %s332
      %p339 = scmp.eq.s32.totalorder %s28, 1
      %p340 = por %p338, %p339
      %p341 = scmp.ne.s32.totalorder %s332, %s333
      %p342 = scmp.eq.s32.totalorder %s28, 0
      %p343 = por %p341, %p342
      %p344 = scmp.ne.s32.totalorder %s332, %s333
      %p345 = scmp.eq.s32.totalorder %s29, 1
      %p346 = por %p344, %p345
      %p348 = scmp.ne.s32.totalorder %s333, %s347
      %p349 = scmp.eq.s32.totalorder %s29, 0
      %p350 = por %p348, %p349
      %s352 = sadd.s32 %s351, 1
      %p355 = scmp.eq.s32.totalorder %s23, 1
      %p356 = scmp.ne.s32.totalorder %s351, %s353
      %p357 = scmp.eq.s32.totalorder %s23, 0
      %p358 = por %p356, %p357
      %p359 = scmp.ne.s32.totalorder %s351, %s353
      %p360 = scmp.eq.s32.totalorder %s28, 1
      %p361 = por %p359, %p360
      %p362 = scmp.ne.s32.totalorder %s353, %s354
      %p363 = scmp.eq.s32.totalorder %s28, 0
      %p364 = por %p362, %p363
      %p365 = scmp.ne.s32.totalorder %s353, %s354
      %p366 = scmp.eq.s32.totalorder %s29, 1
      %p367 = por %p365, %p366
      %p369 = scmp.ne.s32.totalorder %s354, %s368
      %p370 = scmp.eq.s32.totalorder %s29, 0
      %p371 = por %p369, %p370
      %s372 = ssub.s32 %s30, %s49
      %s373 = ssub.s32 %s31, %s45
      %s374 = sor.u32 %s372, %s373
      %p375 = scmp.eq.s32.totalorder %s374, 0
      %s377 = sadd.s32 %s376, 1
      %s378 = scalar_select %p375, %s376, %s377
      %p381 = pneg %p375
      %p382 = scmp.eq.s32.totalorder %s23, 1
      %p383 = por %p381, %p382
      %p384 = scmp.ne.s32.totalorder %s376, %s379
      %p385 = scmp.eq.s32.totalorder %s23, 0
      %p386 = por %p384, %p385
      %p387 = scmp.ne.s32.totalorder %s376, %s379
      %p388 = scmp.eq.s32.totalorder %s28, 1
      %p389 = por %p387, %p388
      %p390 = scmp.ne.s32.totalorder %s379, %s380
      %p391 = scmp.eq.s32.totalorder %s28, 0
      %p392 = por %p390, %p391
      %p393 = scmp.ne.s32.totalorder %s379, %s380
      %p394 = scmp.eq.s32.totalorder %s29, 1
      %p395 = por %p393, %p394
      %p397 = scmp.ne.s32.totalorder %s380, %s396
      %p398 = scmp.eq.s32.totalorder %s29, 0
      %p399 = por %p397, %p398
      %p400 = scmp.le.s32.totalorder 1, %s23
      %p401 = scmp.lt.s32.totalorder %s23, 3
      %p402 = pnand %p400, %p401
      %p403 = pneg %p402
      // Predicated region
      $region9: #{_denoiser_forward_impl.3} parent=5 // pred_check
        _
      $region10: #{_denoiser_forward_impl.3} parent=5 // pred_check_branch
        %405 = sbr.rel (%p402) target = $region12
      $region11: #{_denoiser_forward_impl.3} parent=5 // pred_region
        %s406 = ssub.s32 %s23, 1
        // Predicated region
        $region13: #{_denoiser_forward_impl.3} parent=11 // pred_check
          %p407 = pneg %p175
        $region14: #{_denoiser_forward_impl.3} parent=11 // pred_check_branch
          %409 = sbr.rel (%p407) target = $region16
        $region15: #{_denoiser_forward_impl.3} parent=11 // pred_region
          _
        $region16: #{_denoiser_forward_impl.3} parent=11 // pred_fallthru
          _
        // Predicated region
        $region17: #{_denoiser_forward_impl.3} parent=11 // pred_check
          %p410 = pneg %p196
        $region18: #{_denoiser_forward_impl.3} parent=11 // pred_check_branch
          %412 = sbr.rel (%p410) target = $region20
        $region19: #{_denoiser_forward_impl.3} parent=11 // pred_region
          _
        $region20: #{_denoiser_forward_impl.3} parent=11 // pred_fallthru
          _
        // Predicated region
        $region21: #{_denoiser_forward_impl.3} parent=11 // pred_check
          %p413 = pneg %p217
        $region22: #{_denoiser_forward_impl.3} parent=11 // pred_check_branch
          %415 = sbr.rel (%p413) target = $region24
        $region23: #{_denoiser_forward_impl.3} parent=11 // pred_region
          _
        $region24: #{_denoiser_forward_impl.3} parent=11 // pred_fallthru
          _
        // Predicated region
        $region25: #{_denoiser_forward_impl.3} parent=11 // pred_check
          %p416 = pneg %p238
        $region26: #{_denoiser_forward_impl.3} parent=11 // pred_check_branch
          %418 = sbr.rel (%p416) target = $region28
        $region27: #{_denoiser_forward_impl.3} parent=11 // pred_region
          _
        $region28: #{_denoiser_forward_impl.3} parent=11 // pred_fallthru
          _
        // Predicated region
        $region29: #{_denoiser_forward_impl.3} parent=11 // pred_check
          %p419 = pneg %p259
        $region30: #{_denoiser_forward_impl.3} parent=11 // pred_check_branch
          %421 = sbr.rel (%p419) target = $region32
        $region31: #{_denoiser_forward_impl.3} parent=11 // pred_region
          _
        $region32: #{_denoiser_forward_impl.3} parent=11 // pred_fallthru
          _
        // Predicated region
        $region33: #{_denoiser_forward_impl.3} parent=11 // pred_check
          %p422 = pneg %p280
        $region34: #{_denoiser_forward_impl.3} parent=11 // pred_check_branch
          %424 = sbr.rel (%p422) target = $region36
        $region35: #{_denoiser_forward_impl.3} parent=11 // pred_region
          _
        $region36: #{_denoiser_forward_impl.3} parent=11 // pred_fallthru
          _
        // Predicated region
        $region37: #{_denoiser_forward_impl.3} parent=11 // pred_check
          %p425 = pneg %p301
        $region38: #{_denoiser_forward_impl.3} parent=11 // pred_check_branch
          %427 = sbr.rel (%p425) target = $region40
        $region39: #{_denoiser_forward_impl.3} parent=11 // pred_region
          _
        $region40: #{_denoiser_forward_impl.3} parent=11 // pred_fallthru
          _
        // Predicated region
        $region41: #{_denoiser_forward_impl.3} parent=11 // pred_check
          %p428 = pneg %p322
        $region42: #{_denoiser_forward_impl.3} parent=11 // pred_check_branch
          %430 = sbr.rel (%p428) target = $region44
        $region43: #{_denoiser_forward_impl.3} parent=11 // pred_region
          _
        $region44: #{_denoiser_forward_impl.3} parent=11 // pred_fallthru
          _
        // Predicated region
        $region45: #{_denoiser_forward_impl.3} parent=11 // pred_check
          %p431 = pneg %p343
        $region46: #{_denoiser_forward_impl.3} parent=11 // pred_check_branch
          %433 = sbr.rel (%p431) target = $region48
        $region47: #{_denoiser_forward_impl.3} parent=11 // pred_region
          _
        $region48: #{_denoiser_forward_impl.3} parent=11 // pred_fallthru
          _
        // Predicated region
        $region49: #{_denoiser_forward_impl.3} parent=11 // pred_check
          %p434 = pneg %p364
        $region50: #{_denoiser_forward_impl.3} parent=11 // pred_check_branch
          %436 = sbr.rel (%p434) target = $region52
        $region51: #{_denoiser_forward_impl.3} parent=11 // pred_region
          _
        $region52: #{_denoiser_forward_impl.3} parent=11 // pred_fallthru
          _
      $region12: #{_denoiser_forward_impl.3} parent=5 // pred_fallthru
        _
      %p437 = scmp.lt.s32.totalorder %s23, 2
      // Predicated region
      $region53: #{_denoiser_forward_impl.3} parent=5 // pred_check
        %p438 = pneg %p437
      $region54: #{_denoiser_forward_impl.3} parent=5 // pred_check_branch
        %440 = sbr.rel (%p438) target = $region56
      $region55: #{_denoiser_forward_impl.3} parent=5 // pred_region
        // Predicated region
        $region57: #{_denoiser_forward_impl.3} parent=55 // pred_check
          %p441 = pneg %p64
        $region58: #{_denoiser_forward_impl.3} parent=55 // pred_check_branch
          %443 = sbr.rel (%p441) target = $region60
        $region59: #{_denoiser_forward_impl.3} parent=55 // pred_region
          %s444 = smul.u32 2, %s31
          %p445 = scmp.lt.s32.totalorder %s30, 1
          %s446 = scalar_select %p445, %s30, 1
          %p447 = scmp.lt.s32.totalorder %s444, 1
          %s448 = scalar_select %p447, %s444, 1
          %s449 = smul.addr %s446, 2
          %s450 = sadd.s32 %s448, %s449
          %s451 = smul.addr %s450, 8
          %s452 = scalar_lea.vmem %s0, %s451
          %s453 = smul.u32 2, %s31
        $region60: #{_denoiser_forward_impl.3} parent=55 // pred_fallthru
          _
        // Predicated region
        $region61: #{_denoiser_forward_impl.3} parent=55 // pred_check
          %p454 = pneg %p92
        $region62: #{_denoiser_forward_impl.3} parent=55 // pred_check_branch
          %456 = sbr.rel (%p454) target = $region64
        $region63: #{_denoiser_forward_impl.3} parent=55 // pred_region
          %s457 = smul.u32 2, %s31
          %p458 = scmp.lt.s32.totalorder %s30, 1
          %s459 = scalar_select %p458, %s30, 1
          %p460 = scmp.lt.s32.totalorder %s457, 1
          %s461 = scalar_select %p460, %s457, 1
          %s462 = smul.addr %s459, 4
          %s463 = sadd.s32 %s461, %s462
          %s464 = smul.addr %s463, 4
          %s465 = scalar_lea.vmem %s1, %s464
          %s466 = smul.u32 2, %s31
        $region64: #{_denoiser_forward_impl.3} parent=55 // pred_fallthru
          _
        // Predicated region
        $region65: #{_denoiser_forward_impl.3} parent=55 // pred_check
          %p467 = pneg %p120
        $region66: #{_denoiser_forward_impl.3} parent=55 // pred_check_branch
          %469 = sbr.rel (%p467) target = $region68
        $region67: #{_denoiser_forward_impl.3} parent=55 // pred_region
          %s470 = smul.u32 2, %s32
          %p471 = scmp.lt.s32.totalorder %s30, 1
          %s472 = scalar_select %p471, %s30, 1
          %p473 = scmp.lt.s32.totalorder %s470, 1
          %s474 = scalar_select %p473, %s470, 1
          %s475 = smul.addr %s472, 4
          %s476 = sadd.s32 %s474, %s475
          %s477 = smul.addr %s476, 4
          %s478 = scalar_lea.vmem %s2, %s477
          %s479 = smul.u32 2, %s32
        $region68: #{_denoiser_forward_impl.3} parent=55 // pred_fallthru
          _
        // Predicated region
        $region69: #{_denoiser_forward_impl.3} parent=55 // pred_check
          %p480 = pneg %p148
        $region70: #{_denoiser_forward_impl.3} parent=55 // pred_check_branch
          %482 = sbr.rel (%p480) target = $region72
        $region71: #{_denoiser_forward_impl.3} parent=55 // pred_region
          %s483 = smul.u32 2, %s32
          %p484 = scmp.lt.s32.totalorder %s30, 1
          %s485 = scalar_select %p484, %s30, 1
          %p486 = scmp.lt.s32.totalorder %s483, 1
          %s487 = scalar_select %p486, %s483, 1
          %s488 = smul.addr %s485, 4
          %s489 = sadd.s32 %s487, %s488
          %s490 = smul.addr %s489, 4
          %s491 = scalar_lea.vmem %s3, %s490
          %s492 = smul.u32 2, %s32
        $region72: #{_denoiser_forward_impl.3} parent=55 // pred_fallthru
          _
      $region56: #{_denoiser_forward_impl.3} parent=5 // pred_fallthru
        _
      %p493 = scmp.le.s32.totalorder 1, %s23
      %p494 = scmp.lt.s32.totalorder %s23, 3
      %p495 = pnand %p493, %p494
      %p496 = pneg %p495
      // Predicated region
      $region73: #{_denoiser_forward_impl.3} parent=5 // pred_check
        _
      $region74: #{_denoiser_forward_impl.3} parent=5 // pred_check_branch
        %498 = sbr.rel (%p495) target = $region76
      $region75: #{_denoiser_forward_impl.3} parent=5 // pred_region
        %s499 = ssub.s32 %s23, 1
        %s500 = smul.u32 2, %s34
        %p501 = scmp.lt.s32.totalorder %s33, 1
        %s502 = scalar_select %p501, %s33, 1
        %p503 = scmp.lt.s32.totalorder %s500, 1
        %s504 = scalar_select %p503, %s500, 1
        %s505 = smul.addr %s502, 2
        %s506 = sadd.s32 %s504, %s505
        %s507 = smul.addr %s506, 8
        %s508 = scalar_lea.vmem %s0, %s507
        %p509 = pneg %p70
        %p510 = pneg %p67
        %s511 = smul.u32 2, %s34
        %p512 = scmp.lt.s32.totalorder %s33, 1
        %s513 = scalar_select %p512, %s33, 1
        %p514 = scmp.lt.s32.totalorder %s511, 1
        %s515 = scalar_select %p514, %s511, 1
        %s516 = smul.addr %s513, 4
        %s517 = sadd.s32 %s515, %s516
        %s518 = smul.addr %s517, 4
        %s519 = scalar_lea.vmem %s1, %s518
        %p520 = pneg %p98
        %p521 = pneg %p95
        %s522 = smul.u32 2, %s35
        %p523 = scmp.lt.s32.totalorder %s33, 1
        %s524 = scalar_select %p523, %s33, 1
        %p525 = scmp.lt.s32.totalorder %s522, 1
        %s526 = scalar_select %p525, %s522, 1
        %s527 = smul.addr %s524, 4
        %s528 = sadd.s32 %s526, %s527
        %s529 = smul.addr %s528, 4
        %s530 = scalar_lea.vmem %s2, %s529
        %p531 = pneg %p126
        %p532 = pneg %p123
        %s533 = smul.u32 2, %s35
        %p534 = scmp.lt.s32.totalorder %s33, 1
        %s535 = scalar_select %p534, %s33, 1
        %p536 = scmp.lt.s32.totalorder %s533, 1
        %s537 = scalar_select %p536, %s533, 1
        %s538 = smul.addr %s535, 4
        %s539 = sadd.s32 %s537, %s538
        %s540 = smul.addr %s539, 4
        %s541 = scalar_lea.vmem %s3, %s540
        %p542 = pneg %p154
        %p543 = pneg %p151
        %p544 = pneg %p175
        %p545 = pneg %p172
        %p546 = pneg %p196
        %p547 = pneg %p193
        %p548 = pneg %p217
        %p549 = pneg %p214
        %p550 = pneg %p238
        %p551 = pneg %p235
        %p552 = pneg %p259
        %p553 = pneg %p256
        %p554 = pneg %p280
        %p555 = pneg %p277
        %p556 = pneg %p301
        %p557 = pneg %p298
        %p558 = pneg %p322
        %p559 = pneg %p319
        %p560 = pneg %p343
        %p561 = pneg %p340
        %p562 = pneg %p364
        %p563 = pneg %p361
        %p564 = pneg %p392
        %p565 = pneg %p389
        %s566 = sand.u32 %s379, 1
        %s567 = scalar_lea.sflag [#allocation6], %s566
        %s568 = sand.u32 %s379, 1
        %s569 = smul.addr %s568, 16
        %s570 = scalar_lea.vmem [#allocation5], %s569
        %s571 = smul.u32 2, %s34
        %p572 = scmp.lt.s32.totalorder %s33, 1
        %s573 = scalar_select %p572, %s33, 1
        %p574 = scmp.lt.s32.totalorder %s571, 1
        %s575 = scalar_select %p574, %s571, 1
        %s576 = smul.addr %s573, 2
        %s577 = sadd.s32 %s575, %s576
        %s578 = smul.addr %s577, 8
        %s579 = scalar_lea.vmem %s0, %s578
        %s580 = smul.u32 2, %s34
        %s581 = smul.u32 2, %s34
        %p582 = scmp.lt.s32.totalorder %s33, 1
        %s583 = scalar_select %p582, %s33, 1
        %p584 = scmp.lt.s32.totalorder %s581, 1
        %s585 = scalar_select %p584, %s581, 1
        %s586 = smul.addr %s583, 4
        %s587 = sadd.s32 %s585, %s586
        %s588 = smul.addr %s587, 4
        %s589 = scalar_lea.vmem %s1, %s588
        %s590 = smul.u32 2, %s34
        %s591 = smul.u32 2, %s35
        %p592 = scmp.lt.s32.totalorder %s33, 1
        %s593 = scalar_select %p592, %s33, 1
        %p594 = scmp.lt.s32.totalorder %s591, 1
        %s595 = scalar_select %p594, %s591, 1
        %s596 = smul.addr %s593, 4
        %s597 = sadd.s32 %s595, %s596
        %s598 = smul.addr %s597, 4
        %s599 = scalar_lea.vmem %s2, %s598
        %s600 = smul.u32 2, %s35
        %s601 = smul.u32 2, %s35
        %p602 = scmp.lt.s32.totalorder %s33, 1
        %s603 = scalar_select %p602, %s33, 1
        %p604 = scmp.lt.s32.totalorder %s601, 1
        %s605 = scalar_select %p604, %s601, 1
        %s606 = smul.addr %s603, 4
        %s607 = sadd.s32 %s605, %s606
        %s608 = smul.addr %s607, 4
        %s609 = scalar_lea.vmem %s3, %s608
        %s610 = smul.u32 2, %s35
        %s611 = smul.u32 2, %s34
        %p613 = scmp.eq.s32.totalorder %s35, 0
        // Predicated region
        $region77: #{_denoiser_forward_impl.3} parent=75 // pred_check
          %p614 = pneg %p613
        $region78: #{_denoiser_forward_impl.3} parent=75 // pred_check_branch
          %616 = sbr.rel (%p614) target = $region80
        $region79: #{_denoiser_forward_impl.3} parent=75 // pred_region
          %vm617 = vcmask 7168
          %618 = vst.msk [vmem:[#allocation2] sm:$0xff] %vm617, -inf
          %619 = vst.msk [vmem:[#allocation2 + $0x8] sm:$0xff] %vm617, -inf
          %620 = vst.msk [vmem:[#allocation2 + $0x10] sm:$0xff] %vm617, -inf
          %621 = vst.msk [vmem:[#allocation2 + $0x18] sm:$0xff] %vm617, -inf
          %622 = vst.msk [vmem:[#allocation3] sm:$0xff] %vm617, 0.0
          %623 = vst.msk [vmem:[#allocation3 + $0x8] sm:$0xff] %vm617, 0.0
          %624 = vst.msk [vmem:[#allocation3 + $0x10] sm:$0xff] %vm617, 0.0
          %625 = vst.msk [vmem:[#allocation3 + $0x18] sm:$0xff] %vm617, 0.0
          %vm626 = vcmask 523264
          %627 = vst.msk [vmem:[#allocation4] sm:$0xff] %vm626, 0.0
          %628 = vst.msk [vmem:[#allocation4 + $0x8] sm:$0xff] %vm626, 0.0
          %629 = vst.msk [vmem:[#allocation4 + $0x10] sm:$0xff] %vm626, 0.0
          %630 = vst.msk [vmem:[#allocation4 + $0x18] sm:$0xff] %vm626, 0.0
        $region80: #{_denoiser_forward_impl.3} parent=75 // pred_fallthru
          _
        %v631 = vld [vmem:[%s589] sm:$0xf]
        %v632 = vld [vmem:[%s589 + $0x4] sm:$0xf]
        %v633 = vld [vmem:[%s589 + $0x8] sm:$0xf]
        %v634 = vld [vmem:[%s589 + $0xc] sm:$0xf]
        %v635 = vld [vmem:[%s599] sm:$0xf]
        %v636 = vld [vmem:[%s599 + $0x4] sm:$0xf]
        %v637 = vld [vmem:[%s599 + $0x8] sm:$0xf]
        %v638 = vld [vmem:[%s599 + $0xc] sm:$0xf]
        %v639 = vld [vmem:[%s609] sm:$0xf]
        %v640 = vld [vmem:[%s609 + $0x4] sm:$0xf]
        %v641 = vld [vmem:[%s609 + $0x8] sm:$0xf]
        %v642 = vld [vmem:[%s609 + $0xc] sm:$0xf]
        %v645 = vunpack.c.l.b16 %v631
        %v646 = vunpack.c.l.b16 %v632
        %v647 = vpack.c.b16 %v646, %v645
        %v650 = vunpack.c.l.b16 %v635
        %v651 = vunpack.c.l.b16 %v636
        %v652 = vpack.c.b16 %v651, %v650
        %vm653 = vcmask 523264
        %v655 = vsel %vm653, %v647, 0
        %v658 = vsel %vm653, %v652, 0
        %660 = vmatprep.subr.bf16.mxu0 0
        %661 = vmatpush1.bf16.xpose.msra.mxu0 %v658
        %662 = vmatprep.subr.bf16.mxu0 0
        %663 = vmatpush1.bf16.xpose.msra.mxu0 0
        %664 = vmatprep.subr.bf16.mxu0 0
        %665 = vmatpush1.bf16.xpose.msra.mxu0 0
        %666 = vmatprep.subr.bf16.mxu0 0
        %667 = vmatpush1.bf16.xpose.msra.mxu0 0
        %668 = vmatprep.subr.bf16.mxu0 0
        %669 = vmatpush1.bf16.xpose.msra.mxu0 0
        %670 = vmatprep.subr.bf16.mxu0 0
        %671 = vmatpush1.bf16.xpose.msra.mxu0 0
        %672 = vmatprep.subr.bf16.mxu0 0
        %673 = vmatpush1.bf16.xpose.msra.mxu0 0
        %674 = vmatprep.subr.bf16.mxu0 0
        %675 = vmatpush1.bf16.xpose.msra.mxu0 0
        %676 = vmatprep.subr.bf16.mxu0 0
        %677 = vmatpush1.bf16.xpose.msra.mxu0 0
        %678 = vmatprep.subr.bf16.mxu0 0
        %679 = vmatpush1.bf16.xpose.msra.mxu0 0
        %680 = vmatprep.subr.bf16.mxu0 0
        %681 = vmatpush1.bf16.xpose.msra.mxu0 0
        %682 = vmatprep.subr.bf16.mxu0 0
        %683 = vmatpush1.bf16.xpose.msra.mxu0 0
        %684 = vmatprep.subr.bf16.mxu0 0
        %685 = vmatpush1.bf16.xpose.msra.mxu0 0
        %686 = vmatprep.subr.bf16.mxu0 0
        %687 = vmatpush1.bf16.xpose.msra.mxu0 0
        %688 = vmatprep.subr.bf16.mxu0 0
        %689 = vmatpush1.bf16.xpose.msra.mxu0 0
        %690 = vmatprep.subr.bf16.mxu0 0
        %691 = vmatpush1.bf16.xpose.msra.mxu0 0
        %692 = vmatprep.mubr.bf16.mxu0 0
        %693 = vmatmul.mubr.bf16.gmra.mrb[0].mxu0 %v655
        %v694 = vpop.f32.mrb[0].mxu0
        %v695 = vadd.f32 0.0, %v694
        %v696 = vpop.f32.mrb[0].mxu0
        %v697 = vpop.f32.mrb[0].mxu0
        %v698 = vadd.f32 0.0, %v697
        %v699 = vpop.f32.mrb[0].mxu0
        %700 = vdwg.mxu0
        %v703 = vunpack.c.l.b16 %v633
        %v704 = vunpack.c.l.b16 %v634
        %v705 = vpack.c.b16 %v704, %v703
        %v708 = vunpack.c.l.b16 %v637
        %v709 = vunpack.c.l.b16 %v638
        %v710 = vpack.c.b16 %v709, %v708
        %v712 = vsel %vm653, %v705, 0
        %v715 = vsel %vm653, %v710, 0
        %717 = vmatprep.subr.bf16.mxu0 0
        %718 = vmatpush1.bf16.xpose.msra.mxu0 %v715
        %719 = vmatprep.subr.bf16.mxu0 0
        %720 = vmatpush1.bf16.xpose.msra.mxu0 0
        %721 = vmatprep.subr.bf16.mxu0 0
        %722 = vmatpush1.bf16.xpose.msra.mxu0 0
        %723 = vmatprep.subr.bf16.mxu0 0
        %724 = vmatpush1.bf16.xpose.msra.mxu0 0
        %725 = vmatprep.subr.bf16.mxu0 0
        %726 = vmatpush1.bf16.xpose.msra.mxu0 0
        %727 = vmatprep.subr.bf16.mxu0 0
        %728 = vmatpush1.bf16.xpose.msra.mxu0 0
        %729 = vmatprep.subr.bf16.mxu0 0
        %730 = vmatpush1.bf16.xpose.msra.mxu0 0
        %731 = vmatprep.subr.bf16.mxu0 0
        %732 = vmatpush1.bf16.xpose.msra.mxu0 0
        %733 = vmatprep.subr.bf16.mxu0 0
        %734 = vmatpush1.bf16.xpose.msra.mxu0 0
        %735 = vmatprep.subr.bf16.mxu0 0
        %736 = vmatpush1.bf16.xpose.msra.mxu0 0
        %737 = vmatprep.subr.bf16.mxu0 0
        %738 = vmatpush1.bf16.xpose.msra.mxu0 0
        %739 = vmatprep.subr.bf16.mxu0 0
        %740 = vmatpush1.bf16.xpose.msra.mxu0 0
        %741 = vmatprep.subr.bf16.mxu0 0
        %742 = vmatpush1.bf16.xpose.msra.mxu0 0
        %743 = vmatprep.subr.bf16.mxu0 0
        %744 = vmatpush1.bf16.xpose.msra.mxu0 0
        %745 = vmatprep.subr.bf16.mxu0 0
        %746 = vmatpush1.bf16.xpose.msra.mxu0 0
        %747 = vmatprep.subr.bf16.mxu0 0
        %748 = vmatpush1.bf16.xpose.msra.mxu0 0
        %749 = vmatprep.mubr.bf16.mxu0 0
        %750 = vmatmul.mubr.bf16.gmra.mrb[0].mxu0 %v712
        %v751 = vpop.f32.mrb[0].mxu0
        %v752 = vadd.f32 0.0, %v751
        %v753 = vpop.f32.mrb[0].mxu0
        %v754 = vpop.f32.mrb[0].mxu0
        %v755 = vadd.f32 0.0, %v754
        %v756 = vpop.f32.mrb[0].mxu0
        %757 = vdwg.mxu0
        %v758 = vld [vmem:[#allocation2] sm:$0xff]
        %v759 = vld [vmem:[#allocation2 + $0x8] sm:$0xff]
        %v760 = vld [vmem:[#allocation2 + $0x10] sm:$0xff]
        %v761 = vld [vmem:[#allocation2 + $0x18] sm:$0xff]
        %vm762 = vcmask 130048
        %v763 = vsel %vm762, %v695, -inf
        %764 = vmax.xlane.f32.xlu0 %v763
        %v765 = vpop.xlane.xlu0 %764
        %v766 = vsel %vm762, %v698, -inf
        %767 = vmax.xlane.f32.xlu0 %v766
        %v768 = vpop.xlane.xlu0 %767
        %v769 = vsel %vm762, %v752, -inf
        %770 = vmax.xlane.f32.xlu0 %v769
        %v771 = vpop.xlane.xlu0 %770
        %v772 = vsel %vm762, %v755, -inf
        %773 = vmax.xlane.f32.xlu0 %v772
        %v774 = vpop.xlane.xlu0 %773
        %v775 = vmax.f32 %v758, %v765
        %v776 = vmax.f32 %v759, %v768
        %v777 = vmax.f32 %v760, %v771
        %v778 = vmax.f32 %v761, %v774
        %v779 = vsub.f32 %v758, %v775
        %v780 = vsub.f32 %v759, %v776
        %v781 = vsub.f32 %v760, %v777
        %v782 = vsub.f32 %v761, %v778
        %v783 = vmul.f32 %v779, 1.442695
        %v784 = vpow.pop %v783
        %v785 = vmul.f32 %v780, 1.442695
        %v786 = vpow.pop %v785
        %v787 = vmul.f32 %v781, 1.442695
        %v788 = vpow.pop %v787
        %v789 = vmul.f32 %v782, 1.442695
        %v790 = vpow.pop %v789
        %792 = vset.pattern.permute.xlu0 0
        %793 = vperm.xlu0 %792, %v775
        %v794 = vpop.permute.xlu0 %793
        %797 = vset.pattern.permute.xlu0 0
        %798 = vperm.xlu0 %797, %v776
        %v799 = vpop.permute.xlu0 %798
        %802 = vset.pattern.permute.xlu0 0
        %803 = vperm.xlu0 %802, %v777
        %v804 = vpop.permute.xlu0 %803
        %807 = vset.pattern.permute.xlu0 0
        %808 = vperm.xlu0 %807, %v778
        %v809 = vpop.permute.xlu0 %808
        %v811 = vsub.f32 %v695, %v794
        %v812 = vsub.f32 %v698, %v799
        %v813 = vsub.f32 %v752, %v804
        %v814 = vsub.f32 %v755, %v809
        %v815 = vmul.f32 %v811, 1.442695
        %v816 = vpow.pop %v815
        %v817 = vmul.f32 %v812, 1.442695
        %v818 = vpow.pop %v817
        %v819 = vmul.f32 %v813, 1.442695
        %v820 = vpow.pop %v819
        %v821 = vmul.f32 %v814, 1.442695
        %v822 = vpow.pop %v821
        %v823 = vld [vmem:[#allocation3] sm:$0xff]
        %v824 = vld [vmem:[#allocation3 + $0x8] sm:$0xff]
        %v825 = vld [vmem:[#allocation3 + $0x10] sm:$0xff]
        %v826 = vld [vmem:[#allocation3 + $0x18] sm:$0xff]
        %v827 = vmul.f32 %v784, %v823
        %v828 = vmul.f32 %v786, %v824
        %v829 = vmul.f32 %v788, %v825
        %v830 = vmul.f32 %v790, %v826
        %v831 = vsel %vm762, %v816, 0.0
        %832 = vadd.xlane.f32.xlu0 %v831
        %v833 = vpop.xlane.xlu0 %832
        %v834 = vsel %vm762, %v818, 0.0
        %835 = vadd.xlane.f32.xlu0 %v834
        %v836 = vpop.xlane.xlu0 %835
        %v837 = vsel %vm762, %v820, 0.0
        %838 = vadd.xlane.f32.xlu0 %v837
        %v839 = vpop.xlane.xlu0 %838
        %v840 = vsel %vm762, %v822, 0.0
        %841 = vadd.xlane.f32.xlu0 %v840
        %v842 = vpop.xlane.xlu0 %841
        %v843 = vadd.f32 %v827, %v833
        %v844 = vadd.f32 %v828, %v836
        %v845 = vadd.f32 %v829, %v839
        %v846 = vadd.f32 %v830, %v842
        %vm847 = vcmask 7168
        %848 = vst.msk [vmem:[#allocation3] sm:$0xff] %vm847, %v843
        %849 = vst.msk [vmem:[#allocation3 + $0x8] sm:$0xff] %vm847, %v844
        %850 = vst.msk [vmem:[#allocation3 + $0x10] sm:$0xff] %vm847, %v845
        %851 = vst.msk [vmem:[#allocation3 + $0x18] sm:$0xff] %vm847, %v846
        %v852 = vpack.c.bf16 %v818, %v816
        %v853 = vpack.c.bf16 %v822, %v820
        %v856 = vunpack.c.l.b16 %v639
        %v857 = vunpack.c.l.b16 %v640
        %v858 = vpack.c.b16 %v857, %v856
        %v861 = vsel %vm762, %v852, 0
        %863 = vmatprep.subr.bf16.mxu0 0
        %864 = vmatpush1.bf16.msra.mxu0 %v858
        %865 = vmatprep.subr.bf16.mxu0 0
        %866 = vmatpush1.bf16.msra.mxu0 0
        %867 = vmatprep.subr.bf16.mxu0 0
        %868 = vmatpush1.bf16.msra.mxu0 0
        %869 = vmatprep.subr.bf16.mxu0 0
        %870 = vmatpush1.bf16.msra.mxu0 0
        %871 = vmatprep.subr.bf16.mxu0 0
        %872 = vmatpush1.bf16.msra.mxu0 0
        %873 = vmatprep.subr.bf16.mxu0 0
        %874 = vmatpush1.bf16.msra.mxu0 0
        %875 = vmatprep.subr.bf16.mxu0 0
        %876 = vmatpush1.bf16.msra.mxu0 0
        %877 = vmatprep.subr.bf16.mxu0 0
        %878 = vmatpush1.bf16.msra.mxu0 0
        %879 = vmatprep.subr.bf16.mxu0 0
        %880 = vmatpush1.bf16.msra.mxu0 0
        %881 = vmatprep.subr.bf16.mxu0 0
        %882 = vmatpush1.bf16.msra.mxu0 0
        %883 = vmatprep.subr.bf16.mxu0 0
        %884 = vmatpush1.bf16.msra.mxu0 0
        %885 = vmatprep.subr.bf16.mxu0 0
        %886 = vmatpush1.bf16.msra.mxu0 0
        %887 = vmatprep.subr.bf16.mxu0 0
        %888 = vmatpush1.bf16.msra.mxu0 0
        %889 = vmatprep.subr.bf16.mxu0 0
        %890 = vmatpush1.bf16.msra.mxu0 0
        %891 = vmatprep.subr.bf16.mxu0 0
        %892 = vmatpush1.bf16.msra.mxu0 0
        %893 = vmatprep.subr.bf16.mxu0 0
        %894 = vmatpush1.bf16.msra.mxu0 0
        %895 = vmatprep.mubr.bf16.mxu0 0
        %896 = vmatmul.mubr.bf16.gmra.mrb[0].mxu0 %v861
        %v897 = vpop.f32.mrb[0].mxu0
        %v898 = vadd.f32 0.0, %v897
        %v899 = vpop.f32.mrb[0].mxu0
        %v900 = vpop.f32.mrb[0].mxu0
        %v901 = vadd.f32 0.0, %v900
        %v902 = vpop.f32.mrb[0].mxu0
        %903 = vdwg.mxu0
        %v906 = vunpack.c.l.b16 %v641
        %v907 = vunpack.c.l.b16 %v642
        %v908 = vpack.c.b16 %v907, %v906
        %v911 = vsel %vm762, %v853, 0
        %913 = vmatprep.subr.bf16.mxu0 0
        %914 = vmatpush1.bf16.msra.mxu0 %v908
        %915 = vmatprep.subr.bf16.mxu0 0
        %916 = vmatpush1.bf16.msra.mxu0 0
        %917 = vmatprep.subr.bf16.mxu0 0
        %918 = vmatpush1.bf16.msra.mxu0 0
        %919 = vmatprep.subr.bf16.mxu0 0
        %920 = vmatpush1.bf16.msra.mxu0 0
        %921 = vmatprep.subr.bf16.mxu0 0
        %922 = vmatpush1.bf16.msra.mxu0 0
        %923 = vmatprep.subr.bf16.mxu0 0
        %924 = vmatpush1.bf16.msra.mxu0 0
        %925 = vmatprep.subr.bf16.mxu0 0
        %926 = vmatpush1.bf16.msra.mxu0 0
        %927 = vmatprep.subr.bf16.mxu0 0
        %928 = vmatpush1.bf16.msra.mxu0 0
        %929 = vmatprep.subr.bf16.mxu0 0
        %930 = vmatpush1.bf16.msra.mxu0 0
        %931 = vmatprep.subr.bf16.mxu0 0
        %932 = vmatpush1.bf16.msra.mxu0 0
        %933 = vmatprep.subr.bf16.mxu0 0
        %934 = vmatpush1.bf16.msra.mxu0 0
        %935 = vmatprep.subr.bf16.mxu0 0
        %936 = vmatpush1.bf16.msra.mxu0 0
        %937 = vmatprep.subr.bf16.mxu0 0
        %938 = vmatpush1.bf16.msra.mxu0 0
        %939 = vmatprep.subr.bf16.mxu0 0
        %940 = vmatpush1.bf16.msra.mxu0 0
        %941 = vmatprep.subr.bf16.mxu0 0
        %942 = vmatpush1.bf16.msra.mxu0 0
        %943 = vmatprep.subr.bf16.mxu0 0
        %944 = vmatpush1.bf16.msra.mxu0 0
        %945 = vmatprep.mubr.bf16.mxu0 0
        %946 = vmatmul.mubr.bf16.gmra.mrb[0].mxu0 %v911
        %v947 = vpop.f32.mrb[0].mxu0
        %v948 = vadd.f32 0.0, %v947
        %v949 = vpop.f32.mrb[0].mxu0
        %v950 = vpop.f32.mrb[0].mxu0
        %v951 = vadd.f32 0.0, %v950
        %v952 = vpop.f32.mrb[0].mxu0
        %953 = vdwg.mxu0
        %v954 = vld [vmem:[#allocation4] sm:$0xff]
        %v955 = vld [vmem:[#allocation4 + $0x8] sm:$0xff]
        %v956 = vld [vmem:[#allocation4 + $0x10] sm:$0xff]
        %v957 = vld [vmem:[#allocation4 + $0x18] sm:$0xff]
        %959 = vset.pattern.permute.xlu0 0
        %960 = vperm.xlu0 %959, %v784
        %v961 = vpop.permute.xlu0 %960
        %964 = vset.pattern.permute.xlu0 0
        %965 = vperm.xlu0 %964, %v786
        %v966 = vpop.permute.xlu0 %965
        %969 = vset.pattern.permute.xlu0 0
        %970 = vperm.xlu0 %969, %v788
        %v971 = vpop.permute.xlu0 %970
        %974 = vset.pattern.permute.xlu0 0
        %975 = vperm.xlu0 %974, %v790
        %v976 = vpop.permute.xlu0 %975
        %v978 = vmul.f32 %v961, %v954
        %v979 = vmul.f32 %v966, %v955
        %v980 = vmul.f32 %v971, %v956
        %v981 = vmul.f32 %v976, %v957
        %v982 = vadd.f32 %v978, %v898
        %v983 = vadd.f32 %v979, %v901
        %v984 = vadd.f32 %v980, %v948
        %v985 = vadd.f32 %v981, %v951
        %986 = vst.msk [vmem:[#allocation4] sm:$0xff] %vm653, %v982
        %987 = vst.msk [vmem:[#allocation4 + $0x8] sm:$0xff] %vm653, %v983
        %988 = vst.msk [vmem:[#allocation4 + $0x10] sm:$0xff] %vm653, %v984
        %989 = vst.msk [vmem:[#allocation4 + $0x18] sm:$0xff] %vm653, %v985
        %990 = vst.msk [vmem:[#allocation2] sm:$0xff] %vm847, %v775
        %991 = vst.msk [vmem:[#allocation2 + $0x8] sm:$0xff] %vm847, %v776
        %992 = vst.msk [vmem:[#allocation2 + $0x10] sm:$0xff] %vm847, %v777
        %993 = vst.msk [vmem:[#allocation2 + $0x18] sm:$0xff] %vm847, %v778
        // Predicated region
        $region81: #{_denoiser_forward_impl.3} parent=75 // pred_check
          %p994 = pneg %p613
        $region82: #{_denoiser_forward_impl.3} parent=75 // pred_check_branch
          %996 = sbr.rel (%p994) target = $region84
        $region83: #{_denoiser_forward_impl.3} parent=75 // pred_region
          %v997 = vld [vmem:[%s579] sm:$0xff]
          %v998 = vld [vmem:[%s579 + $0x8] sm:$0xff]
          %v999 = vld [vmem:[#allocation3] sm:$0xff]
          %v1000 = vld [vmem:[#allocation3 + $0x8] sm:$0xff]
          %v1001 = vld [vmem:[#allocation3 + $0x10] sm:$0xff]
          %v1002 = vld [vmem:[#allocation3 + $0x18] sm:$0xff]
          %v1003 = vrcp.pop %v999
          %v1004 = vrcp.pop %v1000
          %v1005 = vrcp.pop %v1001
          %v1006 = vrcp.pop %v1002
          %v1007 = vld [vmem:[#allocation4] sm:$0xff]
          %v1008 = vld [vmem:[#allocation4 + $0x8] sm:$0xff]
          %v1009 = vld [vmem:[#allocation4 + $0x10] sm:$0xff]
          %v1010 = vld [vmem:[#allocation4 + $0x18] sm:$0xff]
          %1012 = vset.pattern.permute.xlu0 0
          %1013 = vperm.xlu0 %1012, %v1003
          %v1014 = vpop.permute.xlu0 %1013
          %1017 = vset.pattern.permute.xlu0 0
          %1018 = vperm.xlu0 %1017, %v1004
          %v1019 = vpop.permute.xlu0 %1018
          %1022 = vset.pattern.permute.xlu0 0
          %1023 = vperm.xlu0 %1022, %v1005
          %v1024 = vpop.permute.xlu0 %1023
          %1027 = vset.pattern.permute.xlu0 0
          %1028 = vperm.xlu0 %1027, %v1006
          %v1029 = vpop.permute.xlu0 %1028
          %v1031 = vmul.f32 %v1007, %v1014
          %v1032 = vmul.f32 %v1008, %v1019
          %v1033 = vmul.f32 %v1009, %v1024
          %v1034 = vmul.f32 %v1010, %v1029
          %v1035 = vpack.c.bf16 %v1032, %v1031
          %v1036 = vpack.c.bf16 %v1034, %v1033
          %v1037 = vld [vmem:[%s4] sm:$0xf]
          %v1038 = vld [vmem:[%s4 + $0x4] sm:$0xf]
          %v1039 = vld [vmem:[%s4 + $0x8] sm:$0xf]
          %v1040 = vld [vmem:[%s4 + $0xc] sm:$0xf]
          %v1041 = vld [vmem:[%s4 + $0x10] sm:$0xf]
          %v1042 = vld [vmem:[%s4 + $0x14] sm:$0xf]
          %v1043 = vld [vmem:[%s4 + $0x18] sm:$0xf]
          %v1044 = vld [vmem:[%s4 + $0x1c] sm:$0xf]
          %v1045 = vld [vmem:[%s4 + $0x20] sm:$0xf]
          %v1046 = vld [vmem:[%s4 + $0x24] sm:$0xf]
          %v1047 = vld [vmem:[%s4 + $0x28] sm:$0xf]
          %v1048 = vld [vmem:[%s4 + $0x2c] sm:$0xf]
          %v1049 = vld [vmem:[%s4 + $0x30] sm:$0xf]
          %v1050 = vld [vmem:[%s4 + $0x34] sm:$0xf]
          %v1051 = vld [vmem:[%s4 + $0x38] sm:$0xf]
          %v1052 = vld [vmem:[%s4 + $0x3c] sm:$0xf]
          %v1061 = vunpack.c.l.b16 %v1037
          %v1062 = vunpack.c.l.b16 %v1038
          %v1063 = vunpack.c.l.b16 %v1039
          %v1064 = vunpack.c.l.b16 %v1040
          %v1065 = vunpack.c.l.b16 %v1041
          %v1066 = vunpack.c.l.b16 %v1042
          %v1067 = vunpack.c.l.b16 %v1043
          %v1068 = vunpack.c.l.b16 %v1044
          %v1069 = vpack.c.b16 %v1062, %v1061
          %v1070 = vpack.c.b16 %v1064, %v1063
          %v1071 = vpack.c.b16 %v1066, %v1065
          %v1072 = vpack.c.b16 %v1068, %v1067
          %v1078 = vsel %vm653, %v1035, 0
          %1080 = vmatprep.subr.bf16.mxu0 0
          %1081 = vmatpush1.bf16.msra.mxu0 %v1069
          %1082 = vmatprep.subr.bf16.mxu0 0
          %1083 = vmatpush1.bf16.msra.mxu0 %v1070
          %1084 = vmatprep.subr.bf16.mxu0 0
          %1085 = vmatpush1.bf16.msra.mxu0 %v1071
          %1086 = vmatprep.subr.bf16.mxu0 0
          %1087 = vmatpush1.bf16.msra.mxu0 %v1072
          %1088 = vmatprep.subr.bf16.mxu0 0
          %1089 = vmatpush1.bf16.msra.mxu0 0
          %1090 = vmatprep.subr.bf16.mxu0 0
          %1091 = vmatpush1.bf16.msra.mxu0 0
          %1092 = vmatprep.subr.bf16.mxu0 0
          %1093 = vmatpush1.bf16.msra.mxu0 0
          %1094 = vmatprep.subr.bf16.mxu0 0
          %1095 = vmatpush1.bf16.msra.mxu0 0
          %1096 = vmatprep.subr.bf16.mxu0 0
          %1097 = vmatpush1.bf16.msra.mxu0 0
          %1098 = vmatprep.subr.bf16.mxu0 0
          %1099 = vmatpush1.bf16.msra.mxu0 0
          %1100 = vmatprep.subr.bf16.mxu0 0
          %1101 = vmatpush1.bf16.msra.mxu0 0
          %1102 = vmatprep.subr.bf16.mxu0 0
          %1103 = vmatpush1.bf16.msra.mxu0 0
          %1104 = vmatprep.subr.bf16.mxu0 0
          %1105 = vmatpush1.bf16.msra.mxu0 0
          %1106 = vmatprep.subr.bf16.mxu0 0
          %1107 = vmatpush1.bf16.msra.mxu0 0
          %1108 = vmatprep.subr.bf16.mxu0 0
          %1109 = vmatpush1.bf16.msra.mxu0 0
          %1110 = vmatprep.subr.bf16.mxu0 0
          %1111 = vmatpush1.bf16.msra.mxu0 0
          %1112 = vmatprep.mubr.bf16.mxu0 0
          %1113 = vmatmul.mubr.bf16.gmra.mrb[0].mxu0 %v1078
          %v1114 = vpop.f32.mrb[0].mxu0
          %v1115 = vadd.f32 0.0, %v1114
          %v1116 = vpop.f32.mrb[0].mxu0
          %v1117 = vpop.f32.mrb[0].mxu0
          %v1118 = vadd.f32 0.0, %v1117
          %v1119 = vpop.f32.mrb[0].mxu0
          %1120 = vdwg.mxu0
          %v1129 = vunpack.c.l.b16 %v1045
          %v1130 = vunpack.c.l.b16 %v1046
          %v1131 = vunpack.c.l.b16 %v1047
          %v1132 = vunpack.c.l.b16 %v1048
          %v1133 = vunpack.c.l.b16 %v1049
          %v1134 = vunpack.c.l.b16 %v1050
          %v1135 = vunpack.c.l.b16 %v1051
          %v1136 = vunpack.c.l.b16 %v1052
          %v1137 = vpack.c.b16 %v1130, %v1129
          %v1138 = vpack.c.b16 %v1132, %v1131
          %v1139 = vpack.c.b16 %v1134, %v1133
          %v1140 = vpack.c.b16 %v1136, %v1135
          %v1146 = vsel %vm653, %v1036, 0
          %1148 = vmatprep.subr.bf16.mxu0 0
          %1149 = vmatpush1.bf16.msra.mxu0 %v1137
          %1150 = vmatprep.subr.bf16.mxu0 0
          %1151 = vmatpush1.bf16.msra.mxu0 %v1138
          %1152 = vmatprep.subr.bf16.mxu0 0
          %1153 = vmatpush1.bf16.msra.mxu0 %v1139
          %1154 = vmatprep.subr.bf16.mxu0 0
          %1155 = vmatpush1.bf16.msra.mxu0 %v1140
          %1156 = vmatprep.subr.bf16.mxu0 0
          %1157 = vmatpush1.bf16.msra.mxu0 0
          %1158 = vmatprep.subr.bf16.mxu0 0
          %1159 = vmatpush1.bf16.msra.mxu0 0
          %1160 = vmatprep.subr.bf16.mxu0 0
          %1161 = vmatpush1.bf16.msra.mxu0 0
          %1162 = vmatprep.subr.bf16.mxu0 0
          %1163 = vmatpush1.bf16.msra.mxu0 0
          %1164 = vmatprep.subr.bf16.mxu0 0
          %1165 = vmatpush1.bf16.msra.mxu0 0
          %1166 = vmatprep.subr.bf16.mxu0 0
          %1167 = vmatpush1.bf16.msra.mxu0 0
          %1168 = vmatprep.subr.bf16.mxu0 0
          %1169 = vmatpush1.bf16.msra.mxu0 0
          %1170 = vmatprep.subr.bf16.mxu0 0
          %1171 = vmatpush1.bf16.msra.mxu0 0
          %1172 = vmatprep.subr.bf16.mxu0 0
          %1173 = vmatpush1.bf16.msra.mxu0 0
          %1174 = vmatprep.subr.bf16.mxu0 0
          %1175 = vmatpush1.bf16.msra.mxu0 0
          %1176 = vmatprep.subr.bf16.mxu0 0
          %1177 = vmatpush1.bf16.msra.mxu0 0
          %1178 = vmatprep.subr.bf16.mxu0 0
          %1179 = vmatpush1.bf16.msra.mxu0 0
          %1180 = vmatprep.mubr.bf16.mxu0 0
          %1181 = vmatmul.mubr.bf16.gmra.mrb[0].mxu0 %v1146
          %v1182 = vpop.f32.mrb[0].mxu0
          %v1183 = vadd.f32 0.0, %v1182
          %v1184 = vpop.f32.mrb[0].mxu0
          %v1185 = vpop.f32.mrb[0].mxu0
          %v1186 = vadd.f32 0.0, %v1185
          %v1187 = vpop.f32.mrb[0].mxu0
          %1188 = vdwg.mxu0
          %v1189 = vadd.f32 %v1115, %v1183
          %v1190 = vadd.f32 %v1118, %v1186
          %v1191 = vadd.f32 %v997, %v1189
          %v1192 = vadd.f32 %v998, %v1190
          %v1193 = vld [vmem:[%s5] sm:$0x1]
          %v1195 = vlaneseq
          %v1196 = vshrl.u32 %v1195, 7
          %v1197 = vsub.s32 0, %v1196
          %v1198 = vrot.slane %v1193, %v1197
          %v1200 = vadd.f32 %v1191, %v1198
          %v1201 = vadd.f32 %v1192, %v1198
          %v1202 = vld [vmem:[%s6] sm:$0x1]
          %v1203 = vld [vmem:[%s7] sm:$0x1]
          %1204 = vadd.xlane.f32.xlu0 %v1200
          %v1205 = vpop.xlane.xlu0 %1204
          %1206 = vadd.xlane.f32.xlu0 %v1201
          %v1207 = vpop.xlane.xlu0 %1206
          %v1208 = vrcp.pop 128.0
          %v1209 = vmul.f32 %v1205, %v1208
          %v1210 = vmul.f32 %v1207, %v1208
          %v1211 = vsub.f32 %v1200, %v1209
          %v1212 = vsub.f32 %v1201, %v1210
          %v1213 = vmul.f32 %v1211, %v1211
          %v1214 = vmul.f32 %v1212, %v1212
          %1215 = vadd.xlane.f32.xlu0 %v1213
          %v1216 = vpop.xlane.xlu0 %1215
          %1217 = vadd.xlane.f32.xlu0 %v1214
          %v1218 = vpop.xlane.xlu0 %1217
          %v1219 = vmul.f32 %v1216, %v1208
          %v1220 = vmul.f32 %v1218, %v1208
          %v1221 = vadd.f32 %v1219, 1e-06
          %v1222 = vadd.f32 %v1220, 1e-06
          %v1223 = vrsqrt.pop %v1221
          %v1224 = vrsqrt.pop %v1222
          %v1225 = vmul.f32 %v1211, %v1223
          %v1226 = vmul.f32 %v1212, %v1224
          %v1228 = vlaneseq
          %v1229 = vshrl.u32 %v1228, 7
          %v1230 = vsub.s32 0, %v1229
          %v1231 = vrot.slane %v1202, %v1230
          %v1233 = vmul.f32 %v1225, %v1231
          %v1234 = vmul.f32 %v1226, %v1231
          %v1236 = vlaneseq
          %v1237 = vshrl.u32 %v1236, 7
          %v1238 = vsub.s32 0, %v1237
          %v1239 = vrot.slane %v1203, %v1238
          %v1241 = vadd.f32 %v1233, %v1239
          %v1242 = vadd.f32 %v1234, %v1239
          %v1243 = vpack.c.bf16 %v1242, %v1241
          %v1244 = vld [vmem:[%s8] sm:$0xff]
          %v1245 = vld [vmem:[%s8 + $0x8] sm:$0xff]
          %v1246 = vld [vmem:[%s8 + $0x10] sm:$0xff]
          %v1247 = vld [vmem:[%s8 + $0x18] sm:$0xff]
          %v1248 = vld [vmem:[%s8 + $0x20] sm:$0xff]
          %v1249 = vld [vmem:[%s8 + $0x28] sm:$0xff]
          %v1250 = vld [vmem:[%s8 + $0x30] sm:$0xff]
          %v1251 = vld [vmem:[%s8 + $0x38] sm:$0xff]
          %v1252 = vld [vmem:[%s8 + $0x40] sm:$0xff]
          %v1253 = vld [vmem:[%s8 + $0x48] sm:$0xff]
          %v1254 = vld [vmem:[%s8 + $0x50] sm:$0xff]
          %v1255 = vld [vmem:[%s8 + $0x58] sm:$0xff]
          %v1256 = vld [vmem:[%s8 + $0x60] sm:$0xff]
          %v1257 = vld [vmem:[%s8 + $0x68] sm:$0xff]
          %v1258 = vld [vmem:[%s8 + $0x70] sm:$0xff]
          %v1259 = vld [vmem:[%s8 + $0x78] sm:$0xff]
          %v1260 = vld [vmem:[%s8 + $0x80] sm:$0xff]
          %v1261 = vld [vmem:[%s8 + $0x88] sm:$0xff]
          %v1262 = vld [vmem:[%s8 + $0x90] sm:$0xff]
          %v1263 = vld [vmem:[%s8 + $0x98] sm:$0xff]
          %v1264 = vld [vmem:[%s8 + $0xa0] sm:$0xff]
          %v1265 = vld [vmem:[%s8 + $0xa8] sm:$0xff]
          %v1266 = vld [vmem:[%s8 + $0xb0] sm:$0xff]
          %v1267 = vld [vmem:[%s8 + $0xb8] sm:$0xff]
          %v1268 = vld [vmem:[%s8 + $0xc0] sm:$0xff]
          %v1269 = vld [vmem:[%s8 + $0xc8] sm:$0xff]
          %v1270 = vld [vmem:[%s8 + $0xd0] sm:$0xff]
          %v1271 = vld [vmem:[%s8 + $0xd8] sm:$0xff]
          %v1272 = vld [vmem:[%s8 + $0xe0] sm:$0xff]
          %v1273 = vld [vmem:[%s8 + $0xe8] sm:$0xff]
          %v1274 = vld [vmem:[%s8 + $0xf0] sm:$0xff]
          %v1275 = vld [vmem:[%s8 + $0xf8] sm:$0xff]
          %v1276 = vld [vmem:[%s9] sm:$0xf]
          %v1278 = vlaneseq
          %v1279 = vshrl.u32 %v1278, 7
          %v1280 = vsub.s32 0, %v1279
          %v1281 = vrot.slane %v1276, %v1280
          %v1282 = vlaneseq
          %v1283 = vshrl.u32 %v1282, 7
          %v1284 = vsub.s32 1, %v1283
          %v1285 = vrot.slane %v1276, %v1284
          %v1286 = vlaneseq
          %v1287 = vshrl.u32 %v1286, 7
          %v1288 = vsub.s32 2, %v1287
          %v1289 = vrot.slane %v1276, %v1288
          %v1290 = vlaneseq
          %v1291 = vshrl.u32 %v1290, 7
          %v1292 = vsub.s32 3, %v1291
          %v1293 = vrot.slane %v1276, %v1292
          %v1330 = vunpack.c.l.b16 %v1244
          %v1331 = vunpack.c.h.b16 %v1244
          %v1332 = vunpack.c.l.b16 %v1245
          %v1333 = vunpack.c.h.b16 %v1245
          %v1334 = vunpack.c.l.b16 %v1246
          %v1335 = vunpack.c.h.b16 %v1246
          %v1336 = vunpack.c.l.b16 %v1247
          %v1337 = vunpack.c.h.b16 %v1247
          %v1338 = vunpack.c.l.b16 %v1248
          %v1339 = vunpack.c.h.b16 %v1248
          %v1340 = vunpack.c.l.b16 %v1249
          %v1341 = vunpack.c.h.b16 %v1249
          %v1342 = vunpack.c.l.b16 %v1250
          %v1343 = vunpack.c.h.b16 %v1250
          %v1344 = vunpack.c.l.b16 %v1251
          %v1345 = vunpack.c.h.b16 %v1251
          %v1346 = vunpack.c.l.b16 %v1252
          %v1347 = vunpack.c.h.b16 %v1252
          %v1348 = vunpack.c.l.b16 %v1253
          %v1349 = vunpack.c.h.b16 %v1253
          %v1350 = vunpack.c.l.b16 %v1254
          %v1351 = vunpack.c.h.b16 %v1254
          %v1352 = vunpack.c.l.b16 %v1255
          %v1353 = vunpack.c.h.b16 %v1255
          %v1354 = vunpack.c.l.b16 %v1256
          %v1355 = vunpack.c.h.b16 %v1256
          %v1356 = vunpack.c.l.b16 %v1257
          %v1357 = vunpack.c.h.b16 %v1257
          %v1358 = vunpack.c.l.b16 %v1258
          %v1359 = vunpack.c.h.b16 %v1258
          %v1360 = vunpack.c.l.b16 %v1259
          %v1361 = vunpack.c.h.b16 %v1259
          %v1362 = vunpack.c.l.b16 %v1260
          %v1363 = vunpack.c.h.b16 %v1260
          %v1364 = vunpack.c.l.b16 %v1261
          %v1365 = vunpack.c.h.b16 %v1261
          %v1366 = vunpack.c.l.b16 %v1262
          %v1367 = vunpack.c.h.b16 %v1262
          %v1368 = vunpack.c.l.b16 %v1263
          %v1369 = vunpack.c.h.b16 %v1263
          %v1370 = vunpack.c.l.b16 %v1264
          %v1371 = vunpack.c.h.b16 %v1264
          %v1372 = vunpack.c.l.b16 %v1265
          %v1373 = vunpack.c.h.b16 %v1265
          %v1374 = vunpack.c.l.b16 %v1266
          %v1375 = vunpack.c.h.b16 %v1266
          %v1376 = vunpack.c.l.b16 %v1267
          %v1377 = vunpack.c.h.b16 %v1267
          %v1378 = vunpack.c.l.b16 %v1268
          %v1379 = vunpack.c.h.b16 %v1268
          %v1380 = vunpack.c.l.b16 %v1269
          %v1381 = vunpack.c.h.b16 %v1269
          %v1382 = vunpack.c.l.b16 %v1270
          %v1383 = vunpack.c.h.b16 %v1270
          %v1384 = vunpack.c.l.b16 %v1271
          %v1385 = vunpack.c.h.b16 %v1271
          %v1386 = vunpack.c.l.b16 %v1272
          %v1387 = vunpack.c.h.b16 %v1272
          %v1388 = vunpack.c.l.b16 %v1273
          %v1389 = vunpack.c.h.b16 %v1273
          %v1390 = vunpack.c.l.b16 %v1274
          %v1391 = vunpack.c.h.b16 %v1274
          %v1392 = vunpack.c.l.b16 %v1275
          %v1393 = vunpack.c.h.b16 %v1275
          %v1394 = vpack.c.b16 %v1334, %v1330
          %v1395 = vpack.c.b16 %v1335, %v1331
          %v1396 = vpack.c.b16 %v1336, %v1332
          %v1397 = vpack.c.b16 %v1337, %v1333
          %v1398 = vpack.c.b16 %v1342, %v1338
          %v1399 = vpack.c.b16 %v1343, %v1339
          %v1400 = vpack.c.b16 %v1344, %v1340
          %v1401 = vpack.c.b16 %v1345, %v1341
          %v1402 = vpack.c.b16 %v1350, %v1346
          %v1403 = vpack.c.b16 %v1351, %v1347
          %v1404 = vpack.c.b16 %v1352, %v1348
          %v1405 = vpack.c.b16 %v1353, %v1349
          %v1406 = vpack.c.b16 %v1358, %v1354
          %v1407 = vpack.c.b16 %v1359, %v1355
          %v1408 = vpack.c.b16 %v1360, %v1356
          %v1409 = vpack.c.b16 %v1361, %v1357
          %v1410 = vpack.c.b16 %v1366, %v1362
          %v1411 = vpack.c.b16 %v1367, %v1363
          %v1412 = vpack.c.b16 %v1368, %v1364
          %v1413 = vpack.c.b16 %v1369, %v1365
          %v1414 = vpack.c.b16 %v1374, %v1370
          %v1415 = vpack.c.b16 %v1375, %v1371
          %v1416 = vpack.c.b16 %v1376, %v1372
          %v1417 = vpack.c.b16 %v1377, %v1373
          %v1418 = vpack.c.b16 %v1382, %v1378
          %v1419 = vpack.c.b16 %v1383, %v1379
          %v1420 = vpack.c.b16 %v1384, %v1380
          %v1421 = vpack.c.b16 %v1385, %v1381
          %v1422 = vpack.c.b16 %v1390, %v1386
          %v1423 = vpack.c.b16 %v1391, %v1387
          %v1424 = vpack.c.b16 %v1392, %v1388
          %v1425 = vpack.c.b16 %v1393, %v1389
          %1458 = vmatprep.subr.bf16.mxu0 %v1395
          %1459 = vmatpush1.bf16.msra.mxu0 %v1394
          %1460 = vmatprep.subr.bf16.mxu0 %v1399
          %1461 = vmatpush1.bf16.msra.mxu0 %v1398
          %1462 = vmatprep.subr.bf16.mxu0 %v1403
          %1463 = vmatpush1.bf16.msra.mxu0 %v1402
          %1464 = vmatprep.subr.bf16.mxu0 %v1407
          %1465 = vmatpush1.bf16.msra.mxu0 %v1406
          %1466 = vmatprep.subr.bf16.mxu0 %v1411
          %1467 = vmatpush1.bf16.msra.mxu0 %v1410
          %1468 = vmatprep.subr.bf16.mxu0 %v1415
          %1469 = vmatpush1.bf16.msra.mxu0 %v1414
          %1470 = vmatprep.subr.bf16.mxu0 %v1419
          %1471 = vmatpush1.bf16.msra.mxu0 %v1418
          %1472 = vmatprep.subr.bf16.mxu0 %v1423
          %1473 = vmatpush1.bf16.msra.mxu0 %v1422
          %1474 = vmatprep.subr.bf16.mxu0 0
          %1475 = vmatpush1.bf16.msra.mxu0 0
          %1476 = vmatprep.subr.bf16.mxu0 0
          %1477 = vmatpush1.bf16.msra.mxu0 0
          %1478 = vmatprep.subr.bf16.mxu0 0
          %1479 = vmatpush1.bf16.msra.mxu0 0
          %1480 = vmatprep.subr.bf16.mxu0 0
          %1481 = vmatpush1.bf16.msra.mxu0 0
          %1482 = vmatprep.subr.bf16.mxu0 0
          %1483 = vmatpush1.bf16.msra.mxu0 0
          %1484 = vmatprep.subr.bf16.mxu0 0
          %1485 = vmatpush1.bf16.msra.mxu0 0
          %1486 = vmatprep.subr.bf16.mxu0 0
          %1487 = vmatpush1.bf16.msra.mxu0 0
          %1488 = vmatprep.subr.bf16.mxu0 0
          %1489 = vmatpush1.bf16.msra.mxu0 0
          %1490 = vmatprep.mubr.bf16.mxu0 0
          %1491 = vmatmul.mubr.bf16.gmra.mrb[0].mxu0 %v1243
          %v1492 = vpop.f32.mrb[0].mxu0
          %v1493 = vadd.f32 %v1281, %v1492
          %v1494 = vpop.f32.mrb[0].mxu0
          %v1495 = vadd.f32 %v1285, %v1494
          %v1496 = vpop.f32.mrb[0].mxu0
          %v1497 = vadd.f32 %v1281, %v1496
          %v1498 = vpop.f32.mrb[0].mxu0
          %v1499 = vadd.f32 %v1285, %v1498
          %1500 = vdwg.mxu0
          %1501 = vmatprep.subr.bf16.mxu0 %v1397
          %1502 = vmatpush1.bf16.msra.mxu0 %v1396
          %1503 = vmatprep.subr.bf16.mxu0 %v1401
          %1504 = vmatpush1.bf16.msra.mxu0 %v1400
          %1505 = vmatprep.subr.bf16.mxu0 %v1405
          %1506 = vmatpush1.bf16.msra.mxu0 %v1404
          %1507 = vmatprep.subr.bf16.mxu0 %v1409
          %1508 = vmatpush1.bf16.msra.mxu0 %v1408
          %1509 = vmatprep.subr.bf16.mxu0 %v1413
          %1510 = vmatpush1.bf16.msra.mxu0 %v1412
          %1511 = vmatprep.subr.bf16.mxu0 %v1417
          %1512 = vmatpush1.bf16.msra.mxu0 %v1416
          %1513 = vmatprep.subr.bf16.mxu0 %v1421
          %1514 = vmatpush1.bf16.msra.mxu0 %v1420
          %1515 = vmatprep.subr.bf16.mxu0 %v1425
          %1516 = vmatpush1.bf16.msra.mxu0 %v1424
          %1517 = vmatprep.subr.bf16.mxu0 0
          %1518 = vmatpush1.bf16.msra.mxu0 0
          %1519 = vmatprep.subr.bf16.mxu0 0
          %1520 = vmatpush1.bf16.msra.mxu0 0
          %1521 = vmatprep.subr.bf16.mxu0 0
          %1522 = vmatpush1.bf16.msra.mxu0 0
          %1523 = vmatprep.subr.bf16.mxu0 0
          %1524 = vmatpush1.bf16.msra.mxu0 0
          %1525 = vmatprep.subr.bf16.mxu0 0
          %1526 = vmatpush1.bf16.msra.mxu0 0
          %1527 = vmatprep.subr.bf16.mxu0 0
          %1528 = vmatpush1.bf16.msra.mxu0 0
          %1529 = vmatprep.subr.bf16.mxu0 0
          %1530 = vmatpush1.bf16.msra.mxu0 0
          %1531 = vmatprep.subr.bf16.mxu0 0
          %1532 = vmatpush1.bf16.msra.mxu0 0
          %1533 = vmatprep.mubr.bf16.mxu0 0
          %1534 = vmatmul.mubr.bf16.gmra.mrb[0].mxu0 %v1243
          %v1535 = vpop.f32.mrb[0].mxu0
          %v1536 = vadd.f32 %v1289, %v1535
          %v1537 = vpop.f32.mrb[0].mxu0
          %v1538 = vadd.f32 %v1293, %v1537
          %v1539 = vpop.f32.mrb[0].mxu0
          %v1540 = vadd.f32 %v1289, %v1539
          %v1541 = vpop.f32.mrb[0].mxu0
          %v1542 = vadd.f32 %v1293, %v1541
          %1543 = vdwg.mxu0
          %v1544 = vmul.f32 %v1493, 0.5
          %v1545 = vmul.f32 %v1495, 0.5
          %v1546 = vmul.f32 %v1536, 0.5
          %v1547 = vmul.f32 %v1538, 0.5
          %v1548 = vmul.f32 %v1497, 0.5
          %v1549 = vmul.f32 %v1499, 0.5
          %v1550 = vmul.f32 %v1540, 0.5
          %v1551 = vmul.f32 %v1542, 0.5
          %v1552 = vmul.f32 %v1493, 0.70710677
          %v1553 = vmul.f32 %v1495, 0.70710677
          %v1554 = vmul.f32 %v1536, 0.70710677
          %v1555 = vmul.f32 %v1538, 0.70710677
          %v1556 = vmul.f32 %v1497, 0.70710677
          %v1557 = vmul.f32 %v1499, 0.70710677
          %v1558 = vmul.f32 %v1540, 0.70710677
          %v1559 = vmul.f32 %v1542, 0.70710677
          %v1560 = verf.f32.pop %v1552
          %v1561 = verf.f32.pop %v1553
          %v1562 = verf.f32.pop %v1554
          %v1563 = verf.f32.pop %v1555
          %v1564 = verf.f32.pop %v1556
          %v1565 = verf.f32.pop %v1557
          %v1566 = verf.f32.pop %v1558
          %v1567 = verf.f32.pop %v1559
          %v1568 = vadd.f32 %v1560, 1.0
          %v1569 = vadd.f32 %v1561, 1.0
          %v1570 = vadd.f32 %v1562, 1.0
          %v1571 = vadd.f32 %v1563, 1.0
          %v1572 = vadd.f32 %v1564, 1.0
          %v1573 = vadd.f32 %v1565, 1.0
          %v1574 = vadd.f32 %v1566, 1.0
          %v1575 = vadd.f32 %v1567, 1.0
          %v1576 = vmul.f32 %v1544, %v1568
          %v1577 = vmul.f32 %v1545, %v1569
          %v1578 = vmul.f32 %v1546, %v1570
          %v1579 = vmul.f32 %v1547, %v1571
          %v1580 = vmul.f32 %v1548, %v1572
          %v1581 = vmul.f32 %v1549, %v1573
          %v1582 = vmul.f32 %v1550, %v1574
          %v1583 = vmul.f32 %v1551, %v1575
          %v1584 = vpack.c.bf16 %v1580, %v1576
          %v1585 = vpack.c.bf16 %v1581, %v1577
          %v1586 = vpack.c.bf16 %v1582, %v1578
          %v1587 = vpack.c.bf16 %v1583, %v1579
          %v1588 = vld [vmem:[%s10] sm:$0xf]
          %v1589 = vld [vmem:[%s10 + $0x4] sm:$0xf]
          %v1590 = vld [vmem:[%s10 + $0x8] sm:$0xf]
          %v1591 = vld [vmem:[%s10 + $0xc] sm:$0xf]
          %v1592 = vld [vmem:[%s10 + $0x10] sm:$0xf]
          %v1593 = vld [vmem:[%s10 + $0x14] sm:$0xf]
          %v1594 = vld [vmem:[%s10 + $0x18] sm:$0xf]
          %v1595 = vld [vmem:[%s10 + $0x1c] sm:$0xf]
          %v1596 = vld [vmem:[%s10 + $0x20] sm:$0xf]
          %v1597 = vld [vmem:[%s10 + $0x24] sm:$0xf]
          %v1598 = vld [vmem:[%s10 + $0x28] sm:$0xf]
          %v1599 = vld [vmem:[%s10 + $0x2c] sm:$0xf]
          %v1600 = vld [vmem:[%s10 + $0x30] sm:$0xf]
          %v1601 = vld [vmem:[%s10 + $0x34] sm:$0xf]
          %v1602 = vld [vmem:[%s10 + $0x38] sm:$0xf]
          %v1603 = vld [vmem:[%s10 + $0x3c] sm:$0xf]
          %v1604 = vld [vmem:[%s10 + $0x40] sm:$0xf]
          %v1605 = vld [vmem:[%s10 + $0x44] sm:$0xf]
          %v1606 = vld [vmem:[%s10 + $0x48] sm:$0xf]
          %v1607 = vld [vmem:[%s10 + $0x4c] sm:$0xf]
          %v1608 = vld [vmem:[%s10 + $0x50] sm:$0xf]
          %v1609 = vld [vmem:[%s10 + $0x54] sm:$0xf]
          %v1610 = vld [vmem:[%s10 + $0x58] sm:$0xf]
          %v1611 = vld [vmem:[%s10 + $0x5c] sm:$0xf]
          %v1612 = vld [vmem:[%s10 + $0x60] sm:$0xf]
          %v1613 = vld [vmem:[%s10 + $0x64] sm:$0xf]
          %v1614 = vld [vmem:[%s10 + $0x68] sm:$0xf]
          %v1615 = vld [vmem:[%s10 + $0x6c] sm:$0xf]
          %v1616 = vld [vmem:[%s10 + $0x70] sm:$0xf]
          %v1617 = vld [vmem:[%s10 + $0x74] sm:$0xf]
          %v1618 = vld [vmem:[%s10 + $0x78] sm:$0xf]
          %v1619 = vld [vmem:[%s10 + $0x7c] sm:$0xf]
          %v1620 = vld [vmem:[%s10 + $0x80] sm:$0xf]
          %v1621 = vld [vmem:[%s10 + $0x84] sm:$0xf]
          %v1622 = vld [vmem:[%s10 + $0x88] sm:$0xf]
          %v1623 = vld [vmem:[%s10 + $0x8c] sm:$0xf]
          %v1624 = vld [vmem:[%s10 + $0x90] sm:$0xf]
          %v1625 = vld [vmem:[%s10 + $0x94] sm:$0xf]
          %v1626 = vld [vmem:[%s10 + $0x98] sm:$0xf]
          %v1627 = vld [vmem:[%s10 + $0x9c] sm:$0xf]
          %v1628 = vld [vmem:[%s10 + $0xa0] sm:$0xf]
          %v1629 = vld [vmem:[%s10 + $0xa4] sm:$0xf]
          %v1630 = vld [vmem:[%s10 + $0xa8] sm:$0xf]
          %v1631 = vld [vmem:[%s10 + $0xac] sm:$0xf]
          %v1632 = vld [vmem:[%s10 + $0xb0] sm:$0xf]
          %v1633 = vld [vmem:[%s10 + $0xb4] sm:$0xf]
          %v1634 = vld [vmem:[%s10 + $0xb8] sm:$0xf]
          %v1635 = vld [vmem:[%s10 + $0xbc] sm:$0xf]
          %v1636 = vld [vmem:[%s10 + $0xc0] sm:$0xf]
          %v1637 = vld [vmem:[%s10 + $0xc4] sm:$0xf]
          %v1638 = vld [vmem:[%s10 + $0xc8] sm:$0xf]
          %v1639 = vld [vmem:[%s10 + $0xcc] sm:$0xf]
          %v1640 = vld [vmem:[%s10 + $0xd0] sm:$0xf]
          %v1641 = vld [vmem:[%s10 + $0xd4] sm:$0xf]
          %v1642 = vld [vmem:[%s10 + $0xd8] sm:$0xf]
          %v1643 = vld [vmem:[%s10 + $0xdc] sm:$0xf]
          %v1644 = vld [vmem:[%s10 + $0xe0] sm:$0xf]
          %v1645 = vld [vmem:[%s10 + $0xe4] sm:$0xf]
          %v1646 = vld [vmem:[%s10 + $0xe8] sm:$0xf]
          %v1647 = vld [vmem:[%s10 + $0xec] sm:$0xf]
          %v1648 = vld [vmem:[%s10 + $0xf0] sm:$0xf]
          %v1649 = vld [vmem:[%s10 + $0xf4] sm:$0xf]
          %v1650 = vld [vmem:[%s10 + $0xf8] sm:$0xf]
          %v1651 = vld [vmem:[%s10 + $0xfc] sm:$0xf]
          %v1652 = vld [vmem:[%s11] sm:$0x1]
          %v1654 = vlaneseq
          %v1655 = vshrl.u32 %v1654, 7
          %v1656 = vsub.s32 0, %v1655
          %v1657 = vrot.slane %v1652, %v1656
          %v1723 = vunpack.c.l.b16 %v1588
          %v1724 = vunpack.c.l.b16 %v1589
          %v1725 = vunpack.c.l.b16 %v1590
          %v1726 = vunpack.c.l.b16 %v1591
          %v1727 = vunpack.c.l.b16 %v1592
          %v1728 = vunpack.c.l.b16 %v1593
          %v1729 = vunpack.c.l.b16 %v1594
          %v1730 = vunpack.c.l.b16 %v1595
          %v1731 = vunpack.c.l.b16 %v1596
          %v1732 = vunpack.c.l.b16 %v1597
          %v1733 = vunpack.c.l.b16 %v1598
          %v1734 = vunpack.c.l.b16 %v1599
          %v1735 = vunpack.c.l.b16 %v1600
          %v1736 = vunpack.c.l.b16 %v1601
          %v1737 = vunpack.c.l.b16 %v1602
          %v1738 = vunpack.c.l.b16 %v1603
          %v1739 = vunpack.c.l.b16 %v1604
          %v1740 = vunpack.c.l.b16 %v1605
          %v1741 = vunpack.c.l.b16 %v1606
          %v1742 = vunpack.c.l.b16 %v1607
          %v1743 = vunpack.c.l.b16 %v1608
          %v1744 = vunpack.c.l.b16 %v1609
          %v1745 = vunpack.c.l.b16 %v1610
          %v1746 = vunpack.c.l.b16 %v1611
          %v1747 = vunpack.c.l.b16 %v1612
          %v1748 = vunpack.c.l.b16 %v1613
          %v1749 = vunpack.c.l.b16 %v1614
          %v1750 = vunpack.c.l.b16 %v1615
          %v1751 = vunpack.c.l.b16 %v1616
          %v1752 = vunpack.c.l.b16 %v1617
          %v1753 = vunpack.c.l.b16 %v1618
          %v1754 = vunpack.c.l.b16 %v1619
          %v1755 = vunpack.c.l.b16 %v1620
          %v1756 = vunpack.c.l.b16 %v1621
          %v1757 = vunpack.c.l.b16 %v1622
          %v1758 = vunpack.c.l.b16 %v1623
          %v1759 = vunpack.c.l.b16 %v1624
          %v1760 = vunpack.c.l.b16 %v1625
          %v1761 = vunpack.c.l.b16 %v1626
          %v1762 = vunpack.c.l.b16 %v1627
          %v1763 = vunpack.c.l.b16 %v1628
          %v1764 = vunpack.c.l.b16 %v1629
          %v1765 = vunpack.c.l.b16 %v1630
          %v1766 = vunpack.c.l.b16 %v1631
          %v1767 = vunpack.c.l.b16 %v1632
          %v1768 = vunpack.c.l.b16 %v1633
          %v1769 = vunpack.c.l.b16 %v1634
          %v1770 = vunpack.c.l.b16 %v1635
          %v1771 = vunpack.c.l.b16 %v1636
          %v1772 = vunpack.c.l.b16 %v1637
          %v1773 = vunpack.c.l.b16 %v1638
          %v1774 = vunpack.c.l.b16 %v1639
          %v1775 = vunpack.c.l.b16 %v1640
          %v1776 = vunpack.c.l.b16 %v1641
          %v1777 = vunpack.c.l.b16 %v1642
          %v1778 = vunpack.c.l.b16 %v1643
          %v1779 = vunpack.c.l.b16 %v1644
          %v1780 = vunpack.c.l.b16 %v1645
          %v1781 = vunpack.c.l.b16 %v1646
          %v1782 = vunpack.c.l.b16 %v1647
          %v1783 = vunpack.c.l.b16 %v1648
          %v1784 = vunpack.c.l.b16 %v1649
          %v1785 = vunpack.c.l.b16 %v1650
          %v1786 = vunpack.c.l.b16 %v1651
          %v1787 = vpack.c.b16 %v1724, %v1723
          %v1788 = vpack.c.b16 %v1726, %v1725
          %v1789 = vpack.c.b16 %v1728, %v1727
          %v1790 = vpack.c.b16 %v1730, %v1729
          %v1791 = vpack.c.b16 %v1732, %v1731
          %v1792 = vpack.c.b16 %v1734, %v1733
          %v1793 = vpack.c.b16 %v1736, %v1735
          %v1794 = vpack.c.b16 %v1738, %v1737
          %v1795 = vpack.c.b16 %v1740, %v1739
          %v1796 = vpack.c.b16 %v1742, %v1741
          %v1797 = vpack.c.b16 %v1744, %v1743
          %v1798 = vpack.c.b16 %v1746, %v1745
          %v1799 = vpack.c.b16 %v1748, %v1747
          %v1800 = vpack.c.b16 %v1750, %v1749
          %v1801 = vpack.c.b16 %v1752, %v1751
          %v1802 = vpack.c.b16 %v1754, %v1753
          %v1803 = vpack.c.b16 %v1756, %v1755
          %v1804 = vpack.c.b16 %v1758, %v1757
          %v1805 = vpack.c.b16 %v1760, %v1759
          %v1806 = vpack.c.b16 %v1762, %v1761
          %v1807 = vpack.c.b16 %v1764, %v1763
          %v1808 = vpack.c.b16 %v1766, %v1765
          %v1809 = vpack.c.b16 %v1768, %v1767
          %v1810 = vpack.c.b16 %v1770, %v1769
          %v1811 = vpack.c.b16 %v1772, %v1771
          %v1812 = vpack.c.b16 %v1774, %v1773
          %v1813 = vpack.c.b16 %v1776, %v1775
          %v1814 = vpack.c.b16 %v1778, %v1777
          %v1815 = vpack.c.b16 %v1780, %v1779
          %v1816 = vpack.c.b16 %v1782, %v1781
          %v1817 = vpack.c.b16 %v1784, %v1783
          %v1818 = vpack.c.b16 %v1786, %v1785
          %1851 = vmatprep.subr.bf16.mxu0 0
          %1852 = vmatpush1.bf16.msra.mxu0 %v1787
          %1853 = vmatprep.subr.bf16.mxu0 0
          %1854 = vmatpush1.bf16.msra.mxu0 %v1788
          %1855 = vmatprep.subr.bf16.mxu0 0
          %1856 = vmatpush1.bf16.msra.mxu0 %v1789
          %1857 = vmatprep.subr.bf16.mxu0 0
          %1858 = vmatpush1.bf16.msra.mxu0 %v1790
          %1859 = vmatprep.subr.bf16.mxu0 0
          %1860 = vmatpush1.bf16.msra.mxu0 %v1791
          %1861 = vmatprep.subr.bf16.mxu0 0
          %1862 = vmatpush1.bf16.msra.mxu0 %v1792
          %1863 = vmatprep.subr.bf16.mxu0 0
          %1864 = vmatpush1.bf16.msra.mxu0 %v1793
          %1865 = vmatprep.subr.bf16.mxu0 0
          %1866 = vmatpush1.bf16.msra.mxu0 %v1794
          %1867 = vmatprep.subr.bf16.mxu0 0
          %1868 = vmatpush1.bf16.msra.mxu0 %v1795
          %1869 = vmatprep.subr.bf16.mxu0 0
          %1870 = vmatpush1.bf16.msra.mxu0 %v1796
          %1871 = vmatprep.subr.bf16.mxu0 0
          %1872 = vmatpush1.bf16.msra.mxu0 %v1797
          %1873 = vmatprep.subr.bf16.mxu0 0
          %1874 = vmatpush1.bf16.msra.mxu0 %v1798
          %1875 = vmatprep.subr.bf16.mxu0 0
          %1876 = vmatpush1.bf16.msra.mxu0 %v1799
          %1877 = vmatprep.subr.bf16.mxu0 0
          %1878 = vmatpush1.bf16.msra.mxu0 %v1800
          %1879 = vmatprep.subr.bf16.mxu0 0
          %1880 = vmatpush1.bf16.msra.mxu0 %v1801
          %1881 = vmatprep.subr.bf16.mxu0 0
          %1882 = vmatpush1.bf16.msra.mxu0 %v1802
          %1883 = vmatprep.mubr.bf16.mxu0 %v1585
          %1884 = vmatmul.mubr.bf16.gmra.mrb[0].mxu0 %v1584
          %v1885 = vpop.f32.mrb[0].mxu0
          %v1886 = vadd.f32 %v1657, %v1885
          %v1887 = vpop.f32.mrb[0].mxu0
          %v1888 = vpop.f32.mrb[0].mxu0
          %v1889 = vadd.f32 %v1657, %v1888
          %v1890 = vpop.f32.mrb[0].mxu0
          %1891 = vdwg.mxu0
          %1892 = vmatprep.subr.bf16.mxu0 0
          %1893 = vmatpush1.bf16.msra.mxu0 %v1803
          %1894 = vmatprep.subr.bf16.mxu0 0
          %1895 = vmatpush1.bf16.msra.mxu0 %v1804
          %1896 = vmatprep.subr.bf16.mxu0 0
          %1897 = vmatpush1.bf16.msra.mxu0 %v1805
          %1898 = vmatprep.subr.bf16.mxu0 0
          %1899 = vmatpush1.bf16.msra.mxu0 %v1806
          %1900 = vmatprep.subr.bf16.mxu0 0
          %1901 = vmatpush1.bf16.msra.mxu0 %v1807
          %1902 = vmatprep.subr.bf16.mxu0 0
          %1903 = vmatpush1.bf16.msra.mxu0 %v1808
          %1904 = vmatprep.subr.bf16.mxu0 0
          %1905 = vmatpush1.bf16.msra.mxu0 %v1809
          %1906 = vmatprep.subr.bf16.mxu0 0
          %1907 = vmatpush1.bf16.msra.mxu0 %v1810
          %1908 = vmatprep.subr.bf16.mxu0 0
          %1909 = vmatpush1.bf16.msra.mxu0 %v1811
          %1910 = vmatprep.subr.bf16.mxu0 0
          %1911 = vmatpush1.bf16.msra.mxu0 %v1812
          %1912 = vmatprep.subr.bf16.mxu0 0
          %1913 = vmatpush1.bf16.msra.mxu0 %v1813
          %1914 = vmatprep.subr.bf16.mxu0 0
          %1915 = vmatpush1.bf16.msra.mxu0 %v1814
          %1916 = vmatprep.subr.bf16.mxu0 0
          %1917 = vmatpush1.bf16.msra.mxu0 %v1815
          %1918 = vmatprep.subr.bf16.mxu0 0
          %1919 = vmatpush1.bf16.msra.mxu0 %v1816
          %1920 = vmatprep.subr.bf16.mxu0 0
          %1921 = vmatpush1.bf16.msra.mxu0 %v1817
          %1922 = vmatprep.subr.bf16.mxu0 0
          %1923 = vmatpush1.bf16.msra.mxu0 %v1818
          %1924 = vmatprep.mubr.bf16.mxu0 %v1587
          %1925 = vmatmul.mubr.bf16.gmra.mrb[0].mxu0 %v1586
          %v1926 = vpop.f32.mrb[0].mxu0
          %v1927 = vadd.f32 %v1886, %v1926
          %v1928 = vpop.f32.mrb[0].mxu0
          %v1929 = vpop.f32.mrb[0].mxu0
          %v1930 = vadd.f32 %v1889, %v1929
          %v1931 = vpop.f32.mrb[0].mxu0
          %1932 = vdwg.mxu0
          %v1933 = vadd.f32 %v1200, %v1927
          %v1934 = vadd.f32 %v1201, %v1930
          %v1935 = vld [vmem:[%s12] sm:$0x1]
          %v1936 = vld [vmem:[%s13] sm:$0x1]
          %1937 = vadd.xlane.f32.xlu0 %v1933
          %v1938 = vpop.xlane.xlu0 %1937
          %1939 = vadd.xlane.f32.xlu0 %v1934
          %v1940 = vpop.xlane.xlu0 %1939
          %v1941 = vmul.f32 %v1938, %v1208
          %v1942 = vmul.f32 %v1940, %v1208
          %v1943 = vsub.f32 %v1933, %v1941
          %v1944 = vsub.f32 %v1934, %v1942
          %v1945 = vmul.f32 %v1943, %v1943
          %v1946 = vmul.f32 %v1944, %v1944
          %1947 = vadd.xlane.f32.xlu0 %v1945
          %v1948 = vpop.xlane.xlu0 %1947
          %1949 = vadd.xlane.f32.xlu0 %v1946
          %v1950 = vpop.xlane.xlu0 %1949
          %v1951 = vmul.f32 %v1948, %v1208
          %v1952 = vmul.f32 %v1950, %v1208
          %v1953 = vadd.f32 %v1951, 1e-06
          %v1954 = vadd.f32 %v1952, 1e-06
          %v1955 = vrsqrt.pop %v1953
          %v1956 = vrsqrt.pop %v1954
          %v1957 = vmul.f32 %v1943, %v1955
          %v1958 = vmul.f32 %v1944, %v1956
          %v1960 = vlaneseq
          %v1961 = vshrl.u32 %v1960, 7
          %v1962 = vsub.s32 0, %v1961
          %v1963 = vrot.slane %v1935, %v1962
          %v1965 = vmul.f32 %v1957, %v1963
          %v1966 = vmul.f32 %v1958, %v1963
          %v1968 = vlaneseq
          %v1969 = vshrl.u32 %v1968, 7
          %v1970 = vsub.s32 0, %v1969
          %v1971 = vrot.slane %v1936, %v1970
          %v1973 = vadd.f32 %v1965, %v1971
          %v1974 = vadd.f32 %v1966, %v1971
          %1975 = vst [vmem:[%s570] sm:$0xff] %v1973
          %1976 = vst [vmem:[%s570 + $0x8] sm:$0xff] %v1974
        $region84: #{_denoiser_forward_impl.3} parent=75 // pred_fallthru
          _
        %s1977 = sand.u32 %s379, 1
        %s1978 = scalar_lea.sflag [#allocation6], %s1977
        %s1979 = sand.u32 %s379, 1
        %s1980 = smul.addr %s1979, 16
        %s1981 = scalar_lea.vmem [#allocation5], %s1980
        // Predicated region
        $region85: #{_denoiser_forward_impl.3} parent=75 // pred_check
          %p1982 = pneg %p389
        $region86: #{_denoiser_forward_impl.3} parent=75 // pred_check_branch
          %1984 = sbr.rel (%p1982) target = $region88
        $region87: #{_denoiser_forward_impl.3} parent=75 // pred_region
          %s1985 = smul.u32 2, %s34
          %s1987 = ssub.s32 256, 256
          %1988 = vsyncadd %s1978, %s1987
          %s1989 = smul.addr %s33, 2
          %s1990 = sadd.s32 %s1985, %s1989
          %s1991 = smul.addr %s1990, 128
          %s1992 = scalar_lea.hbm %s14, %s1991
          %s1993 = sshll.u32 %s1981, 4
          %s1994 = int_to_ptr.vmem [resolvable:$true] %s1993
          %1999 = dma.vmem_to_hbm [thread:$0]  %s1994, 256, %s1992, %s1978, 128, 128, 8
        $region88: #{_denoiser_forward_impl.3} parent=75 // pred_fallthru
          _
      $region76: #{_denoiser_forward_impl.3} parent=5 // pred_fallthru
        _
      %p2000 = scmp.le.s32.totalorder 2, %s23
      // Predicated region
      $region89: #{_denoiser_forward_impl.3} parent=5 // pred_check
        %p2001 = pneg %p2000
      $region90: #{_denoiser_forward_impl.3} parent=5 // pred_check_branch
        %2003 = sbr.rel (%p2001) target = $region92
      $region91: #{_denoiser_forward_impl.3} parent=5 // pred_region
        %s2004 = ssub.s32 %s23, 2
        // Predicated region
        $region93: #{_denoiser_forward_impl.3} parent=91 // pred_check
          %p2005 = pneg %p395
        $region94: #{_denoiser_forward_impl.3} parent=91 // pred_check_branch
          %2007 = sbr.rel (%p2005) target = $region96
        $region95: #{_denoiser_forward_impl.3} parent=91 // pred_region
          %s2008 = sand.u32 %s380, 1
          %s2009 = scalar_lea.sflag [#allocation6], %s2008
          %s2010 = sand.u32 %s380, 1
          %s2011 = smul.addr %s2010, 16
          %s2012 = scalar_lea.vmem [#allocation5], %s2011
          %2013 = dma.done %s2009, 256
        $region96: #{_denoiser_forward_impl.3} parent=91 // pred_fallthru
          _
      $region92: #{_denoiser_forward_impl.3} parent=5 // pred_fallthru
        _
    $region6: #{_denoiser_forward_impl.3} parent=1 // loop_footer
      %s27 = sadd.s32 1, %s23
    $region7: #{_denoiser_forward_impl.3} parent=1 // loop_footer_branch
      %22 = sbr.rel target = $region3
    $region8: #{_denoiser_forward_impl.3} parent=1 // loop_exit
      _
    %2014 = vsyncpa [#allocation6], 1
    %s2015 = scalar_lea.sflag [#allocation6], 1
    %2016 = vsyncpa %s2015, 1

// kernel: mul.9
$region0: #{mul.9}
  #allocation0 [shape = 's32[1]{0}', space=sflag, size = 0x4, scoped, tag = 'scoped memory for mul.9']
  %s0 = inlined_call_operand.vmem [shape: f32[1,384], index: 0, kind: input, shape index: {}]
  %s1 = inlined_call_operand.vmem [shape: f32[1,384], index: 1, kind: input, shape index: {}]
  %s2 = inlined_call_operand.vmem [shape: f32[1,384], index: 2, kind: output, shape index: {}]
  %v3 = vld [vmem:[%s0] sm:$0x1]
  %v4 = vld [vmem:[%s1] sm:$0x1]
  %5 = xla_tuple %v3, %v4
  %6 = xla_tuple %5
  %v7 = vmul.f32 %v3, %v4
  %8 = xla_tuple %v7
  %9 = vst [vmem:[%s2] sm:$0x1] %v7
  %s10 = scalar_lea.vmem %s0, 1
  %v11 = vld [vmem:[%s10] sm:$0x1]
  %s12 = scalar_lea.vmem %s1, 1
  %v13 = vld [vmem:[%s12] sm:$0x1]
  %14 = xla_tuple %v11, %v13
  %15 = xla_tuple %14
  %v16 = vmul.f32 %v11, %v13
  %17 = xla_tuple %v16
  %s18 = scalar_lea.vmem %s2, 1
  %19 = vst [vmem:[%s18] sm:$0x1] %v16
  %s20 = scalar_lea.vmem %s0, 2
  %v21 = vld [vmem:[%s20] sm:$0x1]
  %s22 = scalar_lea.vmem %s1, 2
  %v23 = vld [vmem:[%s22] sm:$0x1]
  %24 = xla_tuple %v21, %v23
  %25 = xla_tuple %24
  %v26 = vmul.f32 %v21, %v23
  %27 = xla_tuple %v26
  %s28 = scalar_lea.vmem %s2, 2
  %29 = vst [vmem:[%s28] sm:$0x1] %v26

// kernel: _denoiser_forward_impl.2
$region0: #{_denoiser_forward_impl.2}
  #allocation0 [shape = 'u32[]', space=smem, size = 0x4, offset = 0x4, fixed_abs, tag = 'smem constant byte address 0x4 - core index']
  #allocation1 [shape = 'u32[144,128]{1,0:T(1,128)}', space=vmem, size = 0x12000, scoped, tag = 'internal scratch']
  %s0 = inlined_call_operand.vmem [shape: f32[32,128], index: 0, kind: input, shape index: {}]
  %s1 = inlined_call_operand.vmem [shape: f32[1,128], index: 1, kind: input, shape index: {}]
  %s2 = inlined_call_operand.vmem [shape: f32[1,128], index: 2, kind: input, shape index: {}]
  %s3 = inlined_call_operand.vmem [shape: bf16[128,384], index: 3, kind: input, shape index: {}]
  %s4 = inlined_call_operand.vmem [shape: f32[1,384], index: 4, kind: input, shape index: {}]
  %s5 = inlined_call_operand.vmem [shape: bf16[32,384], index: 5, kind: output, shape index: {}]
  %s6 = sld [smem:[#allocation0]]
  $region30: #{_denoiser_forward_impl.2} parent=0
    _
  %s8 = ssub.s32 1, %s6
  %s9 = scalar_select 0, %s8, %s6
  // Predicated region
  $region2: #{_denoiser_forward_impl.2} parent=0 // pred_check
    _
  $region3: #{_denoiser_forward_impl.2} parent=0 // pred_check_branch
    %11 = sbr.rel (0) target = $region5
  $region4: #{_denoiser_forward_impl.2} parent=0 // pred_region
    _
  $region5: #{_denoiser_forward_impl.2} parent=0 // pred_fallthru
    _
  // Predicated region
  $region6: #{_denoiser_forward_impl.2} parent=0 // pred_check
    _
  $region7: #{_denoiser_forward_impl.2} parent=0 // pred_check_branch
    %13 = sbr.rel (0) target = $region9
  $region8: #{_denoiser_forward_impl.2} parent=0 // pred_region
    _
  $region9: #{_denoiser_forward_impl.2} parent=0 // pred_fallthru
    _
  // Predicated region
  $region10: #{_denoiser_forward_impl.2} parent=0 // pred_check
    _
  $region11: #{_denoiser_forward_impl.2} parent=0 // pred_check_branch
    %15 = sbr.rel (0) target = $region13
  $region12: #{_denoiser_forward_impl.2} parent=0 // pred_region
    _
  $region13: #{_denoiser_forward_impl.2} parent=0 // pred_fallthru
    _
  // Predicated region
  $region14: #{_denoiser_forward_impl.2} parent=0 // pred_check
    _
  $region15: #{_denoiser_forward_impl.2} parent=0 // pred_check_branch
    %17 = sbr.rel (0) target = $region17
  $region16: #{_denoiser_forward_impl.2} parent=0 // pred_region
    _
  $region17: #{_denoiser_forward_impl.2} parent=0 // pred_fallthru
    _
  // Predicated region
  $region18: #{_denoiser_forward_impl.2} parent=0 // pred_check
    _
  $region19: #{_denoiser_forward_impl.2} parent=0 // pred_check_branch
    %19 = sbr.rel (0) target = $region21
  $region20: #{_denoiser_forward_impl.2} parent=0 // pred_region
    _
  $region21: #{_denoiser_forward_impl.2} parent=0 // pred_fallthru
    _
  %v21 = vld [vmem:[%s0] sm:$0xff]
  %v22 = vld [vmem:[%s0 + $0x8] sm:$0xff]
  %v23 = vld [vmem:[%s0 + $0x10] sm:$0xff]
  %v24 = vld [vmem:[%s0 + $0x18] sm:$0xff]
  %v25 = vld [vmem:[%s1] sm:$0x1]
  %v26 = vld [vmem:[%s2] sm:$0x1]
  %27 = vadd.xlane.f32.xlu0 %v21
  %v28 = vpop.xlane.xlu0 %27
  %29 = vadd.xlane.f32.xlu0 %v22
  %v30 = vpop.xlane.xlu0 %29
  %31 = vadd.xlane.f32.xlu0 %v23
  %v32 = vpop.xlane.xlu0 %31
  %33 = vadd.xlane.f32.xlu0 %v24
  %v34 = vpop.xlane.xlu0 %33
  %v35 = vrcp.pop 128.0
  %v36 = vmul.f32 %v28, %v35
  %v37 = vmul.f32 %v30, %v35
  %v38 = vmul.f32 %v32, %v35
  %v39 = vmul.f32 %v34, %v35
  %v40 = vsub.f32 %v21, %v36
  %v41 = vsub.f32 %v22, %v37
  %v42 = vsub.f32 %v23, %v38
  %v43 = vsub.f32 %v24, %v39
  %v44 = vmul.f32 %v40, %v40
  %v45 = vmul.f32 %v41, %v41
  %v46 = vmul.f32 %v42, %v42
  %v47 = vmul.f32 %v43, %v43
  %48 = vadd.xlane.f32.xlu0 %v44
  %v49 = vpop.xlane.xlu0 %48
  %50 = vadd.xlane.f32.xlu0 %v45
  %v51 = vpop.xlane.xlu0 %50
  %52 = vadd.xlane.f32.xlu0 %v46
  %v53 = vpop.xlane.xlu0 %52
  %54 = vadd.xlane.f32.xlu0 %v47
  %v55 = vpop.xlane.xlu0 %54
  %v56 = vmul.f32 %v49, %v35
  %v57 = vmul.f32 %v51, %v35
  %v58 = vmul.f32 %v53, %v35
  %v59 = vmul.f32 %v55, %v35
  %v60 = vadd.f32 %v56, 1e-06
  %v61 = vadd.f32 %v57, 1e-06
  %v62 = vadd.f32 %v58, 1e-06
  %v63 = vadd.f32 %v59, 1e-06
  %v64 = vrsqrt.pop %v60
  %v65 = vrsqrt.pop %v61
  %v66 = vrsqrt.pop %v62
  %v67 = vrsqrt.pop %v63
  %v68 = vmul.f32 %v40, %v64
  %v69 = vmul.f32 %v41, %v65
  %v70 = vmul.f32 %v42, %v66
  %v71 = vmul.f32 %v43, %v67
  %v73 = vlaneseq
  %v74 = vshrl.u32 %v73, 7
  %v75 = vsub.s32 0, %v74
  %v76 = vrot.slane %v25, %v75
  %v78 = vmul.f32 %v68, %v76
  %v79 = vmul.f32 %v69, %v76
  %v80 = vmul.f32 %v70, %v76
  %v81 = vmul.f32 %v71, %v76
  %v83 = vlaneseq
  %v84 = vshrl.u32 %v83, 7
  %v85 = vsub.s32 0, %v84
  %v86 = vrot.slane %v26, %v85
  %v88 = vadd.f32 %v78, %v86
  %v89 = vadd.f32 %v79, %v86
  %v90 = vadd.f32 %v80, %v86
  %v91 = vadd.f32 %v81, %v86
  %v92 = vpack.c.bf16 %v89, %v88
  %v93 = vpack.c.bf16 %v91, %v90
  %v94 = vld [vmem:[%s3] sm:$0xff]
  %v95 = vld [vmem:[%s3 + $0x8] sm:$0xf]
  %v96 = vld [vmem:[%s3 + $0xc] sm:$0xff]
  %v97 = vld [vmem:[%s3 + $0x14] sm:$0xf]
  %v98 = vld [vmem:[%s3 + $0x18] sm:$0xff]
  %v99 = vld [vmem:[%s3 + $0x20] sm:$0xf]
  %v100 = vld [vmem:[%s3 + $0x24] sm:$0xff]
  %v101 = vld [vmem:[%s3 + $0x2c] sm:$0xf]
  %v102 = vld [vmem:[%s3 + $0x30] sm:$0xff]
  %v103 = vld [vmem:[%s3 + $0x38] sm:$0xf]
  %v104 = vld [vmem:[%s3 + $0x3c] sm:$0xff]
  %v105 = vld [vmem:[%s3 + $0x44] sm:$0xf]
  %v106 = vld [vmem:[%s3 + $0x48] sm:$0xff]
  %v107 = vld [vmem:[%s3 + $0x50] sm:$0xf]
  %v108 = vld [vmem:[%s3 + $0x54] sm:$0xff]
  %v109 = vld [vmem:[%s3 + $0x5c] sm:$0xf]
  %v110 = vld [vmem:[%s3 + $0x60] sm:$0xff]
  %v111 = vld [vmem:[%s3 + $0x68] sm:$0xf]
  %v112 = vld [vmem:[%s3 + $0x6c] sm:$0xff]
  %v113 = vld [vmem:[%s3 + $0x74] sm:$0xf]
  %v114 = vld [vmem:[%s3 + $0x78] sm:$0xff]
  %v115 = vld [vmem:[%s3 + $0x80] sm:$0xf]
  %v116 = vld [vmem:[%s3 + $0x84] sm:$0xff]
  %v117 = vld [vmem:[%s3 + $0x8c] sm:$0xf]
  %v118 = vld [vmem:[%s3 + $0x90] sm:$0xff]
  %v119 = vld [vmem:[%s3 + $0x98] sm:$0xf]
  %v120 = vld [vmem:[%s3 + $0x9c] sm:$0xff]
  %v121 = vld [vmem:[%s3 + $0xa4] sm:$0xf]
  %v122 = vld [vmem:[%s3 + $0xa8] sm:$0xff]
  %v123 = vld [vmem:[%s3 + $0xb0] sm:$0xf]
  %v124 = vld [vmem:[%s3 + $0xb4] sm:$0xff]
  %v125 = vld [vmem:[%s3 + $0xbc] sm:$0xf]
  %v126 = vld [vmem:[%s4] sm:$0x7]
  %v128 = vlaneseq
  %v129 = vshrl.u32 %v128, 7
  %v130 = vsub.s32 0, %v129
  %v131 = vrot.slane %v126, %v130
  %v132 = vlaneseq
  %v133 = vshrl.u32 %v132, 7
  %v134 = vsub.s32 1, %v133
  %v135 = vrot.slane %v126, %v134
  %v136 = vlaneseq
  %v137 = vshrl.u32 %v136, 7
  %v138 = vsub.s32 2, %v137
  %v139 = vrot.slane %v126, %v138
  %v175 = vunpack.c.l.b16 %v94
  %v176 = vunpack.c.h.b16 %v94
  %v177 = vunpack.c.l.b16 %v95
  %v178 = vunpack.c.l.b16 %v96
  %v179 = vunpack.c.h.b16 %v96
  %v180 = vunpack.c.l.b16 %v97
  %v181 = vunpack.c.l.b16 %v98
  %v182 = vunpack.c.h.b16 %v98
  %v183 = vunpack.c.l.b16 %v99
  %v184 = vunpack.c.l.b16 %v100
  %v185 = vunpack.c.h.b16 %v100
  %v186 = vunpack.c.l.b16 %v101
  %v187 = vunpack.c.l.b16 %v102
  %v188 = vunpack.c.h.b16 %v102
  %v189 = vunpack.c.l.b16 %v103
  %v190 = vunpack.c.l.b16 %v104
  %v191 = vunpack.c.h.b16 %v104
  %v192 = vunpack.c.l.b16 %v105
  %v193 = vunpack.c.l.b16 %v106
  %v194 = vunpack.c.h.b16 %v106
  %v195 = vunpack.c.l.b16 %v107
  %v196 = vunpack.c.l.b16 %v108
  %v197 = vunpack.c.h.b16 %v108
  %v198 = vunpack.c.l.b16 %v109
  %v199 = vunpack.c.l.b16 %v110
  %v200 = vunpack.c.h.b16 %v110
  %v201 = vunpack.c.l.b16 %v111
  %v202 = vunpack.c.l.b16 %v112
  %v203 = vunpack.c.h.b16 %v112
  %v204 = vunpack.c.l.b16 %v113
  %v205 = vunpack.c.l.b16 %v114
  %v206 = vunpack.c.h.b16 %v114
  %v207 = vunpack.c.l.b16 %v115
  %v208 = vunpack.c.l.b16 %v116
  %v209 = vunpack.c.h.b16 %v116
  %v210 = vunpack.c.l.b16 %v117
  %v211 = vunpack.c.l.b16 %v118
  %v212 = vunpack.c.h.b16 %v118
  %v213 = vunpack.c.l.b16 %v119
  %v214 = vunpack.c.l.b16 %v120
  %v215 = vunpack.c.h.b16 %v120
  %v216 = vunpack.c.l.b16 %v121
  %v217 = vunpack.c.l.b16 %v122
  %v218 = vunpack.c.h.b16 %v122
  %v219 = vunpack.c.l.b16 %v123
  %v220 = vunpack.c.l.b16 %v124
  %v221 = vunpack.c.h.b16 %v124
  %v222 = vunpack.c.l.b16 %v125
  %v223 = vpack.c.b16 %v178, %v175
  %v224 = vpack.c.b16 %v179, %v176
  %v225 = vpack.c.b16 %v180, %v177
  %v226 = vpack.c.b16 %v184, %v181
  %v227 = vpack.c.b16 %v185, %v182
  %v228 = vpack.c.b16 %v186, %v183
  %v229 = vpack.c.b16 %v190, %v187
  %v230 = vpack.c.b16 %v191, %v188
  %v231 = vpack.c.b16 %v192, %v189
  %v232 = vpack.c.b16 %v196, %v193
  %v233 = vpack.c.b16 %v197, %v194
  %v234 = vpack.c.b16 %v198, %v195
  %v235 = vpack.c.b16 %v202, %v199
  %v236 = vpack.c.b16 %v203, %v200
  %v237 = vpack.c.b16 %v204, %v201
  %v238 = vpack.c.b16 %v208, %v205
  %v239 = vpack.c.b16 %v209, %v206
  %v240 = vpack.c.b16 %v210, %v207
  %v241 = vpack.c.b16 %v214, %v211
  %v242 = vpack.c.b16 %v215, %v212
  %v243 = vpack.c.b16 %v216, %v213
  %v244 = vpack.c.b16 %v220, %v217
  %v245 = vpack.c.b16 %v221, %v218
  %v246 = vpack.c.b16 %v222, %v219
  %271 = vmatprep.subr.bf16.mxu0 %v224
  %272 = vmatpush1.bf16.msra.mxu0 %v223
  %273 = vmatprep.subr.bf16.mxu0 %v227
  %274 = vmatpush1.bf16.msra.mxu0 %v226
  %275 = vmatprep.subr.bf16.mxu0 %v230
  %276 = vmatpush1.bf16.msra.mxu0 %v229
  %277 = vmatprep.subr.bf16.mxu0 %v233
  %278 = vmatpush1.bf16.msra.mxu0 %v232
  %279 = vmatprep.subr.bf16.mxu0 %v236
  %280 = vmatpush1.bf16.msra.mxu0 %v235
  %281 = vmatprep.subr.bf16.mxu0 %v239
  %282 = vmatpush1.bf16.msra.mxu0 %v238
  %283 = vmatprep.subr.bf16.mxu0 %v242
  %284 = vmatpush1.bf16.msra.mxu0 %v241
  %285 = vmatprep.subr.bf16.mxu0 %v245
  %286 = vmatpush1.bf16.msra.mxu0 %v244
  %287 = vmatprep.subr.bf16.mxu0 0
  %288 = vmatpush1.bf16.msra.mxu0 0
  %289 = vmatprep.subr.bf16.mxu0 0
  %290 = vmatpush1.bf16.msra.mxu0 0
  %291 = vmatprep.subr.bf16.mxu0 0
  %292 = vmatpush1.bf16.msra.mxu0 0
  %293 = vmatprep.subr.bf16.mxu0 0
  %294 = vmatpush1.bf16.msra.mxu0 0
  %295 = vmatprep.subr.bf16.mxu0 0
  %296 = vmatpush1.bf16.msra.mxu0 0
  %297 = vmatprep.subr.bf16.mxu0 0
  %298 = vmatpush1.bf16.msra.mxu0 0
  %299 = vmatprep.subr.bf16.mxu0 0
  %300 = vmatpush1.bf16.msra.mxu0 0
  %301 = vmatprep.subr.bf16.mxu0 0
  %302 = vmatpush1.bf16.msra.mxu0 0
  %303 = vmatprep.mubr.bf16.mxu0 0
  %304 = vmatmul.mubr.bf16.gmra.mrb[0].mxu0 %v92
  %v305 = vpop.f32.mrb[0].mxu0
  %v306 = vadd.f32 %v131, %v305
  %v307 = vpop.f32.mrb[0].mxu0
  %v308 = vadd.f32 %v135, %v307
  %v309 = vpop.f32.mrb[0].mxu0
  %v310 = vadd.f32 %v131, %v309
  %v311 = vpop.f32.mrb[0].mxu0
  %v312 = vadd.f32 %v135, %v311
  %313 = vmatprep.mubr.bf16.mxu0 0
  %314 = vmatmul.mubr.bf16.gmra.mrb[0].mxu0 %v93
  %v315 = vpop.f32.mrb[0].mxu0
  %v316 = vadd.f32 %v131, %v315
  %v317 = vpop.f32.mrb[0].mxu0
  %v318 = vadd.f32 %v135, %v317
  %v319 = vpop.f32.mrb[0].mxu0
  %v320 = vadd.f32 %v131, %v319
  %v321 = vpop.f32.mrb[0].mxu0
  %v322 = vadd.f32 %v135, %v321
  %323 = vdwg.mxu0
  %324 = vmatprep.subr.bf16.mxu0 0
  %325 = vmatpush1.bf16.msra.mxu0 %v225
  %326 = vmatprep.subr.bf16.mxu0 0
  %327 = vmatpush1.bf16.msra.mxu0 %v228
  %328 = vmatprep.subr.bf16.mxu0 0
  %329 = vmatpush1.bf16.msra.mxu0 %v231
  %330 = vmatprep.subr.bf16.mxu0 0
  %331 = vmatpush1.bf16.msra.mxu0 %v234
  %332 = vmatprep.subr.bf16.mxu0 0
  %333 = vmatpush1.bf16.msra.mxu0 %v237
  %334 = vmatprep.subr.bf16.mxu0 0
  %335 = vmatpush1.bf16.msra.mxu0 %v240
  %336 = vmatprep.subr.bf16.mxu0 0
  %337 = vmatpush1.bf16.msra.mxu0 %v243
  %338 = vmatprep.subr.bf16.mxu0 0
  %339 = vmatpush1.bf16.msra.mxu0 %v246
  %340 = vmatprep.subr.bf16.mxu0 0
  %341 = vmatpush1.bf16.msra.mxu0 0
  %342 = vmatprep.subr.bf16.mxu0 0
  %343 = vmatpush1.bf16.msra.mxu0 0
  %344 = vmatprep.subr.bf16.mxu0 0
  %345 = vmatpush1.bf16.msra.mxu0 0
  %346 = vmatprep.subr.bf16.mxu0 0
  %347 = vmatpush1.bf16.msra.mxu0 0
  %348 = vmatprep.subr.bf16.mxu0 0
  %349 = vmatpush1.bf16.msra.mxu0 0
  %350 = vmatprep.subr.bf16.mxu0 0
  %351 = vmatpush1.bf16.msra.mxu0 0
  %352 = vmatprep.subr.bf16.mxu0 0
  %353 = vmatpush1.bf16.msra.mxu0 0
  %354 = vmatprep.subr.bf16.mxu0 0
  %355 = vmatpush1.bf16.msra.mxu0 0
  %356 = vmatprep.mubr.bf16.mxu0 0
  %357 = vmatmul.mubr.bf16.gmra.mrb[0].mxu0 %v92
  %v358 = vpop.f32.mrb[0].mxu0
  %v359 = vadd.f32 %v139, %v358
  %v360 = vpop.f32.mrb[0].mxu0
  %v361 = vpop.f32.mrb[0].mxu0
  %v362 = vadd.f32 %v139, %v361
  %v363 = vpop.f32.mrb[0].mxu0
  %364 = vmatprep.mubr.bf16.mxu0 0
  %365 = vmatmul.mubr.bf16.gmra.mrb[0].mxu0 %v93
  %v366 = vpop.f32.mrb[0].mxu0
  %v367 = vadd.f32 %v139, %v366
  %v368 = vpop.f32.mrb[0].mxu0
  %v369 = vpop.f32.mrb[0].mxu0
  %v370 = vadd.f32 %v139, %v369
  %v371 = vpop.f32.mrb[0].mxu0
  %372 = vdwg.mxu0
  %v373 = vpack.c.bf16 %v310, %v306
  %v374 = vpack.c.bf16 %v312, %v308
  %v375 = vpack.c.bf16 %v362, %v359
  %v376 = vpack.c.bf16 %v320, %v316
  %v377 = vpack.c.bf16 %v322, %v318
  %v378 = vpack.c.bf16 %v370, %v367
  %v385 = vunpack.c.l.b16 %v373
  %v386 = vunpack.c.l.b16 %v374
  %v387 = vunpack.c.l.b16 %v375
  %v388 = vunpack.c.h.b16 %v373
  %v389 = vunpack.c.h.b16 %v374
  %v390 = vunpack.c.h.b16 %v375
  %v391 = vunpack.c.l.b16 %v376
  %v392 = vunpack.c.l.b16 %v377
  %v393 = vunpack.c.l.b16 %v378
  %v394 = vunpack.c.h.b16 %v376
  %v395 = vunpack.c.h.b16 %v377
  %v396 = vunpack.c.h.b16 %v378
  %v397 = vpack.c.b16 %v386, %v385
  %v398 = vpack.c.b16 %v387, %v387
  %v399 = vpack.c.b16 %v389, %v388
  %v400 = vpack.c.b16 %v390, %v390
  %v401 = vpack.c.b16 %v392, %v391
  %v402 = vpack.c.b16 %v393, %v393
  %v403 = vpack.c.b16 %v395, %v394
  %v404 = vpack.c.b16 %v396, %v396
  %413 = vst [vmem:[%s5] sm:$0xff] %v397
  %414 = vst [vmem:[%s5 + $0x8] sm:$0xf] %v398
  %415 = vst [vmem:[%s5 + $0xc] sm:$0xff] %v399
  %416 = vst [vmem:[%s5 + $0x14] sm:$0xf] %v400
  %417 = vst [vmem:[%s5 + $0x18] sm:$0xff] %v401
  %418 = vst [vmem:[%s5 + $0x20] sm:$0xf] %v402
  %419 = vst [vmem:[%s5 + $0x24] sm:$0xff] %v403
  %420 = vst [vmem:[%s5 + $0x2c] sm:$0xf] %v404
  // Predicated region
  $region22: #{_denoiser_forward_impl.2} parent=0 // pred_check
    _
  $region23: #{_denoiser_forward_impl.2} parent=0 // pred_check_branch
    %422 = sbr.rel (0) target = $region25
  $region24: #{_denoiser_forward_impl.2} parent=0 // pred_region
    _
  $region25: #{_denoiser_forward_impl.2} parent=0 // pred_fallthru
    _
  // Predicated region
  $region26: #{_denoiser_forward_impl.2} parent=0 // pred_check
    _
  $region27: #{_denoiser_forward_impl.2} parent=0 // pred_check_branch
    %424 = sbr.rel (0) target = $region29
  $region28: #{_denoiser_forward_impl.2} parent=0 // pred_region
    _
  $region29: #{_denoiser_forward_impl.2} parent=0 // pred_fallthru
    _

// kernel: _denoiser_forward_impl.3
$region0: #{_denoiser_forward_impl.3}
  #allocation0 [shape = 'u32[]', space=smem, size = 0x4, offset = 0x4, fixed_abs, tag = 'smem constant byte address 0x4 - core index']
  #allocation1 [shape = 'u32[144,128]{1,0:T(1,128)}', space=vmem, size = 0x12000, scoped, tag = 'internal scratch']
  #allocation2 [shape = 'f32[2,16,1]{2,1,0:T(8,128)}', space=vmem, size = 0x4000, scoped, tag = 'scratch operand']
  #allocation3 [shape = 'f32[2,16,1]{2,1,0:T(8,128)}', space=vmem, size = 0x4000, scoped, tag = 'scratch operand']
  #allocation4 [shape = 'f32[2,16,64]{2,1,0:T(8,128)}', space=vmem, size = 0x4000, scoped, tag = 'scratch operand']
  %s0 = inlined_call_operand.vmem [shape: f32[2,16,128], index: 0, kind: input, shape index: {}]
  %s1 = inlined_call_operand.vmem [shape: bf16[2,2,16,64], index: 1, kind: input, shape index: {}]
  %s2 = inlined_call_operand.vmem [shape: bf16[2,2,16,64], index: 2, kind: input, shape index: {}]
  %s3 = inlined_call_operand.vmem [shape: bf16[2,2,16,64], index: 3, kind: input, shape index: {}]
  %s4 = inlined_call_operand.vmem [shape: bf16[2,64,128], index: 4, kind: input, shape index: {}]
  %s5 = inlined_call_operand.vmem [shape: f32[1,128], index: 5, kind: input, shape index: {}]
  %s6 = inlined_call_operand.vmem [shape: f32[1,128], index: 6, kind: input, shape index: {}]
  %s7 = inlined_call_operand.vmem [shape: f32[1,128], index: 7, kind: input, shape index: {}]
  %s8 = inlined_call_operand.vmem [shape: bf16[128,512], index: 8, kind: input, shape index: {}]
  %s9 = inlined_call_operand.vmem [shape: f32[1,512], index: 9, kind: input, shape index: {}]
  %s10 = inlined_call_operand.vmem [shape: bf16[512,128], index: 10, kind: input, shape index: {}]
  %s11 = inlined_call_operand.vmem [shape: f32[1,128], index: 11, kind: input, shape index: {}]
  %s12 = inlined_call_operand.vmem [shape: f32[1,128], index: 12, kind: input, shape index: {}]
  %s13 = inlined_call_operand.vmem [shape: f32[1,128], index: 13, kind: input, shape index: {}]
  %s14 = inlined_call_operand.hbm [shape: f32[2,16,128], index: 14, kind: output, shape index: {}]
  %s15 = sld [smem:[#allocation0]]
  $region97: #{_denoiser_forward_impl.3} parent=0
    _
  %s17 = ssub.s32 1, %s15
  %s18 = scalar_select 0, %s17, %s15
  $region1: #{_denoiser_forward_impl.3} parent=0
    #allocation5 [shape = 'u8[16384]{0}', space=vmem, size = 0x4000, scoped, tag = 'output window, operand 0']
    #allocation6 [shape = 's32[2]{0}', space=sflag, size = 0x8, scoped, tag = 'scoped memory for _denoiser_forward_impl.3']
    %19 = vsyncpa [#allocation6], 0
    %s20 = scalar_lea.sflag [#allocation6], 1
    %21 = vsyncpa %s20, 0
    loop: start=0, step=1, limit=4
    $region2: #{_denoiser_forward_impl.3} parent=1 // loop_pre_header
      _
    $region3: #{_denoiser_forward_impl.3} parent=1 // loop_header
      %s23 = sphi 0, %s27
      %p24 = scmp.ge.s32.totalorder %s23, 4
      %s30 = sphi 0, %s49
      %s31 = sphi 0, %s45
      %s32 = sphi 0, %s41
      %s33 = sphi 0, %s30
      %s34 = sphi 0, %s31
      %s35 = sphi 0, %s32
      %s36 = sphi 0, %s33
      %s37 = sphi 0, %s34
      %s38 = sphi 0, %s35
      %s54 = sphi 0, %s56
      %s57 = sphi 0, %s54
      %s58 = sphi 0, %s57
      %s74 = sphi 0, %s58
      %s82 = sphi 0, %s84
      %s85 = sphi 0, %s82
      %s86 = sphi 0, %s85
      %s102 = sphi 0, %s86
      %s110 = sphi 0, %s112
      %s113 = sphi 0, %s110
      %s114 = sphi 0, %s113
      %s130 = sphi 0, %s114
      %s138 = sphi 0, %s140
      %s141 = sphi 0, %s138
      %s142 = sphi 0, %s141
      %s158 = sphi 0, %s142
      %s162 = sphi 0, %s162
      %s164 = sphi 0, %s162
      %s165 = sphi 0, %s164
      %s179 = sphi 0, %s165
      %s183 = sphi 0, %s183
      %s185 = sphi 0, %s183
      %s186 = sphi 0, %s185
      %s200 = sphi 0, %s186
      %s204 = sphi 0, %s204
      %s206 = sphi 0, %s204
      %s207 = sphi 0, %s206
      %s221 = sphi 0, %s207
      %s225 = sphi 0, %s225
      %s227 = sphi 0, %s225
      %s228 = sphi 0, %s227
      %s242 = sphi 0, %s228
      %s246 = sphi 0, %s246
      %s248 = sphi 0, %s246
      %s249 = sphi 0, %s248
      %s263 = sphi 0, %s249
      %s267 = sphi 0, %s267
      %s269 = sphi 0, %s267
      %s270 = sphi 0, %s269
      %s284 = sphi 0, %s270
      %s288 = sphi 0, %s288
      %s290 = sphi 0, %s288
      %s291 = sphi 0, %s290
      %s305 = sphi 0, %s291
      %s309 = sphi 0, %s309
      %s311 = sphi 0, %s309
      %s312 = sphi 0, %s311
      %s326 = sphi 0, %s312
      %s330 = sphi 0, %s330
      %s332 = sphi 0, %s330
      %s333 = sphi 0, %s332
      %s347 = sphi 0, %s333
      %s351 = sphi 0, %s351
      %s353 = sphi 0, %s351
      %s354 = sphi 0, %s353
      %s368 = sphi 0, %s354
      %s376 = sphi 0, %s378
      %s379 = sphi 0, %s376
      %s380 = sphi 0, %s379
      %s396 = sphi 0, %s380
    $region4: #{_denoiser_forward_impl.3} parent=1 // loop_header_branch
      %26 = sbr.rel (%p24) target = $region8
    $region5: #{_denoiser_forward_impl.3} parent=1 // loop_body
      %s28 = ssub.s32 %s23, 1
      %s29 = ssub.s32 %s23, 2
      %s39 = sadd.s32 1, %s32
      %p40 = scmp.ge.s32.totalorder %s39, 1
      %s41 = scalar_select %p40, 0, %s39
      %s42 = sadd.s32 1, %s31
      %s43 = scalar_select %p40, %s42, %s31
      %p44 = scmp.ge.s32.totalorder %s43, 1
      %s45 = scalar_select %p44, 0, %s43
      %s46 = sadd.s32 1, %s30
      %s47 = scalar_select %p44, %s46, %s30
      %p48 = scmp.ge.s32.totalorder %s47, 2
      %s49 = scalar_select %p48, 0, %s47
      %s50 = ssub.s32 %s30, %s49
      %s51 = ssub.s32 %s31, %s45
      %s52 = sor.u32 %s50, %s51
      %p53 = scmp.eq.s32.totalorder %s52, 0
      %s55 = sadd.s32 %s54, 1
      %s56 = scalar_select %p53, %s54, %s55
      %p59 = pneg %p53
      %p60 = scmp.eq.s32.totalorder %s23, 1
      %p61 = por %p59, %p60
      %p62 = scmp.ne.s32.totalorder %s54, %s57
      %p63 = scmp.eq.s32.totalorder %s23, 0
      %p64 = por %p62, %p63
      %p65 = scmp.ne.s32.totalorder %s54, %s57
      %p66 = scmp.eq.s32.totalorder %s28, 1
      %p67 = por %p65, %p66
      %p68 = scmp.ne.s32.totalorder %s57, %s58
      %p69 = scmp.eq.s32.totalorder %s28, 0
      %p70 = por %p68, %p69
      %p71 = scmp.ne.s32.totalorder %s57, %s58
      %p72 = scmp.eq.s32.totalorder %s29, 1
      %p73 = por %p71, %p72
      %p75 = scmp.ne.s32.totalorder %s58, %s74
      %p76 = scmp.eq.s32.totalorder %s29, 0
      %p77 = por %p75, %p76
      %s78 = ssub.s32 %s30, %s49
      %s79 = ssub.s32 %s31, %s45
      %s80 = sor.u32 %s78, %s79
      %p81 = scmp.eq.s32.totalorder %s80, 0
      %s83 = sadd.s32 %s82, 1
      %s84 = scalar_select %p81, %s82, %s83
      %p87 = pneg %p81
      %p88 = scmp.eq.s32.totalorder %s23, 1
      %p89 = por %p87, %p88
      %p90 = scmp.ne.s32.totalorder %s82, %s85
      %p91 = scmp.eq.s32.totalorder %s23, 0
      %p92 = por %p90, %p91
      %p93 = scmp.ne.s32.totalorder %s82, %s85
      %p94 = scmp.eq.s32.totalorder %s28, 1
      %p95 = por %p93, %p94
      %p96 = scmp.ne.s32.totalorder %s85, %s86
      %p97 = scmp.eq.s32.totalorder %s28, 0
      %p98 = por %p96, %p97
      %p99 = scmp.ne.s32.totalorder %s85, %s86
      %p100 = scmp.eq.s32.totalorder %s29, 1
      %p101 = por %p99, %p100
      %p103 = scmp.ne.s32.totalorder %s86, %s102
      %p104 = scmp.eq.s32.totalorder %s29, 0
      %p105 = por %p103, %p104
      %s106 = ssub.s32 %s30, %s49
      %s107 = ssub.s32 %s32, %s41
      %s108 = sor.u32 %s106, %s107
      %p109 = scmp.eq.s32.totalorder %s108, 0
      %s111 = sadd.s32 %s110, 1
      %s112 = scalar_select %p109, %s110, %s111
      %p115 = pneg %p109
      %p116 = scmp.eq.s32.totalorder %s23, 1
      %p117 = por %p115, %p116
      %p118 = scmp.ne.s32.totalorder %s110, %s113
      %p119 = scmp.eq.s32.totalorder %s23, 0
      %p120 = por %p118, %p119
      %p121 = scmp.ne.s32.totalorder %s110, %s113
      %p122 = scmp.eq.s32.totalorder %s28, 1
      %p123 = por %p121, %p122
      %p124 = scmp.ne.s32.totalorder %s113, %s114
      %p125 = scmp.eq.s32.totalorder %s28, 0
      %p126 = por %p124, %p125
      %p127 = scmp.ne.s32.totalorder %s113, %s114
      %p128 = scmp.eq.s32.totalorder %s29, 1
      %p129 = por %p127, %p128
      %p131 = scmp.ne.s32.totalorder %s114, %s130
      %p132 = scmp.eq.s32.totalorder %s29, 0
      %p133 = por %p131, %p132
      %s134 = ssub.s32 %s30, %s49
      %s135 = ssub.s32 %s32, %s41
      %s136 = sor.u32 %s134, %s135
      %p137 = scmp.eq.s32.totalorder %s136, 0
      %s139 = sadd.s32 %s138, 1
      %s140 = scalar_select %p137, %s138, %s139
      %p143 = pneg %p137
      %p144 = scmp.eq.s32.totalorder %s23, 1
      %p145 = por %p143, %p144
      %p146 = scmp.ne.s32.totalorder %s138, %s141
      %p147 = scmp.eq.s32.totalorder %s23, 0
      %p148 = por %p146, %p147
      %p149 = scmp.ne.s32.totalorder %s138, %s141
      %p150 = scmp.eq.s32.totalorder %s28, 1
      %p151 = por %p149, %p150
      %p152 = scmp.ne.s32.totalorder %s141, %s142
      %p153 = scmp.eq.s32.totalorder %s28, 0
      %p154 = por %p152, %p153
      %p155 = scmp.ne.s32.totalorder %s141, %s142
      %p156 = scmp.eq.s32.totalorder %s29, 1
      %p157 = por %p155, %p156
      %p159 = scmp.ne.s32.totalorder %s142, %s158
      %p160 = scmp.eq.s32.totalorder %s29, 0
      %p161 = por %p159, %p160
      %s163 = sadd.s32 %s162, 1
      %p166 = scmp.eq.s32.totalorder %s23, 1
      %p167 = scmp.ne.s32.totalorder %s162, %s164
      %p168 = scmp.eq.s32.totalorder %s23, 0
      %p169 = por %p167, %p168
      %p170 = scmp.ne.s32.totalorder %s162, %s164
      %p171 = scmp.eq.s32.totalorder %s28, 1
      %p172 = por %p170, %p171
      %p173 = scmp.ne.s32.totalorder %s164, %s165
      %p174 = scmp.eq.s32.totalorder %s28, 0
      %p175 = por %p173, %p174
      %p176 = scmp.ne.s32.totalorder %s164, %s165
      %p177 = scmp.eq.s32.totalorder %s29, 1
      %p178 = por %p176, %p177
      %p180 = scmp.ne.s32.totalorder %s165, %s179
      %p181 = scmp.eq.s32.totalorder %s29, 0
      %p182 = por %p180, %p181
      %s184 = sadd.s32 %s183, 1
      %p187 = scmp.eq.s32.totalorder %s23, 1
      %p188 = scmp.ne.s32.totalorder %s183, %s185
      %p189 = scmp.eq.s32.totalorder %s23, 0
      %p190 = por %p188, %p189
      %p191 = scmp.ne.s32.totalorder %s183, %s185
      %p192 = scmp.eq.s32.totalorder %s28, 1
      %p193 = por %p191, %p192
      %p194 = scmp.ne.s32.totalorder %s185, %s186
      %p195 = scmp.eq.s32.totalorder %s28, 0
      %p196 = por %p194, %p195
      %p197 = scmp.ne.s32.totalorder %s185, %s186
      %p198 = scmp.eq.s32.totalorder %s29, 1
      %p199 = por %p197, %p198
      %p201 = scmp.ne.s32.totalorder %s186, %s200
      %p202 = scmp.eq.s32.totalorder %s29, 0
      %p203 = por %p201, %p202
      %s205 = sadd.s32 %s204, 1
      %p208 = scmp.eq.s32.totalorder %s23, 1
      %p209 = scmp.ne.s32.totalorder %s204, %s206
      %p210 = scmp.eq.s32.totalorder %s23, 0
      %p211 = por %p209, %p210
      %p212 = scmp.ne.s32.totalorder %s204, %s206
      %p213 = scmp.eq.s32.totalorder %s28, 1
      %p214 = por %p212, %p213
      %p215 = scmp.ne.s32.totalorder %s206, %s207
      %p216 = scmp.eq.s32.totalorder %s28, 0
      %p217 = por %p215, %p216
      %p218 = scmp.ne.s32.totalorder %s206, %s207
      %p219 = scmp.eq.s32.totalorder %s29, 1
      %p220 = por %p218, %p219
      %p222 = scmp.ne.s32.totalorder %s207, %s221
      %p223 = scmp.eq.s32.totalorder %s29, 0
      %p224 = por %p222, %p223
      %s226 = sadd.s32 %s225, 1
      %p229 = scmp.eq.s32.totalorder %s23, 1
      %p230 = scmp.ne.s32.totalorder %s225, %s227
      %p231 = scmp.eq.s32.totalorder %s23, 0
      %p232 = por %p230, %p231
      %p233 = scmp.ne.s32.totalorder %s225, %s227
      %p234 = scmp.eq.s32.totalorder %s28, 1
      %p235 = por %p233, %p234
      %p236 = scmp.ne.s32.totalorder %s227, %s228
      %p237 = scmp.eq.s32.totalorder %s28, 0
      %p238 = por %p236, %p237
      %p239 = scmp.ne.s32.totalorder %s227, %s228
      %p240 = scmp.eq.s32.totalorder %s29, 1
      %p241 = por %p239, %p240
      %p243 = scmp.ne.s32.totalorder %s228, %s242
      %p244 = scmp.eq.s32.totalorder %s29, 0
      %p245 = por %p243, %p244
      %s247 = sadd.s32 %s246, 1
      %p250 = scmp.eq.s32.totalorder %s23, 1
      %p251 = scmp.ne.s32.totalorder %s246, %s248
      %p252 = scmp.eq.s32.totalorder %s23, 0
      %p253 = por %p251, %p252
      %p254 = scmp.ne.s32.totalorder %s246, %s248
      %p255 = scmp.eq.s32.totalorder %s28, 1
      %p256 = por %p254, %p255
      %p257 = scmp.ne.s32.totalorder %s248, %s249
      %p258 = scmp.eq.s32.totalorder %s28, 0
      %p259 = por %p257, %p258
      %p260 = scmp.ne.s32.totalorder %s248, %s249
      %p261 = scmp.eq.s32.totalorder %s29, 1
      %p262 = por %p260, %p261
      %p264 = scmp.ne.s32.totalorder %s249, %s263
      %p265 = scmp.eq.s32.totalorder %s29, 0
      %p266 = por %p264, %p265
      %s268 = sadd.s32 %s267, 1
      %p271 = scmp.eq.s32.totalorder %s23, 1
      %p272 = scmp.ne.s32.totalorder %s267, %s269
      %p273 = scmp.eq.s32.totalorder %s23, 0
      %p274 = por %p272, %p273
      %p275 = scmp.ne.s32.totalorder %s267, %s269
      %p276 = scmp.eq.s32.totalorder %s28, 1
      %p277 = por %p275, %p276
      %p278 = scmp.ne.s32.totalorder %s269, %s270
      %p279 = scmp.eq.s32.totalorder %s28, 0
      %p280 = por %p278, %p279
      %p281 = scmp.ne.s32.totalorder %s269, %s270
      %p282 = scmp.eq.s32.totalorder %s29, 1
      %p283 = por %p281, %p282
      %p285 = scmp.ne.s32.totalorder %s270, %s284
      %p286 = scmp.eq.s32.totalorder %s29, 0
      %p287 = por %p285, %p286
      %s289 = sadd.s32 %s288, 1
      %p292 = scmp.eq.s32.totalorder %s23, 1
      %p293 = scmp.ne.s32.totalorder %s288, %s290
      %p294 = scmp.eq.s32.totalorder %s23, 0
      %p295 = por %p293, %p294
      %p296 = scmp.ne.s32.totalorder %s288, %s290
      %p297 = scmp.eq.s32.totalorder %s28, 1
      %p298 = por %p296, %p297
      %p299 = scmp.ne.s32.totalorder %s290, %s291
      %p300 = scmp.eq.s32.totalorder %s28, 0
      %p301 = por %p299, %p300
      %p302 = scmp.ne.s32.totalorder %s290, %s291
      %p303 = scmp.eq.s32.totalorder %s29, 1
      %p304 = por %p302, %p303
      %p306 = scmp.ne.s32.totalorder %s291, %s305
      %p307 = scmp.eq.s32.totalorder %s29, 0
      %p308 = por %p306, %p307
      %s310 = sadd.s32 %s309, 1
      %p313 = scmp.eq.s32.totalorder %s23, 1
      %p314 = scmp.ne.s32.totalorder %s309, %s311
      %p315 = scmp.eq.s32.totalorder %s23, 0
      %p316 = por %p314, %p315
      %p317 = scmp.ne.s32.totalorder %s309, %s311
      %p318 = scmp.eq.s32.totalorder %s28, 1
      %p319 = por %p317, %p318
      %p320 = scmp.ne.s32.totalorder %s311, %s312
      %p321 = scmp.eq.s32.totalorder %s28, 0
      %p322 = por %p320, %p321
      %p323 = scmp.ne.s32.totalorder %s311, %s312
      %p324 = scmp.eq.s32.totalorder %s29, 1
      %p325 = por %p323, %p324
      %p327 = scmp.ne.s32.totalorder %s312, %s326
      %p328 = scmp.eq.s32.totalorder %s29, 0
      %p329 = por %p327, %p328
      %s331 = sadd.s32 %s330, 1
      %p334 = scmp.eq.s32.totalorder %s23, 1
      %p335 = scmp.ne.s32.totalorder %s330, %s332
      %p336 = scmp.eq.s32.totalorder %s23, 0
      %p337 = por %p335, %p336
      %p338 = scmp.ne.s32.totalorder %s330, %s332
      %p339 = scmp.eq.s32.totalorder %s28, 1
      %p340 = por %p338, %p339
      %p341 = scmp.ne.s32.totalorder %s332, %s333
      %p342 = scmp.eq.s32.totalorder %s28, 0
      %p343 = por %p341, %p342
      %p344 = scmp.ne.s32.totalorder %s332, %s333
      %p345 = scmp.eq.s32.totalorder %s29, 1
      %p346 = por %p344, %p345
      %p348 = scmp.ne.s32.totalorder %s333, %s347
      %p349 = scmp.eq.s32.totalorder %s29, 0
      %p350 = por %p348, %p349
      %s352 = sadd.s32 %s351, 1
      %p355 = scmp.eq.s32.totalorder %s23, 1
      %p356 = scmp.ne.s32.totalorder %s351, %s353
      %p357 = scmp.eq.s32.totalorder %s23, 0
      %p358 = por %p356, %p357
      %p359 = scmp.ne.s32.totalorder %s351, %s353
      %p360 = scmp.eq.s32.totalorder %s28, 1
      %p361 = por %p359, %p360
      %p362 = scmp.ne.s32.totalorder %s353, %s354
      %p363 = scmp.eq.s32.totalorder %s28, 0
      %p364 = por %p362, %p363
      %p365 = scmp.ne.s32.totalorder %s353, %s354
      %p366 = scmp.eq.s32.totalorder %s29, 1
      %p367 = por %p365, %p366
      %p369 = scmp.ne.s32.totalorder %s354, %s368
      %p370 = scmp.eq.s32.totalorder %s29, 0
      %p371 = por %p369, %p370
      %s372 = ssub.s32 %s30, %s49
      %s373 = ssub.s32 %s31, %s45
      %s374 = sor.u32 %s372, %s373
      %p375 = scmp.eq.s32.totalorder %s374, 0
      %s377 = sadd.s32 %s376, 1
      %s378 = scalar_select %p375, %s376, %s377
      %p381 = pneg %p375
      %p382 = scmp.eq.s32.totalorder %s23, 1
      %p383 = por %p381, %p382
      %p384 = scmp.ne.s32.totalorder %s376, %s379
      %p385 = scmp.eq.s32.totalorder %s23, 0
      %p386 = por %p384, %p385
      %p387 = scmp.ne.s32.totalorder %s376, %s379
      %p388 = scmp.eq.s32.totalorder %s28, 1
      %p389 = por %p387, %p388
      %p390 = scmp.ne.s32.totalorder %s379, %s380
      %p391 = scmp.eq.s32.totalorder %s28, 0
      %p392 = por %p390, %p391
      %p393 = scmp.ne.s32.totalorder %s379, %s380
      %p394 = scmp.eq.s32.totalorder %s29, 1
      %p395 = por %p393, %p394
      %p397 = scmp.ne.s32.totalorder %s380, %s396
      %p398 = scmp.eq.s32.totalorder %s29, 0
      %p399 = por %p397, %p398
      %p400 = scmp.le.s32.totalorder 1, %s23
      %p401 = scmp.lt.s32.totalorder %s23, 3
      %p402 = pnand %p400, %p401
      %p403 = pneg %p402
      // Predicated region
      $region9: #{_denoiser_forward_impl.3} parent=5 // pred_check
        _
      $region10: #{_denoiser_forward_impl.3} parent=5 // pred_check_branch
        %405 = sbr.rel (%p402) target = $region12
      $region11: #{_denoiser_forward_impl.3} parent=5 // pred_region
        %s406 = ssub.s32 %s23, 1
        // Predicated region
        $region13: #{_denoiser_forward_impl.3} parent=11 // pred_check
          %p407 = pneg %p175
        $region14: #{_denoiser_forward_impl.3} parent=11 // pred_check_branch
          %409 = sbr.rel (%p407) target = $region16
        $region15: #{_denoiser_forward_impl.3} parent=11 // pred_region
          _
        $region16: #{_denoiser_forward_impl.3} parent=11 // pred_fallthru
          _
        // Predicated region
        $region17: #{_denoiser_forward_impl.3} parent=11 // pred_check
          %p410 = pneg %p196
        $region18: #{_denoiser_forward_impl.3} parent=11 // pred_check_branch
          %412 = sbr.rel (%p410) target = $region20
        $region19: #{_denoiser_forward_impl.3} parent=11 // pred_region
          _
        $region20: #{_denoiser_forward_impl.3} parent=11 // pred_fallthru
          _
        // Predicated region
        $region21: #{_denoiser_forward_impl.3} parent=11 // pred_check
          %p413 = pneg %p217
        $region22: #{_denoiser_forward_impl.3} parent=11 // pred_check_branch
          %415 = sbr.rel (%p413) target = $region24
        $region23: #{_denoiser_forward_impl.3} parent=11 // pred_region
          _
        $region24: #{_denoiser_forward_impl.3} parent=11 // pred_fallthru
          _
        // Predicated region
        $region25: #{_denoiser_forward_impl.3} parent=11 // pred_check
          %p416 = pneg %p238
        $region26: #{_denoiser_forward_impl.3} parent=11 // pred_check_branch
          %418 = sbr.rel (%p416) target = $region28
        $region27: #{_denoiser_forward_impl.3} parent=11 // pred_region
          _
        $region28: #{_denoiser_forward_impl.3} parent=11 // pred_fallthru
          _
        // Predicated region
        $region29: #{_denoiser_forward_impl.3} parent=11 // pred_check
          %p419 = pneg %p259
        $region30: #{_denoiser_forward_impl.3} parent=11 // pred_check_branch
          %421 = sbr.rel (%p419) target = $region32
        $region31: #{_denoiser_forward_impl.3} parent=11 // pred_region
          _
        $region32: #{_denoiser_forward_impl.3} parent=11 // pred_fallthru
          _
        // Predicated region
        $region33: #{_denoiser_forward_impl.3} parent=11 // pred_check
          %p422 = pneg %p280
        $region34: #{_denoiser_forward_impl.3} parent=11 // pred_check_branch
          %424 = sbr.rel (%p422) target = $region36
        $region35: #{_denoiser_forward_impl.3} parent=11 // pred_region
          _
        $region36: #{_denoiser_forward_impl.3} parent=11 // pred_fallthru
          _
        // Predicated region
        $region37: #{_denoiser_forward_impl.3} parent=11 // pred_check
          %p425 = pneg %p301
        $region38: #{_denoiser_forward_impl.3} parent=11 // pred_check_branch
          %427 = sbr.rel (%p425) target = $region40
        $region39: #{_denoiser_forward_impl.3} parent=11 // pred_region
          _
        $region40: #{_denoiser_forward_impl.3} parent=11 // pred_fallthru
          _
        // Predicated region
        $region41: #{_denoiser_forward_impl.3} parent=11 // pred_check
          %p428 = pneg %p322
        $region42: #{_denoiser_forward_impl.3} parent=11 // pred_check_branch
          %430 = sbr.rel (%p428) target = $region44
        $region43: #{_denoiser_forward_impl.3} parent=11 // pred_region
          _
        $region44: #{_denoiser_forward_impl.3} parent=11 // pred_fallthru
          _
        // Predicated region
        $region45: #{_denoiser_forward_impl.3} parent=11 // pred_check
          %p431 = pneg %p343
        $region46: #{_denoiser_forward_impl.3} parent=11 // pred_check_branch
          %433 = sbr.rel (%p431) target = $region48
        $region47: #{_denoiser_forward_impl.3} parent=11 // pred_region
          _
        $region48: #{_denoiser_forward_impl.3} parent=11 // pred_fallthru
          _
        // Predicated region
        $region49: #{_denoiser_forward_impl.3} parent=11 // pred_check
          %p434 = pneg %p364
        $region50: #{_denoiser_forward_impl.3} parent=11 // pred_check_branch
          %436 = sbr.rel (%p434) target = $region52
        $region51: #{_denoiser_forward_impl.3} parent=11 // pred_region
          _
        $region52: #{_denoiser_forward_impl.3} parent=11 // pred_fallthru
          _
      $region12: #{_denoiser_forward_impl.3} parent=5 // pred_fallthru
        _
      %p437 = scmp.lt.s32.totalorder %s23, 2
      // Predicated region
      $region53: #{_denoiser_forward_impl.3} parent=5 // pred_check
        %p438 = pneg %p437
      $region54: #{_denoiser_forward_impl.3} parent=5 // pred_check_branch
        %440 = sbr.rel (%p438) target = $region56
      $region55: #{_denoiser_forward_impl.3} parent=5 // pred_region
        // Predicated region
        $region57: #{_denoiser_forward_impl.3} parent=55 // pred_check
          %p441 = pneg %p64
        $region58: #{_denoiser_forward_impl.3} parent=55 // pred_check_branch
          %443 = sbr.rel (%p441) target = $region60
        $region59: #{_denoiser_forward_impl.3} parent=55 // pred_region
          %s444 = smul.u32 2, %s31
          %p445 = scmp.lt.s32.totalorder %s30, 1
          %s446 = scalar_select %p445, %s30, 1
          %p447 = scmp.lt.s32.totalorder %s444, 1
          %s448 = scalar_select %p447, %s444, 1
          %s449 = smul.addr %s446, 2
          %s450 = sadd.s32 %s448, %s449
          %s451 = smul.addr %s450, 8
          %s452 = scalar_lea.vmem %s0, %s451
          %s453 = smul.u32 2, %s31
        $region60: #{_denoiser_forward_impl.3} parent=55 // pred_fallthru
          _
        // Predicated region
        $region61: #{_denoiser_forward_impl.3} parent=55 // pred_check
          %p454 = pneg %p92
        $region62: #{_denoiser_forward_impl.3} parent=55 // pred_check_branch
          %456 = sbr.rel (%p454) target = $region64
        $region63: #{_denoiser_forward_impl.3} parent=55 // pred_region
          %s457 = smul.u32 2, %s31
          %p458 = scmp.lt.s32.totalorder %s30, 1
          %s459 = scalar_select %p458, %s30, 1
          %p460 = scmp.lt.s32.totalorder %s457, 1
          %s461 = scalar_select %p460, %s457, 1
          %s462 = smul.addr %s459, 4
          %s463 = sadd.s32 %s461, %s462
          %s464 = smul.addr %s463, 4
          %s465 = scalar_lea.vmem %s1, %s464
          %s466 = smul.u32 2, %s31
        $region64: #{_denoiser_forward_impl.3} parent=55 // pred_fallthru
          _
        // Predicated region
        $region65: #{_denoiser_forward_impl.3} parent=55 // pred_check
          %p467 = pneg %p120
        $region66: #{_denoiser_forward_impl.3} parent=55 // pred_check_branch
          %469 = sbr.rel (%p467) target = $region68
        $region67: #{_denoiser_forward_impl.3} parent=55 // pred_region
          %s470 = smul.u32 2, %s32
          %p471 = scmp.lt.s32.totalorder %s30, 1
          %s472 = scalar_select %p471, %s30, 1
          %p473 = scmp.lt.s32.totalorder %s470, 1
          %s474 = scalar_select %p473, %s470, 1
          %s475 = smul.addr %s472, 4
          %s476 = sadd.s32 %s474, %s475
          %s477 = smul.addr %s476, 4
          %s478 = scalar_lea.vmem %s2, %s477
          %s479 = smul.u32 2, %s32
        $region68: #{_denoiser_forward_impl.3} parent=55 // pred_fallthru
          _
        // Predicated region
        $region69: #{_denoiser_forward_impl.3} parent=55 // pred_check
          %p480 = pneg %p148
        $region70: #{_denoiser_forward_impl.3} parent=55 // pred_check_branch
          %482 = sbr.rel (%p480) target = $region72
        $region71: #{_denoiser_forward_impl.3} parent=55 // pred_region
          %s483 = smul.u32 2, %s32
          %p484 = scmp.lt.s32.totalorder %s30, 1
          %s485 = scalar_select %p484, %s30, 1
          %p486 = scmp.lt.s32.totalorder %s483, 1
          %s487 = scalar_select %p486, %s483, 1
          %s488 = smul.addr %s485, 4
          %s489 = sadd.s32 %s487, %s488
          %s490 = smul.addr %s489, 4
          %s491 = scalar_lea.vmem %s3, %s490
          %s492 = smul.u32 2, %s32
        $region72: #{_denoiser_forward_impl.3} parent=55 // pred_fallthru
          _
      $region56: #{_denoiser_forward_impl.3} parent=5 // pred_fallthru
        _
      %p493 = scmp.le.s32.totalorder 1, %s23
      %p494 = scmp.lt.s32.totalorder %s23, 3
      %p495 = pnand %p493, %p494
      %p496 = pneg %p495
      // Predicated region
      $region73: #{_denoiser_forward_impl.3} parent=5 // pred_check
        _
      $region74: #{_denoiser_forward_impl.3} parent=5 // pred_check_branch
        %498 = sbr.rel (%p495) target = $region76
      $region75: #{_denoiser_forward_impl.3} parent=5 // pred_region
        %s499 = ssub.s32 %s23, 1
        %s500 = smul.u32 2, %s34
        %p501 = scmp.lt.s32.totalorder %s33, 1
        %s502 = scalar_select %p501, %s33, 1
        %p503 = scmp.lt.s32.totalorder %s500, 1
        %s504 = scalar_select %p503, %s500, 1
        %s505 = smul.addr %s502, 2
        %s506 = sadd.s32 %s504, %s505
        %s507 = smul.addr %s506, 8
        %s508 = scalar_lea.vmem %s0, %s507
        %p509 = pneg %p70
        %p510 = pneg %p67
        %s511 = smul.u32 2, %s34
        %p512 = scmp.lt.s32.totalorder %s33, 1
        %s513 = scalar_select %p512, %s33, 1
        %p514 = scmp.lt.s32.totalorder %s511, 1
        %s515 = scalar_select %p514, %s511, 1
        %s516 = smul.addr %s513, 4
        %s517 = sadd.s32 %s515, %s516
        %s518 = smul.addr %s517, 4
        %s519 = scalar_lea.vmem %s1, %s518
        %p520 = pneg %p98
        %p521 = pneg %p95
        %s522 = smul.u32 2, %s35
        %p523 = scmp.lt.s32.totalorder %s33, 1
        %s524 = scalar_select %p523, %s33, 1
        %p525 = scmp.lt.s32.totalorder %s522, 1
        %s526 = scalar_select %p525, %s522, 1
        %s527 = smul.addr %s524, 4
        %s528 = sadd.s32 %s526, %s527
        %s529 = smul.addr %s528, 4
        %s530 = scalar_lea.vmem %s2, %s529
        %p531 = pneg %p126
        %p532 = pneg %p123
        %s533 = smul.u32 2, %s35
        %p534 = scmp.lt.s32.totalorder %s33, 1
        %s535 = scalar_select %p534, %s33, 1
        %p536 = scmp.lt.s32.totalorder %s533, 1
        %s537 = scalar_select %p536, %s533, 1
        %s538 = smul.addr %s535, 4
        %s539 = sadd.s32 %s537, %s538
        %s540 = smul.addr %s539, 4
        %s541 = scalar_lea.vmem %s3, %s540
        %p542 = pneg %p154
        %p543 = pneg %p151
        %p544 = pneg %p175
        %p545 = pneg %p172
        %p546 = pneg %p196
        %p547 = pneg %p193
        %p548 = pneg %p217
        %p549 = pneg %p214
        %p550 = pneg %p238
        %p551 = pneg %p235
        %p552 = pneg %p259
        %p553 = pneg %p256
        %p554 = pneg %p280
        %p555 = pneg %p277
        %p556 = pneg %p301
        %p557 = pneg %p298
        %p558 = pneg %p322
        %p559 = pneg %p319
        %p560 = pneg %p343
        %p561 = pneg %p340
        %p562 = pneg %p364
        %p563 = pneg %p361
        %p564 = pneg %p392
        %p565 = pneg %p389
        %s566 = sand.u32 %s379, 1
        %s567 = scalar_lea.sflag [#allocation6], %s566
        %s568 = sand.u32 %s379, 1
        %s569 = smul.addr %s568, 16
        %s570 = scalar_lea.vmem [#allocation5], %s569
        %s571 = smul.u32 2, %s34
        %p572 = scmp.lt.s32.totalorder %s33, 1
        %s573 = scalar_select %p572, %s33, 1
        %p574 = scmp.lt.s32.totalorder %s571, 1
        %s575 = scalar_select %p574, %s571, 1
        %s576 = smul.addr %s573, 2
        %s577 = sadd.s32 %s575, %s576
        %s578 = smul.addr %s577, 8
        %s579 = scalar_lea.vmem %s0, %s578
        %s580 = smul.u32 2, %s34
        %s581 = smul.u32 2, %s34
        %p582 = scmp.lt.s32.totalorder %s33, 1
        %s583 = scalar_select %p582, %s33, 1
        %p584 = scmp.lt.s32.totalorder %s581, 1
        %s585 = scalar_select %p584, %s581, 1
        %s586 = smul.addr %s583, 4
        %s587 = sadd.s32 %s585, %s586
        %s588 = smul.addr %s587, 4
        %s589 = scalar_lea.vmem %s1, %s588
        %s590 = smul.u32 2, %s34
        %s591 = smul.u32 2, %s35
        %p592 = scmp.lt.s32.totalorder %s33, 1
        %s593 = scalar_select %p592, %s33, 1
        %p594 = scmp.lt.s32.totalorder %s591, 1
        %s595 = scalar_select %p594, %s591, 1
        %s596 = smul.addr %s593, 4
        %s597 = sadd.s32 %s595, %s596
        %s598 = smul.addr %s597, 4
        %s599 = scalar_lea.vmem %s2, %s598
        %s600 = smul.u32 2, %s35
        %s601 = smul.u32 2, %s35
        %p602 = scmp.lt.s32.totalorder %s33, 1
        %s603 = scalar_select %p602, %s33, 1
        %p604 = scmp.lt.s32.totalorder %s601, 1
        %s605 = scalar_select %p604, %s601, 1
        %s606 = smul.addr %s603, 4
        %s607 = sadd.s32 %s605, %s606
        %s608 = smul.addr %s607, 4
        %s609 = scalar_lea.vmem %s3, %s608
        %s610 = smul.u32 2, %s35
        %s611 = smul.u32 2, %s34
        %p613 = scmp.eq.s32.totalorder %s35, 0
        // Predicated region
        $region77: #{_denoiser_forward_impl.3} parent=75 // pred_check
          %p614 = pneg %p613
        $region78: #{_denoiser_forward_impl.3} parent=75 // pred_check_branch
          %616 = sbr.rel (%p614) target = $region80
        $region79: #{_denoiser_forward_impl.3} parent=75 // pred_region
          %vm617 = vcmask 7168
          %618 = vst.msk [vmem:[#allocation2] sm:$0xff] %vm617, -inf
          %619 = vst.msk [vmem:[#allocation2 + $0x8] sm:$0xff] %vm617, -inf
          %620 = vst.msk [vmem:[#allocation2 + $0x10] sm:$0xff] %vm617, -inf
          %621 = vst.msk [vmem:[#allocation2 + $0x18] sm:$0xff] %vm617, -inf
          %622 = vst.msk [vmem:[#allocation3] sm:$0xff] %vm617, 0.0
          %623 = vst.msk [vmem:[#allocation3 + $0x8] sm:$0xff] %vm617, 0.0
          %624 = vst.msk [vmem:[#allocation3 + $0x10] sm:$0xff] %vm617, 0.0
          %625 = vst.msk [vmem:[#allocation3 + $0x18] sm:$0xff] %vm617, 0.0
          %vm626 = vcmask 523264
          %627 = vst.msk [vmem:[#allocation4] sm:$0xff] %vm626, 0.0
          %628 = vst.msk [vmem:[#allocation4 + $0x8] sm:$0xff] %vm626, 0.0
          %629 = vst.msk [vmem:[#allocation4 + $0x10] sm:$0xff] %vm626, 0.0
          %630 = vst.msk [vmem:[#allocation4 + $0x18] sm:$0xff] %vm626, 0.0
        $region80: #{_denoiser_forward_impl.3} parent=75 // pred_fallthru
          _
        %v631 = vld [vmem:[%s589] sm:$0xf]
        %v632 = vld [vmem:[%s589 + $0x4] sm:$0xf]
        %v633 = vld [vmem:[%s589 + $0x8] sm:$0xf]
        %v634 = vld [vmem:[%s589 + $0xc] sm:$0xf]
        %v635 = vld [vmem:[%s599] sm:$0xf]
        %v636 = vld [vmem:[%s599 + $0x4] sm:$0xf]
        %v637 = vld [vmem:[%s599 + $0x8] sm:$0xf]
        %v638 = vld [vmem:[%s599 + $0xc] sm:$0xf]
        %v639 = vld [vmem:[%s609] sm:$0xf]
        %v640 = vld [vmem:[%s609 + $0x4] sm:$0xf]
        %v641 = vld [vmem:[%s609 + $0x8] sm:$0xf]
        %v642 = vld [vmem:[%s609 + $0xc] sm:$0xf]
        %v645 = vunpack.c.l.b16 %v631
        %v646 = vunpack.c.l.b16 %v632
        %v647 = vpack.c.b16 %v646, %v645
        %v650 = vunpack.c.l.b16 %v635
        %v651 = vunpack.c.l.b16 %v636
        %v652 = vpack.c.b16 %v651, %v650
        %vm653 = vcmask 523264
        %v655 = vsel %vm653, %v647, 0
        %v658 = vsel %vm653, %v652, 0
        %660 = vmatprep.subr.bf16.mxu0 0
        %661 = vmatpush1.bf16.xpose.msra.mxu0 %v658
        %662 = vmatprep.subr.bf16.mxu0 0
        %663 = vmatpush1.bf16.xpose.msra.mxu0 0
        %664 = vmatprep.subr.bf16.mxu0 0
        %665 = vmatpush1.bf16.xpose.msra.mxu0 0
        %666 = vmatprep.subr.bf16.mxu0 0
        %667 = vmatpush1.bf16.xpose.msra.mxu0 0
        %668 = vmatprep.subr.bf16.mxu0 0
        %669 = vmatpush1.bf16.xpose.msra.mxu0 0
        %670 = vmatprep.subr.bf16.mxu0 0
        %671 = vmatpush1.bf16.xpose.msra.mxu0 0
        %672 = vmatprep.subr.bf16.mxu0 0
        %673 = vmatpush1.bf16.xpose.msra.mxu0 0
        %674 = vmatprep.subr.bf16.mxu0 0
        %675 = vmatpush1.bf16.xpose.msra.mxu0 0
        %676 = vmatprep.subr.bf16.mxu0 0
        %677 = vmatpush1.bf16.xpose.msra.mxu0 0
        %678 = vmatprep.subr.bf16.mxu0 0
        %679 = vmatpush1.bf16.xpose.msra.mxu0 0
        %680 = vmatprep.subr.bf16.mxu0 0
        %681 = vmatpush1.bf16.xpose.msra.mxu0 0
        %682 = vmatprep.subr.bf16.mxu0 0
        %683 = vmatpush1.bf16.xpose.msra.mxu0 0
        %684 = vmatprep.subr.bf16.mxu0 0
        %685 = vmatpush1.bf16.xpose.msra.mxu0 0
        %686 = vmatprep.subr.bf16.mxu0 0
        %687 = vmatpush1.bf16.xpose.msra.mxu0 0
        %688 = vmatprep.subr.bf16.mxu0 0
        %689 = vmatpush1.bf16.xpose.msra.mxu0 0
        %690 = vmatprep.subr.bf16.mxu0 0
        %691 = vmatpush1.bf16.xpose.msra.mxu0 0
        %692 = vmatprep.mubr.bf16.mxu0 0
        %693 = vmatmul.mubr.bf16.gmra.mrb[0].mxu0 %v655
        %v694 = vpop.f32.mrb[0].mxu0
        %v695 = vadd.f32 0.0, %v694
        %v696 = vpop.f32.mrb[0].mxu0
        %v697 = vpop.f32.mrb[0].mxu0
        %v698 = vadd.f32 0.0, %v697
        %v699 = vpop.f32.mrb[0].mxu0
        %700 = vdwg.mxu0
        %v703 = vunpack.c.l.b16 %v633
        %v704 = vunpack.c.l.b16 %v634
        %v705 = vpack.c.b16 %v704, %v703
        %v708 = vunpack.c.l.b16 %v637
        %v709 = vunpack.c.l.b16 %v638
        %v710 = vpack.c.b16 %v709, %v708
        %v712 = vsel %vm653, %v705, 0
        %v715 = vsel %vm653, %v710, 0
        %717 = vmatprep.subr.bf16.mxu0 0
        %718 = vmatpush1.bf16.xpose.msra.mxu0 %v715
        %719 = vmatprep.subr.bf16.mxu0 0
        %720 = vmatpush1.bf16.xpose.msra.mxu0 0
        %721 = vmatprep.subr.bf16.mxu0 0
        %722 = vmatpush1.bf16.xpose.msra.mxu0 0
        %723 = vmatprep.subr.bf16.mxu0 0
        %724 = vmatpush1.bf16.xpose.msra.mxu0 0
        %725 = vmatprep.subr.bf16.mxu0 0
        %726 = vmatpush1.bf16.xpose.msra.mxu0 0
        %727 = vmatprep.subr.bf16.mxu0 0
        %728 = vmatpush1.bf16.xpose.msra.mxu0 0
        %729 = vmatprep.subr.bf16.mxu0 0
        %730 = vmatpush1.bf16.xpose.msra.mxu0 0
        %731 = vmatprep.subr.bf16.mxu0 0
        %732 = vmatpush1.bf16.xpose.msra.mxu0 0
        %733 = vmatprep.subr.bf16.mxu0 0
        %734 = vmatpush1.bf16.xpose.msra.mxu0 0
        %735 = vmatprep.subr.bf16.mxu0 0
        %736 = vmatpush1.bf16.xpose.msra.mxu0 0
        %737 = vmatprep.subr.bf16.mxu0 0
        %738 = vmatpush1.bf16.xpose.msra.mxu0 0
        %739 = vmatprep.subr.bf16.mxu0 0
        %740 = vmatpush1.bf16.xpose.msra.mxu0 0
        %741 = vmatprep.subr.bf16.mxu0 0
        %742 = vmatpush1.bf16.xpose.msra.mxu0 0
        %743 = vmatprep.subr.bf16.mxu0 0
        %744 = vmatpush1.bf16.xpose.msra.mxu0 0
        %745 = vmatprep.subr.bf16.mxu0 0
        %746 = vmatpush1.bf16.xpose.msra.mxu0 0
        %747 = vmatprep.subr.bf16.mxu0 0
        %748 = vmatpush1.bf16.xpose.msra.mxu0 0
        %749 = vmatprep.mubr.bf16.mxu0 0
        %750 = vmatmul.mubr.bf16.gmra.mrb[0].mxu0 %v712
        %v751 = vpop.f32.mrb[0].mxu0
        %v752 = vadd.f32 0.0, %v751
        %v753 = vpop.f32.mrb[0].mxu0
        %v754 = vpop.f32.mrb[0].mxu0
        %v755 = vadd.f32 0.0, %v754
        %v756 = vpop.f32.mrb[0].mxu0
        %757 = vdwg.mxu0
        %v758 = vld [vmem:[#allocation2] sm:$0xff]
        %v759 = vld [vmem:[#allocation2 + $0x8] sm:$0xff]
        %v760 = vld [vmem:[#allocation2 + $0x10] sm:$0xff]
        %v761 = vld [vmem:[#allocation2 + $0x18] sm:$0xff]
        %vm762 = vcmask 130048
        %v763 = vsel %vm762, %v695, -inf
        %764 = vmax.xlane.f32.xlu0 %v763
        %v765 = vpop.xlane.xlu0 %764
        %v766 = vsel %vm762, %v698, -inf
        %767 = vmax.xlane.f32.xlu0 %v766
        %v768 = vpop.xlane.xlu0 %767
        %v769 = vsel %vm762, %v752, -inf
        %770 = vmax.xlane.f32.xlu0 %v769
        %v771 = vpop.xlane.xlu0 %770
        %v772 = vsel %vm762, %v755, -inf
        %773 = vmax.xlane.f32.xlu0 %v772
        %v774 = vpop.xlane.xlu0 %773
        %v775 = vmax.f32 %v758, %v765
        %v776 = vmax.f32 %v759, %v768
        %v777 = vmax.f32 %v760, %v771
        %v778 = vmax.f32 %v761, %v774
        %v779 = vsub.f32 %v758, %v775
        %v780 = vsub.f32 %v759, %v776
        %v781 = vsub.f32 %v760, %v777
        %v782 = vsub.f32 %v761, %v778
        %v783 = vmul.f32 %v779, 1.442695
        %v784 = vpow.pop %v783
        %v785 = vmul.f32 %v780, 1.442695
        %v786 = vpow.pop %v785
        %v787 = vmul.f32 %v781, 1.442695
        %v788 = vpow.pop %v787
        %v789 = vmul.f32 %v782, 1.442695
        %v790 = vpow.pop %v789
        %792 = vset.pattern.permute.xlu0 0
        %793 = vperm.xlu0 %792, %v775
        %v794 = vpop.permute.xlu0 %793
        %797 = vset.pattern.permute.xlu0 0
        %798 = vperm.xlu0 %797, %v776
        %v799 = vpop.permute.xlu0 %798
        %802 = vset.pattern.permute.xlu0 0
        %803 = vperm.xlu0 %802, %v777
        %v804 = vpop.permute.xlu0 %803
        %807 = vset.pattern.permute.xlu0 0
        %808 = vperm.xlu0 %807, %v778
        %v809 = vpop.permute.xlu0 %808
        %v811 = vsub.f32 %v695, %v794
        %v812 = vsub.f32 %v698, %v799
        %v813 = vsub.f32 %v752, %v804
        %v814 = vsub.f32 %v755, %v809
        %v815 = vmul.f32 %v811, 1.442695
        %v816 = vpow.pop %v815
        %v817 = vmul.f32 %v812, 1.442695
        %v818 = vpow.pop %v817
        %v819 = vmul.f32 %v813, 1.442695
        %v820 = vpow.pop %v819
        %v821 = vmul.f32 %v814, 1.442695
        %v822 = vpow.pop %v821
        %v823 = vld [vmem:[#allocation3] sm:$0xff]
        %v824 = vld [vmem:[#allocation3 + $0x8] sm:$0xff]
        %v825 = vld [vmem:[#allocation3 + $0x10] sm:$0xff]
        %v826 = vld [vmem:[#allocation3 + $0x18] sm:$0xff]
        %v827 = vmul.f32 %v784, %v823
        %v828 = vmul.f32 %v786, %v824
        %v829 = vmul.f32 %v788, %v825
        %v830 = vmul.f32 %v790, %v826
        %v831 = vsel %vm762, %v816, 0.0
        %832 = vadd.xlane.f32.xlu0 %v831
        %v833 = vpop.xlane.xlu0 %832
        %v834 = vsel %vm762, %v818, 0.0
        %835 = vadd.xlane.f32.xlu0 %v834
        %v836 = vpop.xlane.xlu0 %835
        %v837 = vsel %vm762, %v820, 0.0
        %838 = vadd.xlane.f32.xlu0 %v837
        %v839 = vpop.xlane.xlu0 %838
        %v840 = vsel %vm762, %v822, 0.0
        %841 = vadd.xlane.f32.xlu0 %v840
        %v842 = vpop.xlane.xlu0 %841
        %v843 = vadd.f32 %v827, %v833
        %v844 = vadd.f32 %v828, %v836
        %v845 = vadd.f32 %v829, %v839
        %v846 = vadd.f32 %v830, %v842
        %vm847 = vcmask 7168
        %848 = vst.msk [vmem:[#allocation3] sm:$0xff] %vm847, %v843
        %849 = vst.msk [vmem:[#allocation3 + $0x8] sm:$0xff] %vm847, %v844
        %850 = vst.msk [vmem:[#allocation3 + $0x10] sm:$0xff] %vm847, %v845
        %851 = vst.msk [vmem:[#allocation3 + $0x18] sm:$0xff] %vm847, %v846
        %v852 = vpack.c.bf16 %v818, %v816
        %v853 = vpack.c.bf16 %v822, %v820
        %v856 = vunpack.c.l.b16 %v639
        %v857 = vunpack.c.l.b16 %v640
        %v858 = vpack.c.b16 %v857, %v856
        %v861 = vsel %vm762, %v852, 0
        %863 = vmatprep.subr.bf16.mxu0 0
        %864 = vmatpush1.bf16.msra.mxu0 %v858
        %865 = vmatprep.subr.bf16.mxu0 0
        %866 = vmatpush1.bf16.msra.mxu0 0
        %867 = vmatprep.subr.bf16.mxu0 0
        %868 = vmatpush1.bf16.msra.mxu0 0
        %869 = vmatprep.subr.bf16.mxu0 0
        %870 = vmatpush1.bf16.msra.mxu0 0
        %871 = vmatprep.subr.bf16.mxu0 0
        %872 = vmatpush1.bf16.msra.mxu0 0
        %873 = vmatprep.subr.bf16.mxu0 0
        %874 = vmatpush1.bf16.msra.mxu0 0
        %875 = vmatprep.subr.bf16.mxu0 0
        %876 = vmatpush1.bf16.msra.mxu0 0
        %877 = vmatprep.subr.bf16.mxu0 0
        %878 = vmatpush1.bf16.msra.mxu0 0
        %879 = vmatprep.subr.bf16.mxu0 0
        %880 = vmatpush1.bf16.msra.mxu0 0
        %881 = vmatprep.subr.bf16.mxu0 0
        %882 = vmatpush1.bf16.msra.mxu0 0
        %883 = vmatprep.subr.bf16.mxu0 0
        %884 = vmatpush1.bf16.msra.mxu0 0
        %885 = vmatprep.subr.bf16.mxu0 0
        %886 = vmatpush1.bf16.msra.mxu0 0
        %887 = vmatprep.subr.bf16.mxu0 0
        %888 = vmatpush1.bf16.msra.mxu0 0
        %889 = vmatprep.subr.bf16.mxu0 0
        %890 = vmatpush1.bf16.msra.mxu0 0
        %891 = vmatprep.subr.bf16.mxu0 0
        %892 = vmatpush1.bf16.msra.mxu0 0
        %893 = vmatprep.subr.bf16.mxu0 0
        %894 = vmatpush1.bf16.msra.mxu0 0
        %895 = vmatprep.mubr.bf16.mxu0 0
        %896 = vmatmul.mubr.bf16.gmra.mrb[0].mxu0 %v861
        %v897 = vpop.f32.mrb[0].mxu0
        %v898 = vadd.f32 0.0, %v897
        %v899 = vpop.f32.mrb[0].mxu0
        %v900 = vpop.f32.mrb[0].mxu0
        %v901 = vadd.f32 0.0, %v900
        %v902 = vpop.f32.mrb[0].mxu0
        %903 = vdwg.mxu0
        %v906 = vunpack.c.l.b16 %v641
        %v907 = vunpack.c.l.b16 %v642
        %v908 = vpack.c.b16 %v907, %v906
        %v911 = vsel %vm762, %v853, 0
        %913 = vmatprep.subr.bf16.mxu0 0
        %914 = vmatpush1.bf16.msra.mxu0 %v908
        %915 = vmatprep.subr.bf16.mxu0 0
        %916 = vmatpush1.bf16.msra.mxu0 0
        %917 = vmatprep.subr.bf16.mxu0 0
        %918 = vmatpush1.bf16.msra.mxu0 0
        %919 = vmatprep.subr.bf16.mxu0 0
        %920 = vmatpush1.bf16.msra.mxu0 0
        %921 = vmatprep.subr.bf16.mxu0 0
        %922 = vmatpush1.bf16.msra.mxu0 0
        %923 = vmatprep.subr.bf16.mxu0 0
        %924 = vmatpush1.bf16.msra.mxu0 0
        %925 = vmatprep.subr.bf16.mxu0 0
        %926 = vmatpush1.bf16.msra.mxu0 0
        %927 = vmatprep.subr.bf16.mxu0 0
        %928 = vmatpush1.bf16.msra.mxu0 0
        %929 = vmatprep.subr.bf16.mxu0 0
        %930 = vmatpush1.bf16.msra.mxu0 0
        %931 = vmatprep.subr.bf16.mxu0 0
        %932 = vmatpush1.bf16.msra.mxu0 0
        %933 = vmatprep.subr.bf16.mxu0 0
        %934 = vmatpush1.bf16.msra.mxu0 0
        %935 = vmatprep.subr.bf16.mxu0 0
        %936 = vmatpush1.bf16.msra.mxu0 0
        %937 = vmatprep.subr.bf16.mxu0 0
        %938 = vmatpush1.bf16.msra.mxu0 0
        %939 = vmatprep.subr.bf16.mxu0 0
        %940 = vmatpush1.bf16.msra.mxu0 0
        %941 = vmatprep.subr.bf16.mxu0 0
        %942 = vmatpush1.bf16.msra.mxu0 0
        %943 = vmatprep.subr.bf16.mxu0 0
        %944 = vmatpush1.bf16.msra.mxu0 0
        %945 = vmatprep.mubr.bf16.mxu0 0
        %946 = vmatmul.mubr.bf16.gmra.mrb[0].mxu0 %v911
        %v947 = vpop.f32.mrb[0].mxu0
        %v948 = vadd.f32 0.0, %v947
        %v949 = vpop.f32.mrb[0].mxu0
        %v950 = vpop.f32.mrb[0].mxu0
        %v951 = vadd.f32 0.0, %v950
        %v952 = vpop.f32.mrb[0].mxu0
        %953 = vdwg.mxu0
        %v954 = vld [vmem:[#allocation4] sm:$0xff]
        %v955 = vld [vmem:[#allocation4 + $0x8] sm:$0xff]
        %v956 = vld [vmem:[#allocation4 + $0x10] sm:$0xff]
        %v957 = vld [vmem:[#allocation4 + $0x18] sm:$0xff]
        %959 = vset.pattern.permute.xlu0 0
        %960 = vperm.xlu0 %959, %v784
        %v961 = vpop.permute.xlu0 %960
        %964 = vset.pattern.permute.xlu0 0
        %965 = vperm.xlu0 %964, %v786
        %v966 = vpop.permute.xlu0 %965
        %969 = vset.pattern.permute.xlu0 0
        %970 = vperm.xlu0 %969, %v788
        %v971 = vpop.permute.xlu0 %970
        %974 = vset.pattern.permute.xlu0 0
        %975 = vperm.xlu0 %974, %v790
        %v976 = vpop.permute.xlu0 %975
        %v978 = vmul.f32 %v961, %v954
        %v979 = vmul.f32 %v966, %v955
        %v980 = vmul.f32 %v971, %v956
        %v981 = vmul.f32 %v976, %v957
        %v982 = vadd.f32 %v978, %v898
        %v983 = vadd.f32 %v979, %v901
        %v984 = vadd.f32 %v980, %v948
        %v985 = vadd.f32 %v981, %v951
        %986 = vst.msk [vmem:[#allocation4] sm:$0xff] %vm653, %v982
        %987 = vst.msk [vmem:[#allocation4 + $0x8] sm:$0xff] %vm653, %v983
        %988 = vst.msk [vmem:[#allocation4 + $0x10] sm:$0xff] %vm653, %v984
        %989 = vst.msk [vmem:[#allocation4 + $0x18] sm:$0xff] %vm653, %v985
        %990 = vst.msk [vmem:[#allocation2] sm:$0xff] %vm847, %v775
        %991 = vst.msk [vmem:[#allocation2 + $0x8] sm:$0xff] %vm847, %v776
        %992 = vst.msk [vmem:[#allocation2 + $0x10] sm:$0xff] %vm847, %v777
        %993 = vst.msk [vmem:[#allocation2 + $0x18] sm:$0xff] %vm847, %v778
        // Predicated region
        $region81: #{_denoiser_forward_impl.3} parent=75 // pred_check
          %p994 = pneg %p613
        $region82: #{_denoiser_forward_impl.3} parent=75 // pred_check_branch
          %996 = sbr.rel (%p994) target = $region84
        $region83: #{_denoiser_forward_impl.3} parent=75 // pred_region
          %v997 = vld [vmem:[%s579] sm:$0xff]
          %v998 = vld [vmem:[%s579 + $0x8] sm:$0xff]
          %v999 = vld [vmem:[#allocation3] sm:$0xff]
          %v1000 = vld [vmem:[#allocation3 + $0x8] sm:$0xff]
          %v1001 = vld [vmem:[#allocation3 + $0x10] sm:$0xff]
          %v1002 = vld [vmem:[#allocation3 + $0x18] sm:$0xff]
          %v1003 = vrcp.pop %v999
          %v1004 = vrcp.pop %v1000
          %v1005 = vrcp.pop %v1001
          %v1006 = vrcp.pop %v1002
          %v1007 = vld [vmem:[#allocation4] sm:$0xff]
          %v1008 = vld [vmem:[#allocation4 + $0x8] sm:$0xff]
          %v1009 = vld [vmem:[#allocation4 + $0x10] sm:$0xff]
          %v1010 = vld [vmem:[#allocation4 + $0x18] sm:$0xff]
          %1012 = vset.pattern.permute.xlu0 0
          %1013 = vperm.xlu0 %1012, %v1003
          %v1014 = vpop.permute.xlu0 %1013
          %1017 = vset.pattern.permute.xlu0 0
          %1018 = vperm.xlu0 %1017, %v1004
          %v1019 = vpop.permute.xlu0 %1018
          %1022 = vset.pattern.permute.xlu0 0
          %1023 = vperm.xlu0 %1022, %v1005
          %v1024 = vpop.permute.xlu0 %1023
          %1027 = vset.pattern.permute.xlu0 0
          %1028 = vperm.xlu0 %1027, %v1006
          %v1029 = vpop.permute.xlu0 %1028
          %v1031 = vmul.f32 %v1007, %v1014
          %v1032 = vmul.f32 %v1008, %v1019
          %v1033 = vmul.f32 %v1009, %v1024
          %v1034 = vmul.f32 %v1010, %v1029
          %v1035 = vpack.c.bf16 %v1032, %v1031
          %v1036 = vpack.c.bf16 %v1034, %v1033
          %v1037 = vld [vmem:[%s4] sm:$0xf]
          %v1038 = vld [vmem:[%s4 + $0x4] sm:$0xf]
          %v1039 = vld [vmem:[%s4 + $0x8] sm:$0xf]
          %v1040 = vld [vmem:[%s4 + $0xc] sm:$0xf]
          %v1041 = vld [vmem:[%s4 + $0x10] sm:$0xf]
          %v1042 = vld [vmem:[%s4 + $0x14] sm:$0xf]
          %v1043 = vld [vmem:[%s4 + $0x18] sm:$0xf]
          %v1044 = vld [vmem:[%s4 + $0x1c] sm:$0xf]
          %v1045 = vld [vmem:[%s4 + $0x20] sm:$0xf]
          %v1046 = vld [vmem:[%s4 + $0x24] sm:$0xf]
          %v1047 = vld [vmem:[%s4 + $0x28] sm:$0xf]
          %v1048 = vld [vmem:[%s4 + $0x2c] sm:$0xf]
          %v1049 = vld [vmem:[%s4 + $0x30] sm:$0xf]
          %v1050 = vld [vmem:[%s4 + $0x34] sm:$0xf]
          %v1051 = vld [vmem:[%s4 + $0x38] sm:$0xf]
          %v1052 = vld [vmem:[%s4 + $0x3c] sm:$0xf]
          %v1061 = vunpack.c.l.b16 %v1037
          %v1062 = vunpack.c.l.b16 %v1038
          %v1063 = vunpack.c.l.b16 %v1039
          %v1064 = vunpack.c.l.b16 %v1040
          %v1065 = vunpack.c.l.b16 %v1041
          %v1066 = vunpack.c.l.b16 %v1042
          %v1067 = vunpack.c.l.b16 %v1043
          %v1068 = vunpack.c.l.b16 %v1044
          %v1069 = vpack.c.b16 %v1062, %v1061
          %v1070 = vpack.c.b16 %v1064, %v1063
          %v1071 = vpack.c.b16 %v1066, %v1065
          %v1072 = vpack.c.b16 %v1068, %v1067
          %v1078 = vsel %vm653, %v1035, 0
          %1080 = vmatprep.subr.bf16.mxu0 0
          %1081 = vmatpush1.bf16.msra.mxu0 %v1069
          %1082 = vmatprep.subr.bf16.mxu0 0
          %1083 = vmatpush1.bf16.msra.mxu0 %v1070
          %1084 = vmatprep.subr.bf16.mxu0 0
          %1085 = vmatpush1.bf16.msra.mxu0 %v1071
          %1086 = vmatprep.subr.bf16.mxu0 0
          %1087 = vmatpush1.bf16.msra.mxu0 %v1072
          %1088 = vmatprep.subr.bf16.mxu0 0
          %1089 = vmatpush1.bf16.msra.mxu0 0
          %1090 = vmatprep.subr.bf16.mxu0 0
          %1091 = vmatpush1.bf16.msra.mxu0 0
          %1092 = vmatprep.subr.bf16.mxu0 0
          %1093 = vmatpush1.bf16.msra.mxu0 0
          %1094 = vmatprep.subr.bf16.mxu0 0
          %1095 = vmatpush1.bf16.msra.mxu0 0
          %1096 = vmatprep.subr.bf16.mxu0 0
          %1097 = vmatpush1.bf16.msra.mxu0 0
          %1098 = vmatprep.subr.bf16.mxu0 0
          %1099 = vmatpush1.bf16.msra.mxu0 0
          %1100 = vmatprep.subr.bf16.mxu0 0
          %1101 = vmatpush1.bf16.msra.mxu0 0
          %1102 = vmatprep.subr.bf16.mxu0 0
          %1103 = vmatpush1.bf16.msra.mxu0 0
          %1104 = vmatprep.subr.bf16.mxu0 0
          %1105 = vmatpush1.bf16.msra.mxu0 0
          %1106 = vmatprep.subr.bf16.mxu0 0
          %1107 = vmatpush1.bf16.msra.mxu0 0
          %1108 = vmatprep.subr.bf16.mxu0 0
          %1109 = vmatpush1.bf16.msra.mxu0 0
          %1110 = vmatprep.subr.bf16.mxu0 0
          %1111 = vmatpush1.bf16.msra.mxu0 0
          %1112 = vmatprep.mubr.bf16.mxu0 0
          %1113 = vmatmul.mubr.bf16.gmra.mrb[0].mxu0 %v1078
          %v1114 = vpop.f32.mrb[0].mxu0
          %v1115 = vadd.f32 0.0, %v1114
          %v1116 = vpop.f32.mrb[0].mxu0
          %v1117 = vpop.f32.mrb[0].mxu0
          %v1118 = vadd.f32 0.0, %v1117
          %v1119 = vpop.f32.mrb[0].mxu0
          %1120 = vdwg.mxu0
          %v1129 = vunpack.c.l.b16 %v1045
          %v1130 = vunpack.c.l.b16 %v1046
          %v1131 = vunpack.c.l.b16 %v1047
          %v1132 = vunpack.c.l.b16 %v1048
          %v1133 = vunpack.c.l.b16 %v1049
          %v1134 = vunpack.c.l.b16 %v1050
          %v1135 = vunpack.c.l.b16 %v1051
          %v1136 = vunpack.c.l.b16 %v1052
          %v1137 = vpack.c.b16 %v1130, %v1129
          %v1138 = vpack.c.b16 %v1132, %v1131
          %v1139 = vpack.c.b16 %v1134, %v1133
          %v1140 = vpack.c.b16 %v1136, %v1135
          %v1146 = vsel %vm653, %v1036, 0
          %1148 = vmatprep.subr.bf16.mxu0 0
          %1149 = vmatpush1.bf16.msra.mxu0 %v1137
          %1150 = vmatprep.subr.bf16.mxu0 0
          %1151 = vmatpush1.bf16.msra.mxu0 %v1138
          %1152 = vmatprep.subr.bf16.mxu0 0
          %1153 = vmatpush1.bf16.msra.mxu0 %v1139
          %1154 = vmatprep.subr.bf16.mxu0 0
          %1155 = vmatpush1.bf16.msra.mxu0 %v1140
          %1156 = vmatprep.subr.bf16.mxu0 0
          %1157 = vmatpush1.bf16.msra.mxu0 0
          %1158 = vmatprep.subr.bf16.mxu0 0
          %1159 = vmatpush1.bf16.msra.mxu0 0
          %1160 = vmatprep.subr.bf16.mxu0 0
          %1161 = vmatpush1.bf16.msra.mxu0 0
          %1162 = vmatprep.subr.bf16.mxu0 0
          %1163 = vmatpush1.bf16.msra.mxu0 0
          %1164 = vmatprep.subr.bf16.mxu0 0
          %1165 = vmatpush1.bf16.msra.mxu0 0
          %1166 = vmatprep.subr.bf16.mxu0 0
          %1167 = vmatpush1.bf16.msra.mxu0 0
          %1168 = vmatprep.subr.bf16.mxu0 0
          %1169 = vmatpush1.bf16.msra.mxu0 0
          %1170 = vmatprep.subr.bf16.mxu0 0
          %1171 = vmatpush1.bf16.msra.mxu0 0
          %1172 = vmatprep.subr.bf16.mxu0 0
          %1173 = vmatpush1.bf16.msra.mxu0 0
          %1174 = vmatprep.subr.bf16.mxu0 0
          %1175 = vmatpush1.bf16.msra.mxu0 0
          %1176 = vmatprep.subr.bf16.mxu0 0
          %1177 = vmatpush1.bf16.msra.mxu0 0
          %1178 = vmatprep.subr.bf16.mxu0 0
          %1179 = vmatpush1.bf16.msra.mxu0 0
          %1180 = vmatprep.mubr.bf16.mxu0 0
          %1181 = vmatmul.mubr.bf16.gmra.mrb[0].mxu0 %v1146
          %v1182 = vpop.f32.mrb[0].mxu0
          %v1183 = vadd.f32 0.0, %v1182
          %v1184 = vpop.f32.mrb[0].mxu0
          %v1185 = vpop.f32.mrb[0].mxu0
          %v1186 = vadd.f32 0.0, %v1185
          %v1187 = vpop.f32.mrb[0].mxu0
          %1188 = vdwg.mxu0
          %v1189 = vadd.f32 %v1115, %v1183
          %v1190 = vadd.f32 %v1118, %v1186
          %v1191 = vadd.f32 %v997, %v1189
          %v1192 = vadd.f32 %v998, %v1190
          %v1193 = vld [vmem:[%s5] sm:$0x1]
          %v1195 = vlaneseq
          %v1196 = vshrl.u32 %v1195, 7
          %v1197 = vsub.s32 0, %v1196
          %v1198 = vrot.slane %v1193, %v1197
          %v1200 = vadd.f32 %v1191, %v1198
          %v1201 = vadd.f32 %v1192, %v1198
          %v1202 = vld [vmem:[%s6] sm:$0x1]
          %v1203 = vld [vmem:[%s7] sm:$0x1]
          %1204 = vadd.xlane.f32.xlu0 %v1200
          %v1205 = vpop.xlane.xlu0 %1204
          %1206 = vadd.xlane.f32.xlu0 %v1201
          %v1207 = vpop.xlane.xlu0 %1206
          %v1208 = vrcp.pop 128.0
          %v1209 = vmul.f32 %v1205, %v1208
          %v1210 = vmul.f32 %v1207, %v1208
          %v1211 = vsub.f32 %v1200, %v1209
          %v1212 = vsub.f32 %v1201, %v1210
          %v1213 = vmul.f32 %v1211, %v1211
          %v1214 = vmul.f32 %v1212, %v1212
          %1215 = vadd.xlane.f32.xlu0 %v1213
          %v1216 = vpop.xlane.xlu0 %1215
          %1217 = vadd.xlane.f32.xlu0 %v1214
          %v1218 = vpop.xlane.xlu0 %1217
          %v1219 = vmul.f32 %v1216, %v1208
          %v1220 = vmul.f32 %v1218, %v1208
          %v1221 = vadd.f32 %v1219, 1e-06
          %v1222 = vadd.f32 %v1220, 1e-06
          %v1223 = vrsqrt.pop %v1221
          %v1224 = vrsqrt.pop %v1222
          %v1225 = vmul.f32 %v1211, %v1223
          %v1226 = vmul.f32 %v1212, %v1224
          %v1228 = vlaneseq
          %v1229 = vshrl.u32 %v1228, 7
          %v1230 = vsub.s32 0, %v1229
          %v1231 = vrot.slane %v1202, %v1230
          %v1233 = vmul.f32 %v1225, %v1231
          %v1234 = vmul.f32 %v1226, %v1231
          %v1236 = vlaneseq
          %v1237 = vshrl.u32 %v1236, 7
          %v1238 = vsub.s32 0, %v1237
          %v1239 = vrot.slane %v1203, %v1238
          %v1241 = vadd.f32 %v1233, %v1239
          %v1242 = vadd.f32 %v1234, %v1239
          %v1243 = vpack.c.bf16 %v1242, %v1241
          %v1244 = vld [vmem:[%s8] sm:$0xff]
          %v1245 = vld [vmem:[%s8 + $0x8] sm:$0xff]
          %v1246 = vld [vmem:[%s8 + $0x10] sm:$0xff]
          %v1247 = vld [vmem:[%s8 + $0x18] sm:$0xff]
          %v1248 = vld [vmem:[%s8 + $0x20] sm:$0xff]
          %v1249 = vld [vmem:[%s8 + $0x28] sm:$0xff]
          %v1250 = vld [vmem:[%s8 + $0x30] sm:$0xff]
          %v1251 = vld [vmem:[%s8 + $0x38] sm:$0xff]
          %v1252 = vld [vmem:[%s8 + $0x40] sm:$0xff]
          %v1253 = vld [vmem:[%s8 + $0x48] sm:$0xff]
          %v1254 = vld [vmem:[%s8 + $0x50] sm:$0xff]
          %v1255 = vld [vmem:[%s8 + $0x58] sm:$0xff]
          %v1256 = vld [vmem:[%s8 + $0x60] sm:$0xff]
          %v1257 = vld [vmem:[%s8 + $0x68] sm:$0xff]
          %v1258 = vld [vmem:[%s8 + $0x70] sm:$0xff]
          %v1259 = vld [vmem:[%s8 + $0x78] sm:$0xff]
          %v1260 = vld [vmem:[%s8 + $0x80] sm:$0xff]
          %v1261 = vld [vmem:[%s8 + $0x88] sm:$0xff]
          %v1262 = vld [vmem:[%s8 + $0x90] sm:$0xff]
          %v1263 = vld [vmem:[%s8 + $0x98] sm:$0xff]
          %v1264 = vld [vmem:[%s8 + $0xa0] sm:$0xff]
          %v1265 = vld [vmem:[%s8 + $0xa8] sm:$0xff]
          %v1266 = vld [vmem:[%s8 + $0xb0] sm:$0xff]
          %v1267 = vld [vmem:[%s8 + $0xb8] sm:$0xff]
          %v1268 = vld [vmem:[%s8 + $0xc0] sm:$0xff]
          %v1269 = vld [vmem:[%s8 + $0xc8] sm:$0xff]
          %v1270 = vld [vmem:[%s8 + $0xd0] sm:$0xff]
          %v1271 = vld [vmem:[%s8 + $0xd8] sm:$0xff]
          %v1272 = vld [vmem:[%s8 + $0xe0] sm:$0xff]
          %v1273 = vld [vmem:[%s8 + $0xe8] sm:$0xff]
          %v1274 = vld [vmem:[%s8 + $0xf0] sm:$0xff]
          %v1275 = vld [vmem:[%s8 + $0xf8] sm:$0xff]
          %v1276 = vld [vmem:[%s9] sm:$0xf]
          %v1278 = vlaneseq
          %v1279 = vshrl.u32 %v1278, 7
          %v1280 = vsub.s32 0, %v1279
          %v1281 = vrot.slane %v1276, %v1280
          %v1282 = vlaneseq
          %v1283 = vshrl.u32 %v1282, 7
          %v1284 = vsub.s32 1, %v1283
          %v1285 = vrot.slane %v1276, %v1284
          %v1286 = vlaneseq
          %v1287 = vshrl.u32 %v1286, 7
          %v1288 = vsub.s32 2, %v1287
          %v1289 = vrot.slane %v1276, %v1288
          %v1290 = vlaneseq
          %v1291 = vshrl.u32 %v1290, 7
          %v1292 = vsub.s32 3, %v1291
          %v1293 = vrot.slane %v1276, %v1292
          %v1330 = vunpack.c.l.b16 %v1244
          %v1331 = vunpack.c.h.b16 %v1244
          %v1332 = vunpack.c.l.b16 %v1245
          %v1333 = vunpack.c.h.b16 %v1245
          %v1334 = vunpack.c.l.b16 %v1246
          %v1335 = vunpack.c.h.b16 %v1246
          %v1336 = vunpack.c.l.b16 %v1247
          %v1337 = vunpack.c.h.b16 %v1247
          %v1338 = vunpack.c.l.b16 %v1248
          %v1339 = vunpack.c.h.b16 %v1248
          %v1340 = vunpack.c.l.b16 %v1249
          %v1341 = vunpack.c.h.b16 %v1249
          %v1342 = vunpack.c.l.b16 %v1250
          %v1343 = vunpack.c.h.b16 %v1250
          %v1344 = vunpack.c.l.b16 %v1251
          %v1345 = vunpack.c.h.b16 %v1251
          %v1346 = vunpack.c.l.b16 %v1252
          %v1347 = vunpack.c.h.b16 %v1252
          %v1348 = vunpack.c.l.b16 %v1253
          %v1349 = vunpack.c.h.b16 %v1253
          %v1350 = vunpack.c.l.b16 %v1254
          %v1351 = vunpack.c.h.b16 %v1254
          %v1352 = vunpack.c.l.b16 %v1255
          %v1353 = vunpack.c.h.b16 %v1255
          %v1354 = vunpack.c.l.b16 %v1256
          %v1355 = vunpack.c.h.b16 %v1256
          %v1356 = vunpack.c.l.b16 %v1257
          %v1357 = vunpack.c.h.b16 %v1257
          %v1358 = vunpack.c.l.b16 %v1258
          %v1359 = vunpack.c.h.b16 %v1258
          %v1360 = vunpack.c.l.b16 %v1259
          %v1361 = vunpack.c.h.b16 %v1259
          %v1362 = vunpack.c.l.b16 %v1260
          %v1363 = vunpack.c.h.b16 %v1260
          %v1364 = vunpack.c.l.b16 %v1261
          %v1365 = vunpack.c.h.b16 %v1261
          %v1366 = vunpack.c.l.b16 %v1262
          %v1367 = vunpack.c.h.b16 %v1262
          %v1368 = vunpack.c.l.b16 %v1263
          %v1369 = vunpack.c.h.b16 %v1263
          %v1370 = vunpack.c.l.b16 %v1264
          %v1371 = vunpack.c.h.b16 %v1264
          %v1372 = vunpack.c.l.b16 %v1265
          %v1373 = vunpack.c.h.b16 %v1265
          %v1374 = vunpack.c.l.b16 %v1266
          %v1375 = vunpack.c.h.b16 %v1266
          %v1376 = vunpack.c.l.b16 %v1267
          %v1377 = vunpack.c.h.b16 %v1267
          %v1378 = vunpack.c.l.b16 %v1268
          %v1379 = vunpack.c.h.b16 %v1268
          %v1380 = vunpack.c.l.b16 %v1269
          %v1381 = vunpack.c.h.b16 %v1269
          %v1382 = vunpack.c.l.b16 %v1270
          %v1383 = vunpack.c.h.b16 %v1270
          %v1384 = vunpack.c.l.b16 %v1271
          %v1385 = vunpack.c.h.b16 %v1271
          %v1386 = vunpack.c.l.b16 %v1272
          %v1387 = vunpack.c.h.b16 %v1272
          %v1388 = vunpack.c.l.b16 %v1273
          %v1389 = vunpack.c.h.b16 %v1273
          %v1390 = vunpack.c.l.b16 %v1274
          %v1391 = vunpack.c.h.b16 %v1274
          %v1392 = vunpack.c.l.b16 %v1275
          %v1393 = vunpack.c.h.b16 %v1275
          %v1394 = vpack.c.b16 %v1334, %v1330
          %v1395 = vpack.c.b16 %v1335, %v1331
          %v1396 = vpack.c.b16 %v1336, %v1332
          %v1397 = vpack.c.b16 %v1337, %v1333
          %v1398 = vpack.c.b16 %v1342, %v1338
          %v1399 = vpack.c.b16 %v1343, %v1339
          %v1400 = vpack.c.b16 %v1344, %v1340
          %v1401 = vpack.c.b16 %v1345, %v1341
          %v1402 = vpack.c.b16 %v1350, %v1346
          %v1403 = vpack.c.b16 %v1351, %v1347
          %v1404 = vpack.c.b16 %v1352, %v1348
          %v1405 = vpack.c.b16 %v1353, %v1349
          %v1406 = vpack.c.b16 %v1358, %v1354
          %v1407 = vpack.c.b16 %v1359, %v1355
          %v1408 = vpack.c.b16 %v1360, %v1356
          %v1409 = vpack.c.b16 %v1361, %v1357
          %v1410 = vpack.c.b16 %v1366, %v1362
          %v1411 = vpack.c.b16 %v1367, %v1363
          %v1412 = vpack.c.b16 %v1368, %v1364
          %v1413 = vpack.c.b16 %v1369, %v1365
          %v1414 = vpack.c.b16 %v1374, %v1370
          %v1415 = vpack.c.b16 %v1375, %v1371
          %v1416 = vpack.c.b16 %v1376, %v1372
          %v1417 = vpack.c.b16 %v1377, %v1373
          %v1418 = vpack.c.b16 %v1382, %v1378
          %v1419 = vpack.c.b16 %v1383, %v1379
          %v1420 = vpack.c.b16 %v1384, %v1380
          %v1421 = vpack.c.b16 %v1385, %v1381
          %v1422 = vpack.c.b16 %v1390, %v1386
          %v1423 = vpack.c.b16 %v1391, %v1387
          %v1424 = vpack.c.b16 %v1392, %v1388
          %v1425 = vpack.c.b16 %v1393, %v1389
          %1458 = vmatprep.subr.bf16.mxu0 %v1395
          %1459 = vmatpush1.bf16.msra.mxu0 %v1394
          %1460 = vmatprep.subr.bf16.mxu0 %v1399
          %1461 = vmatpush1.bf16.msra.mxu0 %v1398
          %1462 = vmatprep.subr.bf16.mxu0 %v1403
          %1463 = vmatpush1.bf16.msra.mxu0 %v1402
          %1464 = vmatprep.subr.bf16.mxu0 %v1407
          %1465 = vmatpush1.bf16.msra.mxu0 %v1406
          %1466 = vmatprep.subr.bf16.mxu0 %v1411
          %1467 = vmatpush1.bf16.msra.mxu0 %v1410
          %1468 = vmatprep.subr.bf16.mxu0 %v1415
          %1469 = vmatpush1.bf16.msra.mxu0 %v1414
          %1470 = vmatprep.subr.bf16.mxu0 %v1419
          %1471 = vmatpush1.bf16.msra.mxu0 %v1418
          %1472 = vmatprep.subr.bf16.mxu0 %v1423
          %1473 = vmatpush1.bf16.msra.mxu0 %v1422
          %1474 = vmatprep.subr.bf16.mxu0 0
          %1475 = vmatpush1.bf16.msra.mxu0 0
          %1476 = vmatprep.subr.bf16.mxu0 0
          %1477 = vmatpush1.bf16.msra.mxu0 0
          %1478 = vmatprep.subr.bf16.mxu0 0
          %1479 = vmatpush1.bf16.msra.mxu0 0
          %1480 = vmatprep.subr.bf16.mxu0 0
          %1481 = vmatpush1.bf16.msra.mxu0 0
          %1482 = vmatprep.subr.bf16.mxu0 0
          %1483 = vmatpush1.bf16.msra.mxu0 0
          %1484 = vmatprep.subr.bf16.mxu0 0
          %1485 = vmatpush1.bf16.msra.mxu0 0
          %1486 = vmatprep.subr.bf16.mxu0 0
          %1487 = vmatpush1.bf16.msra.mxu0 0
          %1488 = vmatprep.subr.bf16.mxu0 0
          %1489 = vmatpush1.bf16.msra.mxu0 0
          %1490 = vmatprep.mubr.bf16.mxu0 0
          %1491 = vmatmul.mubr.bf16.gmra.mrb[0].mxu0 %v1243
          %v1492 = vpop.f32.mrb[0].mxu0
          %v1493 = vadd.f32 %v1281, %v1492
          %v1494 = vpop.f32.mrb[0].mxu0
          %v1495 = vadd.f32 %v1285, %v1494
          %v1496 = vpop.f32.mrb[0].mxu0
          %v1497 = vadd.f32 %v1281, %v1496
          %v1498 = vpop.f32.mrb[0].mxu0
          %v1499 = vadd.f32 %v1285, %v1498
          %1500 = vdwg.mxu0
          %1501 = vmatprep.subr.bf16.mxu0 %v1397
          %1502 = vmatpush1.bf16.msra.mxu0 %v1396
          %1503 = vmatprep.subr.bf16.mxu0 %v1401
          %1504 = vmatpush1.bf16.msra.mxu0 %v1400
          %1505 = vmatprep.subr.bf16.mxu0 %v1405
          %1506 = vmatpush1.bf16.msra.mxu0 %v1404
          %1507 = vmatprep.subr.bf16.mxu0 %v1409
          %1508 = vmatpush1.bf16.msra.mxu0 %v1408
          %1509 = vmatprep.subr.bf16.mxu0 %v1413
          %1510 = vmatpush1.bf16.msra.mxu0 %v1412
          %1511 = vmatprep.subr.bf16.mxu0 %v1417
          %1512 = vmatpush1.bf16.msra.mxu0 %v1416
          %1513 = vmatprep.subr.bf16.mxu0 %v1421
          %1514 = vmatpush1.bf16.msra.mxu0 %v1420
          %1515 = vmatprep.subr.bf16.mxu0 %v1425
          %1516 = vmatpush1.bf16.msra.mxu0 %v1424
          %1517 = vmatprep.subr.bf16.mxu0 0
          %1518 = vmatpush1.bf16.msra.mxu0 0
          %1519 = vmatprep.subr.bf16.mxu0 0
          %1520 = vmatpush1.bf16.msra.mxu0 0
          %1521 = vmatprep.subr.bf16.mxu0 0
          %1522 = vmatpush1.bf16.msra.mxu0 0
          %1523 = vmatprep.subr.bf16.mxu0 0
          %1524 = vmatpush1.bf16.msra.mxu0 0
          %1525 = vmatprep.subr.bf16.mxu0 0
          %1526 = vmatpush1.bf16.msra.mxu0 0
          %1527 = vmatprep.subr.bf16.mxu0 0
          %1528 = vmatpush1.bf16.msra.mxu0 0
          %1529 = vmatprep.subr.bf16.mxu0 0
          %1530 = vmatpush1.bf16.msra.mxu0 0
          %1531 = vmatprep.subr.bf16.mxu0 0
          %1532 = vmatpush1.bf16.msra.mxu0 0
          %1533 = vmatprep.mubr.bf16.mxu0 0
          %1534 = vmatmul.mubr.bf16.gmra.mrb[0].mxu0 %v1243
          %v1535 = vpop.f32.mrb[0].mxu0
          %v1536 = vadd.f32 %v1289, %v1535
          %v1537 = vpop.f32.mrb[0].mxu0
          %v1538 = vadd.f32 %v1293, %v1537
          %v1539 = vpop.f32.mrb[0].mxu0
          %v1540 = vadd.f32 %v1289, %v1539
          %v1541 = vpop.f32.mrb[0].mxu0
          %v1542 = vadd.f32 %v1293, %v1541
          %1543 = vdwg.mxu0
          %v1544 = vmul.f32 %v1493, 0.5
          %v1545 = vmul.f32 %v1495, 0.5
          %v1546 = vmul.f32 %v1536, 0.5
          %v1547 = vmul.f32 %v1538, 0.5
          %v1548 = vmul.f32 %v1497, 0.5
          %v1549 = vmul.f32 %v1499, 0.5
          %v1550 = vmul.f32 %v1540, 0.5
          %v1551 = vmul.f32 %v1542, 0.5
          %v1552 = vmul.f32 %v1493, 0.70710677
          %v1553 = vmul.f32 %v1495, 0.70710677
          %v1554 = vmul.f32 %v1536, 0.70710677
          %v1555 = vmul.f32 %v1538, 0.70710677
          %v1556 = vmul.f32 %v1497, 0.70710677
          %v1557 = vmul.f32 %v1499, 0.70710677
          %v1558 = vmul.f32 %v1540, 0.70710677
          %v1559 = vmul.f32 %v1542, 0.70710677
          %v1560 = verf.f32.pop %v1552
          %v1561 = verf.f32.pop %v1553
          %v1562 = verf.f32.pop %v1554
          %v1563 = verf.f32.pop %v1555
          %v1564 = verf.f32.pop %v1556
          %v1565 = verf.f32.pop %v1557
          %v1566 = verf.f32.pop %v1558
          %v1567 = verf.f32.pop %v1559
          %v1568 = vadd.f32 %v1560, 1.0
          %v1569 = vadd.f32 %v1561, 1.0
          %v1570 = vadd.f32 %v1562, 1.0
          %v1571 = vadd.f32 %v1563, 1.0
          %v1572 = vadd.f32 %v1564, 1.0
          %v1573 = vadd.f32 %v1565, 1.0
          %v1574 = vadd.f32 %v1566, 1.0
          %v1575 = vadd.f32 %v1567, 1.0
          %v1576 = vmul.f32 %v1544, %v1568
          %v1577 = vmul.f32 %v1545, %v1569
          %v1578 = vmul.f32 %v1546, %v1570
          %v1579 = vmul.f32 %v1547, %v1571
          %v1580 = vmul.f32 %v1548, %v1572
          %v1581 = vmul.f32 %v1549, %v1573
          %v1582 = vmul.f32 %v1550, %v1574
          %v1583 = vmul.f32 %v1551, %v1575
          %v1584 = vpack.c.bf16 %v1580, %v1576
          %v1585 = vpack.c.bf16 %v1581, %v1577
          %v1586 = vpack.c.bf16 %v1582, %v1578
          %v1587 = vpack.c.bf16 %v1583, %v1579
          %v1588 = vld [vmem:[%s10] sm:$0xf]
          %v1589 = vld [vmem:[%s10 + $0x4] sm:$0xf]
          %v1590 = vld [vmem:[%s10 + $0x8] sm:$0xf]
          %v1591 = vld [vmem:[%s10 + $0xc] sm:$0xf]
          %v1592 = vld [vmem:[%s10 + $0x10] sm:$0xf]
          %v1593 = vld [vmem:[%s10 + $0x14] sm:$0xf]
          %v1594 = vld [vmem:[%s10 + $0x18] sm:$0xf]
          %v1595 = vld [vmem:[%s10 + $0x1c] sm:$0xf]
          %v1596 = vld [vmem:[%s10 + $0x20] sm:$0xf]
          %v1597 = vld [vmem:[%s10 + $0x24] sm:$0xf]
          %v1598 = vld [vmem:[%s10 + $0x28] sm:$0xf]
          %v1599 = vld [vmem:[%s10 + $0x2c] sm:$0xf]
          %v1600 = vld [vmem:[%s10 + $0x30] sm:$0xf]
          %v1601 = vld [vmem:[%s10 + $0x34] sm:$0xf]
          %v1602 = vld [vmem:[%s10 + $0x38] sm:$0xf]
          %v1603 = vld [vmem:[%s10 + $0x3c] sm:$0xf]
          %v1604 = vld [vmem:[%s10 + $0x40] sm:$0xf]
          %v1605 = vld [vmem:[%s10 + $0x44] sm:$0xf]
          %v1606 = vld [vmem:[%s10 + $0x48] sm:$0xf]
          %v1607 = vld [vmem:[%s10 + $0x4c] sm:$0xf]
          %v1608 = vld [vmem:[%s10 + $0x50] sm:$0xf]
          %v1609 = vld [vmem:[%s10 + $0x54] sm:$0xf]
          %v1610 = vld [vmem:[%s10 + $0x58] sm:$0xf]
          %v1611 = vld [vmem:[%s10 + $0x5c] sm:$0xf]
          %v1612 = vld [vmem:[%s10 + $0x60] sm:$0xf]
          %v1613 = vld [vmem:[%s10 + $0x64] sm:$0xf]
          %v1614 = vld [vmem:[%s10 + $0x68] sm:$0xf]
          %v1615 = vld [vmem:[%s10 + $0x6c] sm:$0xf]
          %v1616 = vld [vmem:[%s10 + $0x70] sm:$0xf]
          %v1617 = vld [vmem:[%s10 + $0x74] sm:$0xf]
          %v1618 = vld [vmem:[%s10 + $0x78] sm:$0xf]
          %v1619 = vld [vmem:[%s10 + $0x7c] sm:$0xf]
          %v1620 = vld [vmem:[%s10 + $0x80] sm:$0xf]
          %v1621 = vld [vmem:[%s10 + $0x84] sm:$0xf]
          %v1622 = vld [vmem:[%s10 + $0x88] sm:$0xf]
          %v1623 = vld [vmem:[%s10 + $0x8c] sm:$0xf]
          %v1624 = vld [vmem:[%s10 + $0x90] sm:$0xf]
          %v1625 = vld [vmem:[%s10 + $0x94] sm:$0xf]
          %v1626 = vld [vmem:[%s10 + $0x98] sm:$0xf]
          %v1627 = vld [vmem:[%s10 + $0x9c] sm:$0xf]
          %v1628 = vld [vmem:[%s10 + $0xa0] sm:$0xf]
          %v1629 = vld [vmem:[%s10 + $0xa4] sm:$0xf]
          %v1630 = vld [vmem:[%s10 + $0xa8] sm:$0xf]
          %v1631 = vld [vmem:[%s10 + $0xac] sm:$0xf]
          %v1632 = vld [vmem:[%s10 + $0xb0] sm:$0xf]
          %v1633 = vld [vmem:[%s10 + $0xb4] sm:$0xf]
          %v1634 = vld [vmem:[%s10 + $0xb8] sm:$0xf]
          %v1635 = vld [vmem:[%s10 + $0xbc] sm:$0xf]
          %v1636 = vld [vmem:[%s10 + $0xc0] sm:$0xf]
          %v1637 = vld [vmem:[%s10 + $0xc4] sm:$0xf]
          %v1638 = vld [vmem:[%s10 + $0xc8] sm:$0xf]
          %v1639 = vld [vmem:[%s10 + $0xcc] sm:$0xf]
          %v1640 = vld [vmem:[%s10 + $0xd0] sm:$0xf]
          %v1641 = vld [vmem:[%s10 + $0xd4] sm:$0xf]
          %v1642 = vld [vmem:[%s10 + $0xd8] sm:$0xf]
          %v1643 = vld [vmem:[%s10 + $0xdc] sm:$0xf]
          %v1644 = vld [vmem:[%s10 + $0xe0] sm:$0xf]
          %v1645 = vld [vmem:[%s10 + $0xe4] sm:$0xf]
          %v1646 = vld [vmem:[%s10 + $0xe8] sm:$0xf]
          %v1647 = vld [vmem:[%s10 + $0xec] sm:$0xf]
          %v1648 = vld [vmem:[%s10 + $0xf0] sm:$0xf]
          %v1649 = vld [vmem:[%s10 + $0xf4] sm:$0xf]
          %v1650 = vld [vmem:[%s10 + $0xf8] sm:$0xf]
          %v1651 = vld [vmem:[%s10 + $0xfc] sm:$0xf]
          %v1652 = vld [vmem:[%s11] sm:$0x1]
          %v1654 = vlaneseq
          %v1655 = vshrl.u32 %v1654, 7
          %v1656 = vsub.s32 0, %v1655
          %v1657 = vrot.slane %v1652, %v1656
          %v1723 = vunpack.c.l.b16 %v1588
          %v1724 = vunpack.c.l.b16 %v1589
          %v1725 = vunpack.c.l.b16 %v1590
          %v1726 = vunpack.c.l.b16 %v1591
          %v1727 = vunpack.c.l.b16 %v1592
          %v1728 = vunpack.c.l.b16 %v1593
          %v1729 = vunpack.c.l.b16 %v1594
          %v1730 = vunpack.c.l.b16 %v1595
          %v1731 = vunpack.c.l.b16 %v1596
          %v1732 = vunpack.c.l.b16 %v1597
          %v1733 = vunpack.c.l.b16 %v1598
          %v1734 = vunpack.c.l.b16 %v1599
          %v1735 = vunpack.c.l.b16 %v1600
          %v1736 = vunpack.c.l.b16 %v1601
          %v1737 = vunpack.c.l.b16 %v1602
          %v1738 = vunpack.c.l.b16 %v1603
          %v1739 = vunpack.c.l.b16 %v1604
          %v1740 = vunpack.c.l.b16 %v1605
          %v1741 = vunpack.c.l.b16 %v1606
          %v1742 = vunpack.c.l.b16 %v1607
          %v1743 = vunpack.c.l.b16 %v1608
          %v1744 = vunpack.c.l.b16 %v1609
          %v1745 = vunpack.c.l.b16 %v1610
          %v1746 = vunpack.c.l.b16 %v1611
          %v1747 = vunpack.c.l.b16 %v1612
          %v1748 = vunpack.c.l.b16 %v1613
          %v1749 = vunpack.c.l.b16 %v1614
          %v1750 = vunpack.c.l.b16 %v1615
          %v1751 = vunpack.c.l.b16 %v1616
          %v1752 = vunpack.c.l.b16 %v1617
          %v1753 = vunpack.c.l.b16 %v1618
          %v1754 = vunpack.c.l.b16 %v1619
          %v1755 = vunpack.c.l.b16 %v1620
          %v1756 = vunpack.c.l.b16 %v1621
          %v1757 = vunpack.c.l.b16 %v1622
          %v1758 = vunpack.c.l.b16 %v1623
          %v1759 = vunpack.c.l.b16 %v1624
          %v1760 = vunpack.c.l.b16 %v1625
          %v1761 = vunpack.c.l.b16 %v1626
          %v1762 = vunpack.c.l.b16 %v1627
          %v1763 = vunpack.c.l.b16 %v1628
          %v1764 = vunpack.c.l.b16 %v1629
          %v1765 = vunpack.c.l.b16 %v1630
          %v1766 = vunpack.c.l.b16 %v1631
          %v1767 = vunpack.c.l.b16 %v1632
          %v1768 = vunpack.c.l.b16 %v1633
          %v1769 = vunpack.c.l.b16 %v1634
          %v1770 = vunpack.c.l.b16 %v1635
          %v1771 = vunpack.c.l.b16 %v1636
          %v1772 = vunpack.c.l.b16 %v1637
          %v1773 = vunpack.c.l.b16 %v1638
          %v1774 = vunpack.c.l.b16 %v1639
          %v1775 = vunpack.c.l.b16 %v1640
          %v1776 = vunpack.c.l.b16 %v1641
          %v1777 = vunpack.c.l.b16 %v1642
          %v1778 = vunpack.c.l.b16 %v1643
          %v1779 = vunpack.c.l.b16 %v1644
          %v1780 = vunpack.c.l.b16 %v1645
          %v1781 = vunpack.c.l.b16 %v1646
          %v1782 = vunpack.c.l.b16 %v1647
          %v1783 = vunpack.c.l.b16 %v1648
          %v1784 = vunpack.c.l.b16 %v1649
          %v1785 = vunpack.c.l.b16 %v1650
          %v1786 = vunpack.c.l.b16 %v1651
          %v1787 = vpack.c.b16 %v1724, %v1723
          %v1788 = vpack.c.b16 %v1726, %v1725
          %v1789 = vpack.c.b16 %v1728, %v1727
          %v1790 = vpack.c.b16 %v1730, %v1729
          %v1791 = vpack.c.b16 %v1732, %v1731
          %v1792 = vpack.c.b16 %v1734, %v1733
          %v1793 = vpack.c.b16 %v1736, %v1735
          %v1794 = vpack.c.b16 %v1738, %v1737
          %v1795 = vpack.c.b16 %v1740, %v1739
          %v1796 = vpack.c.b16 %v1742, %v1741
          %v1797 = vpack.c.b16 %v1744, %v1743
          %v1798 = vpack.c.b16 %v1746, %v1745
          %v1799 = vpack.c.b16 %v1748, %v1747
          %v1800 = vpack.c.b16 %v1750, %v1749
          %v1801 = vpack.c.b16 %v1752, %v1751
          %v1802 = vpack.c.b16 %v1754, %v1753
          %v1803 = vpack.c.b16 %v1756, %v1755
          %v1804 = vpack.c.b16 %v1758, %v1757
          %v1805 = vpack.c.b16 %v1760, %v1759
          %v1806 = vpack.c.b16 %v1762, %v1761
          %v1807 = vpack.c.b16 %v1764, %v1763
          %v1808 = vpack.c.b16 %v1766, %v1765
          %v1809 = vpack.c.b16 %v1768, %v1767
          %v1810 = vpack.c.b16 %v1770, %v1769
          %v1811 = vpack.c.b16 %v1772, %v1771
          %v1812 = vpack.c.b16 %v1774, %v1773
          %v1813 = vpack.c.b16 %v1776, %v1775
          %v1814 = vpack.c.b16 %v1778, %v1777
          %v1815 = vpack.c.b16 %v1780, %v1779
          %v1816 = vpack.c.b16 %v1782, %v1781
          %v1817 = vpack.c.b16 %v1784, %v1783
          %v1818 = vpack.c.b16 %v1786, %v1785
          %1851 = vmatprep.subr.bf16.mxu0 0
          %1852 = vmatpush1.bf16.msra.mxu0 %v1787
          %1853 = vmatprep.subr.bf16.mxu0 0
          %1854 = vmatpush1.bf16.msra.mxu0 %v1788
          %1855 = vmatprep.subr.bf16.mxu0 0
          %1856 = vmatpush1.bf16.msra.mxu0 %v1789
          %1857 = vmatprep.subr.bf16.mxu0 0
          %1858 = vmatpush1.bf16.msra.mxu0 %v1790
          %1859 = vmatprep.subr.bf16.mxu0 0
          %1860 = vmatpush1.bf16.msra.mxu0 %v1791
          %1861 = vmatprep.subr.bf16.mxu0 0
          %1862 = vmatpush1.bf16.msra.mxu0 %v1792
          %1863 = vmatprep.subr.bf16.mxu0 0
          %1864 = vmatpush1.bf16.msra.mxu0 %v1793
          %1865 = vmatprep.subr.bf16.mxu0 0
          %1866 = vmatpush1.bf16.msra.mxu0 %v1794
          %1867 = vmatprep.subr.bf16.mxu0 0
          %1868 = vmatpush1.bf16.msra.mxu0 %v1795
          %1869 = vmatprep.subr.bf16.mxu0 0
          %1870 = vmatpush1.bf16.msra.mxu0 %v1796
          %1871 = vmatprep.subr.bf16.mxu0 0
          %1872 = vmatpush1.bf16.msra.mxu0 %v1797
          %1873 = vmatprep.subr.bf16.mxu0 0
          %1874 = vmatpush1.bf16.msra.mxu0 %v1798
          %1875 = vmatprep.subr.bf16.mxu0 0
          %1876 = vmatpush1.bf16.msra.mxu0 %v1799
          %1877 = vmatprep.subr.bf16.mxu0 0
          %1878 = vmatpush1.bf16.msra.mxu0 %v1800
          %1879 = vmatprep.subr.bf16.mxu0 0
          %1880 = vmatpush1.bf16.msra.mxu0 %v1801
          %1881 = vmatprep.subr.bf16.mxu0 0
          %1882 = vmatpush1.bf16.msra.mxu0 %v1802
          %1883 = vmatprep.mubr.bf16.mxu0 %v1585
          %1884 = vmatmul.mubr.bf16.gmra.mrb[0].mxu0 %v1584
          %v1885 = vpop.f32.mrb[0].mxu0
          %v1886 = vadd.f32 %v1657, %v1885
          %v1887 = vpop.f32.mrb[0].mxu0
          %v1888 = vpop.f32.mrb[0].mxu0
          %v1889 = vadd.f32 %v1657, %v1888
          %v1890 = vpop.f32.mrb[0].mxu0
          %1891 = vdwg.mxu0
          %1892 = vmatprep.subr.bf16.mxu0 0
          %1893 = vmatpush1.bf16.msra.mxu0 %v1803
          %1894 = vmatprep.subr.bf16.mxu0 0
          %1895 = vmatpush1.bf16.msra.mxu0 %v1804
          %1896 = vmatprep.subr.bf16.mxu0 0
          %1897 = vmatpush1.bf16.msra.mxu0 %v1805
          %1898 = vmatprep.subr.bf16.mxu0 0
          %1899 = vmatpush1.bf16.msra.mxu0 %v1806
          %1900 = vmatprep.subr.bf16.mxu0 0
          %1901 = vmatpush1.bf16.msra.mxu0 %v1807
          %1902 = vmatprep.subr.bf16.mxu0 0
          %1903 = vmatpush1.bf16.msra.mxu0 %v1808
          %1904 = vmatprep.subr.bf16.mxu0 0
          %1905 = vmatpush1.bf16.msra.mxu0 %v1809
          %1906 = vmatprep.subr.bf16.mxu0 0
          %1907 = vmatpush1.bf16.msra.mxu0 %v1810
          %1908 = vmatprep.subr.bf16.mxu0 0
          %1909 = vmatpush1.bf16.msra.mxu0 %v1811
          %1910 = vmatprep.subr.bf16.mxu0 0
          %1911 = vmatpush1.bf16.msra.mxu0 %v1812
          %1912 = vmatprep.subr.bf16.mxu0 0
          %1913 = vmatpush1.bf16.msra.mxu0 %v1813
          %1914 = vmatprep.subr.bf16.mxu0 0
          %1915 = vmatpush1.bf16.msra.mxu0 %v1814
          %1916 = vmatprep.subr.bf16.mxu0 0
          %1917 = vmatpush1.bf16.msra.mxu0 %v1815
          %1918 = vmatprep.subr.bf16.mxu0 0
          %1919 = vmatpush1.bf16.msra.mxu0 %v1816
          %1920 = vmatprep.subr.bf16.mxu0 0
          %1921 = vmatpush1.bf16.msra.mxu0 %v1817
          %1922 = vmatprep.subr.bf16.mxu0 0
          %1923 = vmatpush1.bf16.msra.mxu0 %v1818
          %1924 = vmatprep.mubr.bf16.mxu0 %v1587
          %1925 = vmatmul.mubr.bf16.gmra.mrb[0].mxu0 %v1586
          %v1926 = vpop.f32.mrb[0].mxu0
          %v1927 = vadd.f32 %v1886, %v1926
          %v1928 = vpop.f32.mrb[0].mxu0
          %v1929 = vpop.f32.mrb[0].mxu0
          %v1930 = vadd.f32 %v1889, %v1929
          %v1931 = vpop.f32.mrb[0].mxu0
          %1932 = vdwg.mxu0
          %v1933 = vadd.f32 %v1200, %v1927
          %v1934 = vadd.f32 %v1201, %v1930
          %v1935 = vld [vmem:[%s12] sm:$0x1]
          %v1936 = vld [vmem:[%s13] sm:$0x1]
          %1937 = vadd.xlane.f32.xlu0 %v1933
          %v1938 = vpop.xlane.xlu0 %1937
          %1939 = vadd.xlane.f32.xlu0 %v1934
          %v1940 = vpop.xlane.xlu0 %1939
          %v1941 = vmul.f32 %v1938, %v1208
          %v1942 = vmul.f32 %v1940, %v1208
          %v1943 = vsub.f32 %v1933, %v1941
          %v1944 = vsub.f32 %v1934, %v1942
          %v1945 = vmul.f32 %v1943, %v1943
          %v1946 = vmul.f32 %v1944, %v1944
          %1947 = vadd.xlane.f32.xlu0 %v1945
          %v1948 = vpop.xlane.xlu0 %1947
          %1949 = vadd.xlane.f32.xlu0 %v1946
          %v1950 = vpop.xlane.xlu0 %1949
          %v1951 = vmul.f32 %v1948, %v1208
          %v1952 = vmul.f32 %v1950, %v1208
          %v1953 = vadd.f32 %v1951, 1e-06
          %v1954 = vadd.f32 %v1952, 1e-06
          %v1955 = vrsqrt.pop %v1953
          %v1956 = vrsqrt.pop %v1954
          %v1957 = vmul.f32 %v1943, %v1955
          %v1958 = vmul.f32 %v1944, %v1956
          %v1960 = vlaneseq
          %v1961 = vshrl.u32 %v1960, 7
          %v1962 = vsub.s32 0, %v1961
          %v1963 = vrot.slane %v1935, %v1962
          %v1965 = vmul.f32 %v1957, %v1963
          %v1966 = vmul.f32 %v1958, %v1963
          %v1968 = vlaneseq
          %v1969 = vshrl.u32 %v1968, 7
          %v1970 = vsub.s32 0, %v1969
          %v1971 = vrot.slane %v1936, %v1970
          %v1973 = vadd.f32 %v1965, %v1971
          %v1974 = vadd.f32 %v1966, %v1971
          %1975 = vst [vmem:[%s570] sm:$0xff] %v1973
          %1976 = vst [vmem:[%s570 + $0x8] sm:$0xff] %v1974
        $region84: #{_denoiser_forward_impl.3} parent=75 // pred_fallthru
          _
        %s1977 = sand.u32 %s379, 1
        %s1978 = scalar_lea.sflag [#allocation6], %s1977
        %s1979 = sand.u32 %s379, 1
        %s1980 = smul.addr %s1979, 16
        %s1981 = scalar_lea.vmem [#allocation5], %s1980
        // Predicated region
        $region85: #{_denoiser_forward_impl.3} parent=75 // pred_check
          %p1982 = pneg %p389
        $region86: #{_denoiser_forward_impl.3} parent=75 // pred_check_branch
          %1984 = sbr.rel (%p1982) target = $region88
        $region87: #{_denoiser_forward_impl.3} parent=75 // pred_region
          %s1985 = smul.u32 2, %s34
          %s1987 = ssub.s32 256, 256
          %1988 = vsyncadd %s1978, %s1987
          %s1989 = smul.addr %s33, 2
          %s1990 = sadd.s32 %s1985, %s1989
          %s1991 = smul.addr %s1990, 128
          %s1992 = scalar_lea.hbm %s14, %s1991
          %s1993 = sshll.u32 %s1981, 4
          %s1994 = int_to_ptr.vmem [resolvable:$true] %s1993
          %1999 = dma.vmem_to_hbm [thread:$0]  %s1994, 256, %s1992, %s1978, 128, 128, 8
        $region88: #{_denoiser_forward_impl.3} parent=75 // pred_fallthru
          _
      $region76: #{_denoiser_forward_impl.3} parent=5 // pred_fallthru
        _
      %p2000 = scmp.le.s32.totalorder 2, %s23
      // Predicated region
      $region89: #{_denoiser_forward_impl.3} parent=5 // pred_check
        %p2001 = pneg %p2000
      $region90: #{_denoiser_forward_impl.3} parent=5 // pred_check_branch
        %2003 = sbr.rel (%p2001) target = $region92
      $region91: #{_denoiser_forward_impl.3} parent=5 // pred_region
        %s2004 = ssub.s32 %s23, 2
        // Predicated region
        $region93: #{_denoiser_forward_impl.3} parent=91 // pred_check
          %p2005 = pneg %p395
        $region94: #{_denoiser_forward_impl.3} parent=91 // pred_check_branch
          %2007 = sbr.rel (%p2005) target = $region96
        $region95: #{_denoiser_forward_impl.3} parent=91 // pred_region
          %s2008 = sand.u32 %s380, 1
          %s2009 = scalar_lea.sflag [#allocation6], %s2008
          %s2010 = sand.u32 %s380, 1
          %s2011 = smul.addr %s2010, 16
          %s2012 = scalar_lea.vmem [#allocation5], %s2011
          %2013 = dma.done %s2009, 256
        $region96: #{_denoiser_forward_impl.3} parent=91 // pred_fallthru
          _
      $region92: #{_denoiser_forward_impl.3} parent=5 // pred_fallthru
        _
    $region6: #{_denoiser_forward_impl.3} parent=1 // loop_footer
      %s27 = sadd.s32 1, %s23
    $region7: #{_denoiser_forward_impl.3} parent=1 // loop_footer_branch
      %22 = sbr.rel target = $region3
    $region8: #{_denoiser_forward_impl.3} parent=1 // loop_exit
      _
    %2014 = vsyncpa [#allocation6], 1
    %s2015 = scalar_lea.sflag [#allocation6], 1
    %2016 = vsyncpa %s2015, 1

</llo_original>
